<compile_context>
chip_gen: v5e
topology: v5e:2x2
jax: 0.10.0
libtpu: 0.0.40
codegen_flags: <defaults>
</compile_context>

<pallas_src>
import functools

import jax
import jax.numpy as jnp
from jax.experimental import pallas as pl
from jax.experimental.pallas import tpu as pltpu


def _embed_kernel(tok_ref, w_hbm, o_hbm, buf, gsem, wsem, *, block_m):
    """Row gather + writeback with cross-step double buffering.

    tok_ref : SMEM int32[M_pad]        flat token ids (scalar prefetch)
    w_hbm   : HBM  [V, D]              full embedding table
    o_hbm   : HBM  [M_pad, D]          output, written only via manual DMA
    buf     : VMEM [2, block_m, D]     double-buffered gather slots
    gsem    : DMA sems [2]             one gather semaphore per slot
    wsem    : DMA sems [2]             one writeback semaphore per slot
    """
    step = pl.program_id(0)
    nsteps = pl.num_programs(0)
    slot = step & 1
    nslot = 1 - slot

    def issue_gather(block_idx, s):
        base = block_idx * block_m
        for r in range(block_m):
            tok = tok_ref[base + r]                       # SMEM scalar read
            pltpu.make_async_copy(w_hbm.at[tok], buf.at[s, r], gsem.at[s]).start()

    # Prime the pipeline: the very first block's gathers go into slot 0.
    @pl.when(step == 0)
    def _():
        issue_gather(0, 0)

    # Slot `nslot` is about to be overwritten with block step+1's rows; its
    # writeback DMA (issued at step-1) must have drained first.
    @pl.when(step >= 1)
    def _():
        prev_base = (step - 1) * block_m
        pltpu.make_async_copy(
            buf.at[nslot], o_hbm.at[pl.ds(prev_base, block_m), :], wsem.at[nslot]
        ).wait()

    # Prefetch the next block's rows while the current block is processed.
    @pl.when(step + 1 < nsteps)
    def _():
        issue_gather(step + 1, nslot)

    # Aggregate wait: all block_m row copies of `slot` signalled gsem[slot];
    # DMA semaphores count bytes, so a single wait sized to the whole
    # (block_m, D) slot drains them all (src here only provides the shape).
    pltpu.make_async_copy(
        o_hbm.at[pl.ds(0, block_m), :], buf.at[slot], gsem.at[slot]
    ).wait()

    # Write the finished slot straight to the HBM output with one DMA
    # (no extra VMEM->VMEM pass, no pipelined output buffer).
    base = pl.multiple_of(step * block_m, block_m)
    wb = pltpu.make_async_copy(
        buf.at[slot], o_hbm.at[pl.ds(base, block_m), :], wsem.at[slot]
    )
    wb.start()

    # The final step has no successor to drain its writeback for it.
    @pl.when(step == nsteps - 1)
    def _():
        wb.wait()


def _pick_block_m(m_total, requested):
    """Prefer a multiple-of-8 block that divides m_total (avoids output padding)."""
    bm = max(8, (requested // 8) * 8)
    if m_total % bm == 0:
        return bm
    cand = bm
    while cand > 8:
        cand //= 2
        if cand % 8 == 0 and m_total % cand == 0:
            return cand
    return bm  # no nice divisor: caller pads the tail block and slices


def embed(tokens, W_E, *, block_m=128):
    """tokens: [B, P] int ; W_E: [V, D]  ->  [B, P, D]  (== W_E[tokens]).

    VMEM use is only 2 * block_m * D * itemsize, well within the 16 MiB (v5e) /
    32 MiB (v6e, v7x) default scoped VMEM for GPT-2-sized d_model even at
    block_m = 512; sweep block_m per chip.
    """
    B, P = tokens.shape
    V, D = W_E.shape
    M = B * P

    bm = _pick_block_m(M, block_m)
    n_blocks = pl.cdiv(M, bm)
    M_pad = n_blocks * bm

    # Clamp ids so an out-of-range token can never drive an OOB HBM DMA.
    tok_flat = jnp.clip(tokens.reshape(M).astype(jnp.int32), 0, V - 1)
    if M_pad != M:
        # Ragged tail: pad the token stream (padded rows gather row 0 and are
        # sliced off below).  Only hit when B*P has no multiple-of-8 divisor
        # <= block_m; costs one extra pass over the output.
        tok_flat = jnp.pad(tok_flat, (0, M_pad - M))
    # TODO(synk): for training-scale B*P (hundreds of thousands of tokens),
    # chunk into multiple pallas_calls so the scalar-prefetched id vector stays
    # within SMEM (1-D SMEM pads to next_pow2(4*M_pad) bytes).

    itemsize = jnp.dtype(W_E.dtype).itemsize
    out = pl.pallas_call(
        functools.partial(_embed_kernel, block_m=bm),
        out_shape=jax.ShapeDtypeStruct((M_pad, D), W_E.dtype),
        grid_spec=pltpu.PrefetchScalarGridSpec(
            num_scalar_prefetch=1,                        # token ids -> SMEM
            grid=(n_blocks,),
            in_specs=[pl.BlockSpec(memory_space=pl.ANY)],   # W_E stays in HBM
            out_specs=pl.BlockSpec(memory_space=pl.ANY),    # manual writeback
            scratch_shapes=[
                pltpu.VMEM((2, bm, D), W_E.dtype),          # double-buffered rows
                pltpu.SemaphoreType.DMA((2,)),              # gather sems (per slot)
                pltpu.SemaphoreType.DMA((2,)),              # writeback sems (per slot)
            ],
        ),
        compiler_params=pltpu.CompilerParams(
            # The gather/writeback pipeline carries state across grid steps in
            # scratch + semaphores, so this axis must execute sequentially.
            dimension_semantics=("arbitrary",),
        ),
        cost_estimate=pl.CostEstimate(
            flops=0,
            transcendentals=0,
            bytes_accessed=2 * M_pad * D * itemsize + M_pad * 4,
        ),
    )(tok_flat, W_E)

    if M_pad != M:
        out = out[:M]
    return out.reshape(B, P, D)


if __name__ == "__main__":
    # Small config consistent with Embed.forward: tokens [B, P] -> [B, P, d_model].
    batch, pos, d_vocab, d_model = 2, 64, 512, 256
    init_range = 0.02

    key = jax.random.PRNGKey(0)
    kt, kw, kt2 = jax.random.split(key, 3)

    tokens = jax.random.randint(kt, (batch, pos), 0, d_vocab, dtype=jnp.int32)
    # nn.init.normal_(W_E, std=init_range)
    W_E = init_range * jax.random.normal(kw, (d_vocab, d_model), dtype=jnp.float32)

    # Aligned path: B*P = 128, block_m = 32 -> 4 pipelined grid steps, no padding.
    out = jax.block_until_ready(embed(tokens, W_E, block_m=32))
    ref = W_E[tokens]
    assert out.shape == (batch, pos, d_model)
    assert bool(jnp.all(out == ref))

    # Ragged-tail path: B*P = 15 has no multiple-of-8 divisor -> pad + slice.
    tokens2 = jax.random.randint(kt2, (3, 5), 0, d_vocab, dtype=jnp.int32)
    out2 = jax.block_until_ready(embed(tokens2, W_E, block_m=16))
    assert out2.shape == (3, 5, d_model)
    assert bool(jnp.all(out2 == W_E[tokens2]))

    print("KERNEL_OK")
</pallas_src>

<mosaic_0001>
module attributes {stable_mosaic.version = 11 : i64} {
  func.func @_embed_kernel(%arg0: i32, %arg1: memref<128xi32, #tpu.memory_space<smem>>, %arg2: memref<512x256xf32, #tpu.memory_space<any>>, %arg3: memref<128x256xf32, #tpu.memory_space<any>>, %arg4: memref<2x32x256xf32, #tpu.memory_space<vmem>>, %arg5: memref<2x!tpu.dma_semaphore, #tpu.memory_space<semaphore_mem>>, %arg6: memref<2x!tpu.dma_semaphore, #tpu.memory_space<semaphore_mem>>) attributes {dimension_semantics = [#tpu.dimension_semantics<arbitrary>], iteration_bounds = array<i64: 4>, scalar_prefetch = 1 : i64, scratch_operands = 3 : i64, tpu.core_type = #tpu.core_type<tc>, window_params = [{}, {}]} {
    %c1_i32 = arith.constant 1 : i32
    %0 = arith.andi %arg0, %c1_i32 : i32
    %c1_i32_0 = arith.constant 1 : i32
    %1 = arith.subi %c1_i32_0, %0 : i32
    %c0_i32 = arith.constant 0 : i32
    %2 = arith.cmpi eq, %arg0, %c0_i32 : i32
    %3 = arith.extui %2 : i1 to i32
    %c0_i32_1 = arith.constant 0 : i32
    %4 = arith.cmpi ne, %3, %c0_i32_1 : i32
    scf.if %4 {
      %c0 = arith.constant 0 : index
      %27 = memref.load %arg1[%c0] : memref<128xi32, #tpu.memory_space<smem>>
      %c0_i32_14 = arith.constant 0 : i32
      %c0_i32_15 = arith.constant 0 : i32
      %c0_i32_16 = arith.constant 0 : i32
      %c0_i32_17 = arith.constant 0 : i32
      %28 = tpu.memref_slice %arg2[%27, %c0_i32_17] : memref<512x256xf32, #tpu.memory_space<any>> -> memref<1x256xf32, #tpu.memory_space<any>>
      %29 = tpu.memref_squeeze %28 : memref<1x256xf32, #tpu.memory_space<any>> -> memref<256xf32, #tpu.memory_space<any>>
      %c0_i32_18 = arith.constant 0 : i32
      %30 = tpu.memref_slice %arg4[%c0_i32_14, %c0_i32_15, %c0_i32_18] : memref<2x32x256xf32, #tpu.memory_space<vmem>> -> memref<1x1x256xf32, #tpu.memory_space<vmem>>
      %31 = tpu.memref_squeeze %30 : memref<1x1x256xf32, #tpu.memory_space<vmem>> -> memref<256xf32, #tpu.memory_space<vmem>>
      %32 = tpu.memref_slice %arg5[%c0_i32_16] : memref<2x!tpu.dma_semaphore, #tpu.memory_space<semaphore_mem>> -> memref<1x!tpu.dma_semaphore, #tpu.memory_space<semaphore_mem>>
      %33 = tpu.memref_squeeze %32 : memref<1x!tpu.dma_semaphore, #tpu.memory_space<semaphore_mem>> -> memref<!tpu.dma_semaphore, #tpu.memory_space<semaphore_mem>>
      tpu.enqueue_dma source(%29 : memref<256xf32, #tpu.memory_space<any>>) target(%31 : memref<256xf32, #tpu.memory_space<vmem>>) target_semaphore(%33 : memref<!tpu.dma_semaphore, #tpu.memory_space<semaphore_mem>>)
      %c1 = arith.constant 1 : index
      %34 = memref.load %arg1[%c1] : memref<128xi32, #tpu.memory_space<smem>>
      %c0_i32_19 = arith.constant 0 : i32
      %c1_i32_20 = arith.constant 1 : i32
      %c0_i32_21 = arith.constant 0 : i32
      %c0_i32_22 = arith.constant 0 : i32
      %35 = tpu.memref_slice %arg2[%34, %c0_i32_22] : memref<512x256xf32, #tpu.memory_space<any>> -> memref<1x256xf32, #tpu.memory_space<any>>
      %36 = tpu.memref_squeeze %35 : memref<1x256xf32, #tpu.memory_space<any>> -> memref<256xf32, #tpu.memory_space<any>>
      %c0_i32_23 = arith.constant 0 : i32
      %37 = tpu.memref_slice %arg4[%c0_i32_19, %c1_i32_20, %c0_i32_23] : memref<2x32x256xf32, #tpu.memory_space<vmem>> -> memref<1x1x256xf32, #tpu.memory_space<vmem>>
      %38 = tpu.memref_squeeze %37 : memref<1x1x256xf32, #tpu.memory_space<vmem>> -> memref<256xf32, #tpu.memory_space<vmem>>
      %39 = tpu.memref_slice %arg5[%c0_i32_21] : memref<2x!tpu.dma_semaphore, #tpu.memory_space<semaphore_mem>> -> memref<1x!tpu.dma_semaphore, #tpu.memory_space<semaphore_mem>>
      %40 = tpu.memref_squeeze %39 : memref<1x!tpu.dma_semaphore, #tpu.memory_space<semaphore_mem>> -> memref<!tpu.dma_semaphore, #tpu.memory_space<semaphore_mem>>
      tpu.enqueue_dma source(%36 : memref<256xf32, #tpu.memory_space<any>>) target(%38 : memref<256xf32, #tpu.memory_space<vmem>>) target_semaphore(%40 : memref<!tpu.dma_semaphore, #tpu.memory_space<semaphore_mem>>)
      %c2 = arith.constant 2 : index
      %41 = memref.load %arg1[%c2] : memref<128xi32, #tpu.memory_space<smem>>
      %c0_i32_24 = arith.constant 0 : i32
      %c2_i32 = arith.constant 2 : i32
      %c0_i32_25 = arith.constant 0 : i32
      %c0_i32_26 = arith.constant 0 : i32
      %42 = tpu.memref_slice %arg2[%41, %c0_i32_26] : memref<512x256xf32, #tpu.memory_space<any>> -> memref<1x256xf32, #tpu.memory_space<any>>
      %43 = tpu.memref_squeeze %42 : memref<1x256xf32, #tpu.memory_space<any>> -> memref<256xf32, #tpu.memory_space<any>>
      %c0_i32_27 = arith.constant 0 : i32
      %44 = tpu.memref_slice %arg4[%c0_i32_24, %c2_i32, %c0_i32_27] : memref<2x32x256xf32, #tpu.memory_space<vmem>> -> memref<1x1x256xf32, #tpu.memory_space<vmem>>
      %45 = tpu.memref_squeeze %44 : memref<1x1x256xf32, #tpu.memory_space<vmem>> -> memref<256xf32, #tpu.memory_space<vmem>>
      %46 = tpu.memref_slice %arg5[%c0_i32_25] : memref<2x!tpu.dma_semaphore, #tpu.memory_space<semaphore_mem>> -> memref<1x!tpu.dma_semaphore, #tpu.memory_space<semaphore_mem>>
      %47 = tpu.memref_squeeze %46 : memref<1x!tpu.dma_semaphore, #tpu.memory_space<semaphore_mem>> -> memref<!tpu.dma_semaphore, #tpu.memory_space<semaphore_mem>>
      tpu.enqueue_dma source(%43 : memref<256xf32, #tpu.memory_space<any>>) target(%45 : memref<256xf32, #tpu.memory_space<vmem>>) target_semaphore(%47 : memref<!tpu.dma_semaphore, #tpu.memory_space<semaphore_mem>>)
      %c3 = arith.constant 3 : index
      %48 = memref.load %arg1[%c3] : memref<128xi32, #tpu.memory_space<smem>>
      %c0_i32_28 = arith.constant 0 : i32
      %c3_i32_29 = arith.constant 3 : i32
      %c0_i32_30 = arith.constant 0 : i32
      %c0_i32_31 = arith.constant 0 : i32
      %49 = tpu.memref_slice %arg2[%48, %c0_i32_31] : memref<512x256xf32, #tpu.memory_space<any>> -> memref<1x256xf32, #tpu.memory_space<any>>
      %50 = tpu.memref_squeeze %49 : memref<1x256xf32, #tpu.memory_space<any>> -> memref<256xf32, #tpu.memory_space<any>>
      %c0_i32_32 = arith.constant 0 : i32
      %51 = tpu.memref_slice %arg4[%c0_i32_28, %c3_i32_29, %c0_i32_32] : memref<2x32x256xf32, #tpu.memory_space<vmem>> -> memref<1x1x256xf32, #tpu.memory_space<vmem>>
      %52 = tpu.memref_squeeze %51 : memref<1x1x256xf32, #tpu.memory_space<vmem>> -> memref<256xf32, #tpu.memory_space<vmem>>
      %53 = tpu.memref_slice %arg5[%c0_i32_30] : memref<2x!tpu.dma_semaphore, #tpu.memory_space<semaphore_mem>> -> memref<1x!tpu.dma_semaphore, #tpu.memory_space<semaphore_mem>>
      %54 = tpu.memref_squeeze %53 : memref<1x!tpu.dma_semaphore, #tpu.memory_space<semaphore_mem>> -> memref<!tpu.dma_semaphore, #tpu.memory_space<semaphore_mem>>
      tpu.enqueue_dma source(%50 : memref<256xf32, #tpu.memory_space<any>>) target(%52 : memref<256xf32, #tpu.memory_space<vmem>>) target_semaphore(%54 : memref<!tpu.dma_semaphore, #tpu.memory_space<semaphore_mem>>)
      %c4 = arith.constant 4 : index
      %55 = memref.load %arg1[%c4] : memref<128xi32, #tpu.memory_space<smem>>
      %c0_i32_33 = arith.constant 0 : i32
      %c4_i32_34 = arith.constant 4 : i32
      %c0_i32_35 = arith.constant 0 : i32
      %c0_i32_36 = arith.constant 0 : i32
      %56 = tpu.memref_slice %arg2[%55, %c0_i32_36] : memref<512x256xf32, #tpu.memory_space<any>> -> memref<1x256xf32, #tpu.memory_space<any>>
      %57 = tpu.memref_squeeze %56 : memref<1x256xf32, #tpu.memory_space<any>> -> memref<256xf32, #tpu.memory_space<any>>
      %c0_i32_37 = arith.constant 0 : i32
      %58 = tpu.memref_slice %arg4[%c0_i32_33, %c4_i32_34, %c0_i32_37] : memref<2x32x256xf32, #tpu.memory_space<vmem>> -> memref<1x1x256xf32, #tpu.memory_space<vmem>>
      %59 = tpu.memref_squeeze %58 : memref<1x1x256xf32, #tpu.memory_space<vmem>> -> memref<256xf32, #tpu.memory_space<vmem>>
      %60 = tpu.memref_slice %arg5[%c0_i32_35] : memref<2x!tpu.dma_semaphore, #tpu.memory_space<semaphore_mem>> -> memref<1x!tpu.dma_semaphore, #tpu.memory_space<semaphore_mem>>
      %61 = tpu.memref_squeeze %60 : memref<1x!tpu.dma_semaphore, #tpu.memory_space<semaphore_mem>> -> memref<!tpu.dma_semaphore, #tpu.memory_space<semaphore_mem>>
      tpu.enqueue_dma source(%57 : memref<256xf32, #tpu.memory_space<any>>) target(%59 : memref<256xf32, #tpu.memory_space<vmem>>) target_semaphore(%61 : memref<!tpu.dma_semaphore, #tpu.memory_space<semaphore_mem>>)
      %c5 = arith.constant 5 : index
      %62 = memref.load %arg1[%c5] : memref<128xi32, #tpu.memory_space<smem>>
      %c0_i32_38 = arith.constant 0 : i32
      %c5_i32 = arith.constant 5 : i32
      %c0_i32_39 = arith.constant 0 : i32
      %c0_i32_40 = arith.constant 0 : i32
      %63 = tpu.memref_slice %arg2[%62, %c0_i32_40] : memref<512x256xf32, #tpu.memory_space<any>> -> memref<1x256xf32, #tpu.memory_space<any>>
      %64 = tpu.memref_squeeze %63 : memref<1x256xf32, #tpu.memory_space<any>> -> memref<256xf32, #tpu.memory_space<any>>
      %c0_i32_41 = arith.constant 0 : i32
      %65 = tpu.memref_slice %arg4[%c0_i32_38, %c5_i32, %c0_i32_41] : memref<2x32x256xf32, #tpu.memory_space<vmem>> -> memref<1x1x256xf32, #tpu.memory_space<vmem>>
      %66 = tpu.memref_squeeze %65 : memref<1x1x256xf32, #tpu.memory_space<vmem>> -> memref<256xf32, #tpu.memory_space<vmem>>
      %67 = tpu.memref_slice %arg5[%c0_i32_39] : memref<2x!tpu.dma_semaphore, #tpu.memory_space<semaphore_mem>> -> memref<1x!tpu.dma_semaphore, #tpu.memory_space<semaphore_mem>>
      %68 = tpu.memref_squeeze %67 : memref<1x!tpu.dma_semaphore, #tpu.memory_space<semaphore_mem>> -> memref<!tpu.dma_semaphore, #tpu.memory_space<semaphore_mem>>
      tpu.enqueue_dma source(%64 : memref<256xf32, #tpu.memory_space<any>>) target(%66 : memref<256xf32, #tpu.memory_space<vmem>>) target_semaphore(%68 : memref<!tpu.dma_semaphore, #tpu.memory_space<semaphore_mem>>)
      %c6 = arith.constant 6 : index
      %69 = memref.load %arg1[%c6] : memref<128xi32, #tpu.memory_space<smem>>
      %c0_i32_42 = arith.constant 0 : i32
      %c6_i32 = arith.constant 6 : i32
      %c0_i32_43 = arith.constant 0 : i32
      %c0_i32_44 = arith.constant 0 : i32
      %70 = tpu.memref_slice %arg2[%69, %c0_i32_44] : memref<512x256xf32, #tpu.memory_space<any>> -> memref<1x256xf32, #tpu.memory_space<any>>
      %71 = tpu.memref_squeeze %70 : memref<1x256xf32, #tpu.memory_space<any>> -> memref<256xf32, #tpu.memory_space<any>>
      %c0_i32_45 = arith.constant 0 : i32
      %72 = tpu.memref_slice %arg4[%c0_i32_42, %c6_i32, %c0_i32_45] : memref<2x32x256xf32, #tpu.memory_space<vmem>> -> memref<1x1x256xf32, #tpu.memory_space<vmem>>
      %73 = tpu.memref_squeeze %72 : memref<1x1x256xf32, #tpu.memory_space<vmem>> -> memref<256xf32, #tpu.memory_space<vmem>>
      %74 = tpu.memref_slice %arg5[%c0_i32_43] : memref<2x!tpu.dma_semaphore, #tpu.memory_space<semaphore_mem>> -> memref<1x!tpu.dma_semaphore, #tpu.memory_space<semaphore_mem>>
      %75 = tpu.memref_squeeze %74 : memref<1x!tpu.dma_semaphore, #tpu.memory_space<semaphore_mem>> -> memref<!tpu.dma_semaphore, #tpu.memory_space<semaphore_mem>>
      tpu.enqueue_dma source(%71 : memref<256xf32, #tpu.memory_space<any>>) target(%73 : memref<256xf32, #tpu.memory_space<vmem>>) target_semaphore(%75 : memref<!tpu.dma_semaphore, #tpu.memory_space<semaphore_mem>>)
      %c7 = arith.constant 7 : index
      %76 = memref.load %arg1[%c7] : memref<128xi32, #tpu.memory_space<smem>>
      %c0_i32_46 = arith.constant 0 : i32
      %c7_i32 = arith.constant 7 : i32
      %c0_i32_47 = arith.constant 0 : i32
      %c0_i32_48 = arith.constant 0 : i32
      %77 = tpu.memref_slice %arg2[%76, %c0_i32_48] : memref<512x256xf32, #tpu.memory_space<any>> -> memref<1x256xf32, #tpu.memory_space<any>>
      %78 = tpu.memref_squeeze %77 : memref<1x256xf32, #tpu.memory_space<any>> -> memref<256xf32, #tpu.memory_space<any>>
      %c0_i32_49 = arith.constant 0 : i32
      %79 = tpu.memref_slice %arg4[%c0_i32_46, %c7_i32, %c0_i32_49] : memref<2x32x256xf32, #tpu.memory_space<vmem>> -> memref<1x1x256xf32, #tpu.memory_space<vmem>>
      %80 = tpu.memref_squeeze %79 : memref<1x1x256xf32, #tpu.memory_space<vmem>> -> memref<256xf32, #tpu.memory_space<vmem>>
      %81 = tpu.memref_slice %arg5[%c0_i32_47] : memref<2x!tpu.dma_semaphore, #tpu.memory_space<semaphore_mem>> -> memref<1x!tpu.dma_semaphore, #tpu.memory_space<semaphore_mem>>
      %82 = tpu.memref_squeeze %81 : memref<1x!tpu.dma_semaphore, #tpu.memory_space<semaphore_mem>> -> memref<!tpu.dma_semaphore, #tpu.memory_space<semaphore_mem>>
      tpu.enqueue_dma source(%78 : memref<256xf32, #tpu.memory_space<any>>) target(%80 : memref<256xf32, #tpu.memory_space<vmem>>) target_semaphore(%82 : memref<!tpu.dma_semaphore, #tpu.memory_space<semaphore_mem>>)
      %c8 = arith.constant 8 : index
      %83 = memref.load %arg1[%c8] : memref<128xi32, #tpu.memory_space<smem>>
      %c0_i32_50 = arith.constant 0 : i32
      %c8_i32 = arith.constant 8 : i32
      %c0_i32_51 = arith.constant 0 : i32
      %c0_i32_52 = arith.constant 0 : i32
      %84 = tpu.memref_slice %arg2[%83, %c0_i32_52] : memref<512x256xf32, #tpu.memory_space<any>> -> memref<1x256xf32, #tpu.memory_space<any>>
      %85 = tpu.memref_squeeze %84 : memref<1x256xf32, #tpu.memory_space<any>> -> memref<256xf32, #tpu.memory_space<any>>
      %c0_i32_53 = arith.constant 0 : i32
      %86 = tpu.memref_slice %arg4[%c0_i32_50, %c8_i32, %c0_i32_53] : memref<2x32x256xf32, #tpu.memory_space<vmem>> -> memref<1x1x256xf32, #tpu.memory_space<vmem>>
      %87 = tpu.memref_squeeze %86 : memref<1x1x256xf32, #tpu.memory_space<vmem>> -> memref<256xf32, #tpu.memory_space<vmem>>
      %88 = tpu.memref_slice %arg5[%c0_i32_51] : memref<2x!tpu.dma_semaphore, #tpu.memory_space<semaphore_mem>> -> memref<1x!tpu.dma_semaphore, #tpu.memory_space<semaphore_mem>>
      %89 = tpu.memref_squeeze %88 : memref<1x!tpu.dma_semaphore, #tpu.memory_space<semaphore_mem>> -> memref<!tpu.dma_semaphore, #tpu.memory_space<semaphore_mem>>
      tpu.enqueue_dma source(%85 : memref<256xf32, #tpu.memory_space<any>>) target(%87 : memref<256xf32, #tpu.memory_space<vmem>>) target_semaphore(%89 : memref<!tpu.dma_semaphore, #tpu.memory_space<semaphore_mem>>)
      %c9 = arith.constant 9 : index
      %90 = memref.load %arg1[%c9] : memref<128xi32, #tpu.memory_space<smem>>
      %c0_i32_54 = arith.constant 0 : i32
      %c9_i32 = arith.constant 9 : i32
      %c0_i32_55 = arith.constant 0 : i32
      %c0_i32_56 = arith.constant 0 : i32
      %91 = tpu.memref_slice %arg2[%90, %c0_i32_56] : memref<512x256xf32, #tpu.memory_space<any>> -> memref<1x256xf32, #tpu.memory_space<any>>
      %92 = tpu.memref_squeeze %91 : memref<1x256xf32, #tpu.memory_space<any>> -> memref<256xf32, #tpu.memory_space<any>>
      %c0_i32_57 = arith.constant 0 : i32
      %93 = tpu.memref_slice %arg4[%c0_i32_54, %c9_i32, %c0_i32_57] : memref<2x32x256xf32, #tpu.memory_space<vmem>> -> memref<1x1x256xf32, #tpu.memory_space<vmem>>
      %94 = tpu.memref_squeeze %93 : memref<1x1x256xf32, #tpu.memory_space<vmem>> -> memref<256xf32, #tpu.memory_space<vmem>>
      %95 = tpu.memref_slice %arg5[%c0_i32_55] : memref<2x!tpu.dma_semaphore, #tpu.memory_space<semaphore_mem>> -> memref<1x!tpu.dma_semaphore, #tpu.memory_space<semaphore_mem>>
      %96 = tpu.memref_squeeze %95 : memref<1x!tpu.dma_semaphore, #tpu.memory_space<semaphore_mem>> -> memref<!tpu.dma_semaphore, #tpu.memory_space<semaphore_mem>>
      tpu.enqueue_dma source(%92 : memref<256xf32, #tpu.memory_space<any>>) target(%94 : memref<256xf32, #tpu.memory_space<vmem>>) target_semaphore(%96 : memref<!tpu.dma_semaphore, #tpu.memory_space<semaphore_mem>>)
      %c10 = arith.constant 10 : index
      %97 = memref.load %arg1[%c10] : memref<128xi32, #tpu.memory_space<smem>>
      %c0_i32_58 = arith.constant 0 : i32
      %c10_i32 = arith.constant 10 : i32
      %c0_i32_59 = arith.constant 0 : i32
      %c0_i32_60 = arith.constant 0 : i32
      %98 = tpu.memref_slice %arg2[%97, %c0_i32_60] : memref<512x256xf32, #tpu.memory_space<any>> -> memref<1x256xf32, #tpu.memory_space<any>>
      %99 = tpu.memref_squeeze %98 : memref<1x256xf32, #tpu.memory_space<any>> -> memref<256xf32, #tpu.memory_space<any>>
      %c0_i32_61 = arith.constant 0 : i32
      %100 = tpu.memref_slice %arg4[%c0_i32_58, %c10_i32, %c0_i32_61] : memref<2x32x256xf32, #tpu.memory_space<vmem>> -> memref<1x1x256xf32, #tpu.memory_space<vmem>>
      %101 = tpu.memref_squeeze %100 : memref<1x1x256xf32, #tpu.memory_space<vmem>> -> memref<256xf32, #tpu.memory_space<vmem>>
      %102 = tpu.memref_slice %arg5[%c0_i32_59] : memref<2x!tpu.dma_semaphore, #tpu.memory_space<semaphore_mem>> -> memref<1x!tpu.dma_semaphore, #tpu.memory_space<semaphore_mem>>
      %103 = tpu.memref_squeeze %102 : memref<1x!tpu.dma_semaphore, #tpu.memory_space<semaphore_mem>> -> memref<!tpu.dma_semaphore, #tpu.memory_space<semaphore_mem>>
      tpu.enqueue_dma source(%99 : memref<256xf32, #tpu.memory_space<any>>) target(%101 : memref<256xf32, #tpu.memory_space<vmem>>) target_semaphore(%103 : memref<!tpu.dma_semaphore, #tpu.memory_space<semaphore_mem>>)
      %c11 = arith.constant 11 : index
      %104 = memref.load %arg1[%c11] : memref<128xi32, #tpu.memory_space<smem>>
      %c0_i32_62 = arith.constant 0 : i32
      %c11_i32 = arith.constant 11 : i32
      %c0_i32_63 = arith.constant 0 : i32
      %c0_i32_64 = arith.constant 0 : i32
      %105 = tpu.memref_slice %arg2[%104, %c0_i32_64] : memref<512x256xf32, #tpu.memory_space<any>> -> memref<1x256xf32, #tpu.memory_space<any>>
      %106 = tpu.memref_squeeze %105 : memref<1x256xf32, #tpu.memory_space<any>> -> memref<256xf32, #tpu.memory_space<any>>
      %c0_i32_65 = arith.constant 0 : i32
      %107 = tpu.memref_slice %arg4[%c0_i32_62, %c11_i32, %c0_i32_65] : memref<2x32x256xf32, #tpu.memory_space<vmem>> -> memref<1x1x256xf32, #tpu.memory_space<vmem>>
      %108 = tpu.memref_squeeze %107 : memref<1x1x256xf32, #tpu.memory_space<vmem>> -> memref<256xf32, #tpu.memory_space<vmem>>
      %109 = tpu.memref_slice %arg5[%c0_i32_63] : memref<2x!tpu.dma_semaphore, #tpu.memory_space<semaphore_mem>> -> memref<1x!tpu.dma_semaphore, #tpu.memory_space<semaphore_mem>>
      %110 = tpu.memref_squeeze %109 : memref<1x!tpu.dma_semaphore, #tpu.memory_space<semaphore_mem>> -> memref<!tpu.dma_semaphore, #tpu.memory_space<semaphore_mem>>
      tpu.enqueue_dma source(%106 : memref<256xf32, #tpu.memory_space<any>>) target(%108 : memref<256xf32, #tpu.memory_space<vmem>>) target_semaphore(%110 : memref<!tpu.dma_semaphore, #tpu.memory_space<semaphore_mem>>)
      %c12 = arith.constant 12 : index
      %111 = memref.load %arg1[%c12] : memref<128xi32, #tpu.memory_space<smem>>
      %c0_i32_66 = arith.constant 0 : i32
      %c12_i32 = arith.constant 12 : i32
      %c0_i32_67 = arith.constant 0 : i32
      %c0_i32_68 = arith.constant 0 : i32
      %112 = tpu.memref_slice %arg2[%111, %c0_i32_68] : memref<512x256xf32, #tpu.memory_space<any>> -> memref<1x256xf32, #tpu.memory_space<any>>
      %113 = tpu.memref_squeeze %112 : memref<1x256xf32, #tpu.memory_space<any>> -> memref<256xf32, #tpu.memory_space<any>>
      %c0_i32_69 = arith.constant 0 : i32
      %114 = tpu.memref_slice %arg4[%c0_i32_66, %c12_i32, %c0_i32_69] : memref<2x32x256xf32, #tpu.memory_space<vmem>> -> memref<1x1x256xf32, #tpu.memory_space<vmem>>
      %115 = tpu.memref_squeeze %114 : memref<1x1x256xf32, #tpu.memory_space<vmem>> -> memref<256xf32, #tpu.memory_space<vmem>>
      %116 = tpu.memref_slice %arg5[%c0_i32_67] : memref<2x!tpu.dma_semaphore, #tpu.memory_space<semaphore_mem>> -> memref<1x!tpu.dma_semaphore, #tpu.memory_space<semaphore_mem>>
      %117 = tpu.memref_squeeze %116 : memref<1x!tpu.dma_semaphore, #tpu.memory_space<semaphore_mem>> -> memref<!tpu.dma_semaphore, #tpu.memory_space<semaphore_mem>>
      tpu.enqueue_dma source(%113 : memref<256xf32, #tpu.memory_space<any>>) target(%115 : memref<256xf32, #tpu.memory_space<vmem>>) target_semaphore(%117 : memref<!tpu.dma_semaphore, #tpu.memory_space<semaphore_mem>>)
      %c13 = arith.constant 13 : index
      %118 = memref.load %arg1[%c13] : memref<128xi32, #tpu.memory_space<smem>>
      %c0_i32_70 = arith.constant 0 : i32
      %c13_i32 = arith.constant 13 : i32
      %c0_i32_71 = arith.constant 0 : i32
      %c0_i32_72 = arith.constant 0 : i32
      %119 = tpu.memref_slice %arg2[%118, %c0_i32_72] : memref<512x256xf32, #tpu.memory_space<any>> -> memref<1x256xf32, #tpu.memory_space<any>>
      %120 = tpu.memref_squeeze %119 : memref<1x256xf32, #tpu.memory_space<any>> -> memref<256xf32, #tpu.memory_space<any>>
      %c0_i32_73 = arith.constant 0 : i32
      %121 = tpu.memref_slice %arg4[%c0_i32_70, %c13_i32, %c0_i32_73] : memref<2x32x256xf32, #tpu.memory_space<vmem>> -> memref<1x1x256xf32, #tpu.memory_space<vmem>>
      %122 = tpu.memref_squeeze %121 : memref<1x1x256xf32, #tpu.memory_space<vmem>> -> memref<256xf32, #tpu.memory_space<vmem>>
      %123 = tpu.memref_slice %arg5[%c0_i32_71] : memref<2x!tpu.dma_semaphore, #tpu.memory_space<semaphore_mem>> -> memref<1x!tpu.dma_semaphore, #tpu.memory_space<semaphore_mem>>
      %124 = tpu.memref_squeeze %123 : memref<1x!tpu.dma_semaphore, #tpu.memory_space<semaphore_mem>> -> memref<!tpu.dma_semaphore, #tpu.memory_space<semaphore_mem>>
      tpu.enqueue_dma source(%120 : memref<256xf32, #tpu.memory_space<any>>) target(%122 : memref<256xf32, #tpu.memory_space<vmem>>) target_semaphore(%124 : memref<!tpu.dma_semaphore, #tpu.memory_space<semaphore_mem>>)
      %c14 = arith.constant 14 : index
      %125 = memref.load %arg1[%c14] : memref<128xi32, #tpu.memory_space<smem>>
      %c0_i32_74 = arith.constant 0 : i32
      %c14_i32 = arith.constant 14 : i32
      %c0_i32_75 = arith.constant 0 : i32
      %c0_i32_76 = arith.constant 0 : i32
      %126 = tpu.memref_slice %arg2[%125, %c0_i32_76] : memref<512x256xf32, #tpu.memory_space<any>> -> memref<1x256xf32, #tpu.memory_space<any>>
      %127 = tpu.memref_squeeze %126 : memref<1x256xf32, #tpu.memory_space<any>> -> memref<256xf32, #tpu.memory_space<any>>
      %c0_i32_77 = arith.constant 0 : i32
      %128 = tpu.memref_slice %arg4[%c0_i32_74, %c14_i32, %c0_i32_77] : memref<2x32x256xf32, #tpu.memory_space<vmem>> -> memref<1x1x256xf32, #tpu.memory_space<vmem>>
      %129 = tpu.memref_squeeze %128 : memref<1x1x256xf32, #tpu.memory_space<vmem>> -> memref<256xf32, #tpu.memory_space<vmem>>
      %130 = tpu.memref_slice %arg5[%c0_i32_75] : memref<2x!tpu.dma_semaphore, #tpu.memory_space<semaphore_mem>> -> memref<1x!tpu.dma_semaphore, #tpu.memory_space<semaphore_mem>>
      %131 = tpu.memref_squeeze %130 : memref<1x!tpu.dma_semaphore, #tpu.memory_space<semaphore_mem>> -> memref<!tpu.dma_semaphore, #tpu.memory_space<semaphore_mem>>
      tpu.enqueue_dma source(%127 : memref<256xf32, #tpu.memory_space<any>>) target(%129 : memref<256xf32, #tpu.memory_space<vmem>>) target_semaphore(%131 : memref<!tpu.dma_semaphore, #tpu.memory_space<semaphore_mem>>)
      %c15 = arith.constant 15 : index
      %132 = memref.load %arg1[%c15] : memref<128xi32, #tpu.memory_space<smem>>
      %c0_i32_78 = arith.constant 0 : i32
      %c15_i32 = arith.constant 15 : i32
      %c0_i32_79 = arith.constant 0 : i32
      %c0_i32_80 = arith.constant 0 : i32
      %133 = tpu.memref_slice %arg2[%132, %c0_i32_80] : memref<512x256xf32, #tpu.memory_space<any>> -> memref<1x256xf32, #tpu.memory_space<any>>
      %134 = tpu.memref_squeeze %133 : memref<1x256xf32, #tpu.memory_space<any>> -> memref<256xf32, #tpu.memory_space<any>>
      %c0_i32_81 = arith.constant 0 : i32
      %135 = tpu.memref_slice %arg4[%c0_i32_78, %c15_i32, %c0_i32_81] : memref<2x32x256xf32, #tpu.memory_space<vmem>> -> memref<1x1x256xf32, #tpu.memory_space<vmem>>
      %136 = tpu.memref_squeeze %135 : memref<1x1x256xf32, #tpu.memory_space<vmem>> -> memref<256xf32, #tpu.memory_space<vmem>>
      %137 = tpu.memref_slice %arg5[%c0_i32_79] : memref<2x!tpu.dma_semaphore, #tpu.memory_space<semaphore_mem>> -> memref<1x!tpu.dma_semaphore, #tpu.memory_space<semaphore_mem>>
      %138 = tpu.memref_squeeze %137 : memref<1x!tpu.dma_semaphore, #tpu.memory_space<semaphore_mem>> -> memref<!tpu.dma_semaphore, #tpu.memory_space<semaphore_mem>>
      tpu.enqueue_dma source(%134 : memref<256xf32, #tpu.memory_space<any>>) target(%136 : memref<256xf32, #tpu.memory_space<vmem>>) target_semaphore(%138 : memref<!tpu.dma_semaphore, #tpu.memory_space<semaphore_mem>>)
      %c16 = arith.constant 16 : index
      %139 = memref.load %arg1[%c16] : memref<128xi32, #tpu.memory_space<smem>>
      %c0_i32_82 = arith.constant 0 : i32
      %c16_i32 = arith.constant 16 : i32
      %c0_i32_83 = arith.constant 0 : i32
      %c0_i32_84 = arith.constant 0 : i32
      %140 = tpu.memref_slice %arg2[%139, %c0_i32_84] : memref<512x256xf32, #tpu.memory_space<any>> -> memref<1x256xf32, #tpu.memory_space<any>>
      %141 = tpu.memref_squeeze %140 : memref<1x256xf32, #tpu.memory_space<any>> -> memref<256xf32, #tpu.memory_space<any>>
      %c0_i32_85 = arith.constant 0 : i32
      %142 = tpu.memref_slice %arg4[%c0_i32_82, %c16_i32, %c0_i32_85] : memref<2x32x256xf32, #tpu.memory_space<vmem>> -> memref<1x1x256xf32, #tpu.memory_space<vmem>>
      %143 = tpu.memref_squeeze %142 : memref<1x1x256xf32, #tpu.memory_space<vmem>> -> memref<256xf32, #tpu.memory_space<vmem>>
      %144 = tpu.memref_slice %arg5[%c0_i32_83] : memref<2x!tpu.dma_semaphore, #tpu.memory_space<semaphore_mem>> -> memref<1x!tpu.dma_semaphore, #tpu.memory_space<semaphore_mem>>
      %145 = tpu.memref_squeeze %144 : memref<1x!tpu.dma_semaphore, #tpu.memory_space<semaphore_mem>> -> memref<!tpu.dma_semaphore, #tpu.memory_space<semaphore_mem>>
      tpu.enqueue_dma source(%141 : memref<256xf32, #tpu.memory_space<any>>) target(%143 : memref<256xf32, #tpu.memory_space<vmem>>) target_semaphore(%145 : memref<!tpu.dma_semaphore, #tpu.memory_space<semaphore_mem>>)
      %c17 = arith.constant 17 : index
      %146 = memref.load %arg1[%c17] : memref<128xi32, #tpu.memory_space<smem>>
      %c0_i32_86 = arith.constant 0 : i32
      %c17_i32 = arith.constant 17 : i32
      %c0_i32_87 = arith.constant 0 : i32
      %c0_i32_88 = arith.constant 0 : i32
      %147 = tpu.memref_slice %arg2[%146, %c0_i32_88] : memref<512x256xf32, #tpu.memory_space<any>> -> memref<1x256xf32, #tpu.memory_space<any>>
      %148 = tpu.memref_squeeze %147 : memref<1x256xf32, #tpu.memory_space<any>> -> memref<256xf32, #tpu.memory_space<any>>
      %c0_i32_89 = arith.constant 0 : i32
      %149 = tpu.memref_slice %arg4[%c0_i32_86, %c17_i32, %c0_i32_89] : memref<2x32x256xf32, #tpu.memory_space<vmem>> -> memref<1x1x256xf32, #tpu.memory_space<vmem>>
      %150 = tpu.memref_squeeze %149 : memref<1x1x256xf32, #tpu.memory_space<vmem>> -> memref<256xf32, #tpu.memory_space<vmem>>
      %151 = tpu.memref_slice %arg5[%c0_i32_87] : memref<2x!tpu.dma_semaphore, #tpu.memory_space<semaphore_mem>> -> memref<1x!tpu.dma_semaphore, #tpu.memory_space<semaphore_mem>>
      %152 = tpu.memref_squeeze %151 : memref<1x!tpu.dma_semaphore, #tpu.memory_space<semaphore_mem>> -> memref<!tpu.dma_semaphore, #tpu.memory_space<semaphore_mem>>
      tpu.enqueue_dma source(%148 : memref<256xf32, #tpu.memory_space<any>>) target(%150 : memref<256xf32, #tpu.memory_space<vmem>>) target_semaphore(%152 : memref<!tpu.dma_semaphore, #tpu.memory_space<semaphore_mem>>)
      %c18 = arith.constant 18 : index
      %153 = memref.load %arg1[%c18] : memref<128xi32, #tpu.memory_space<smem>>
      %c0_i32_90 = arith.constant 0 : i32
      %c18_i32 = arith.constant 18 : i32
      %c0_i32_91 = arith.constant 0 : i32
      %c0_i32_92 = arith.constant 0 : i32
      %154 = tpu.memref_slice %arg2[%153, %c0_i32_92] : memref<512x256xf32, #tpu.memory_space<any>> -> memref<1x256xf32, #tpu.memory_space<any>>
      %155 = tpu.memref_squeeze %154 : memref<1x256xf32, #tpu.memory_space<any>> -> memref<256xf32, #tpu.memory_space<any>>
      %c0_i32_93 = arith.constant 0 : i32
      %156 = tpu.memref_slice %arg4[%c0_i32_90, %c18_i32, %c0_i32_93] : memref<2x32x256xf32, #tpu.memory_space<vmem>> -> memref<1x1x256xf32, #tpu.memory_space<vmem>>
      %157 = tpu.memref_squeeze %156 : memref<1x1x256xf32, #tpu.memory_space<vmem>> -> memref<256xf32, #tpu.memory_space<vmem>>
      %158 = tpu.memref_slice %arg5[%c0_i32_91] : memref<2x!tpu.dma_semaphore, #tpu.memory_space<semaphore_mem>> -> memref<1x!tpu.dma_semaphore, #tpu.memory_space<semaphore_mem>>
      %159 = tpu.memref_squeeze %158 : memref<1x!tpu.dma_semaphore, #tpu.memory_space<semaphore_mem>> -> memref<!tpu.dma_semaphore, #tpu.memory_space<semaphore_mem>>
      tpu.enqueue_dma source(%155 : memref<256xf32, #tpu.memory_space<any>>) target(%157 : memref<256xf32, #tpu.memory_space<vmem>>) target_semaphore(%159 : memref<!tpu.dma_semaphore, #tpu.memory_space<semaphore_mem>>)
      %c19 = arith.constant 19 : index
      %160 = memref.load %arg1[%c19] : memref<128xi32, #tpu.memory_space<smem>>
      %c0_i32_94 = arith.constant 0 : i32
      %c19_i32 = arith.constant 19 : i32
      %c0_i32_95 = arith.constant 0 : i32
      %c0_i32_96 = arith.constant 0 : i32
      %161 = tpu.memref_slice %arg2[%160, %c0_i32_96] : memref<512x256xf32, #tpu.memory_space<any>> -> memref<1x256xf32, #tpu.memory_space<any>>
      %162 = tpu.memref_squeeze %161 : memref<1x256xf32, #tpu.memory_space<any>> -> memref<256xf32, #tpu.memory_space<any>>
      %c0_i32_97 = arith.constant 0 : i32
      %163 = tpu.memref_slice %arg4[%c0_i32_94, %c19_i32, %c0_i32_97] : memref<2x32x256xf32, #tpu.memory_space<vmem>> -> memref<1x1x256xf32, #tpu.memory_space<vmem>>
      %164 = tpu.memref_squeeze %163 : memref<1x1x256xf32, #tpu.memory_space<vmem>> -> memref<256xf32, #tpu.memory_space<vmem>>
      %165 = tpu.memref_slice %arg5[%c0_i32_95] : memref<2x!tpu.dma_semaphore, #tpu.memory_space<semaphore_mem>> -> memref<1x!tpu.dma_semaphore, #tpu.memory_space<semaphore_mem>>
      %166 = tpu.memref_squeeze %165 : memref<1x!tpu.dma_semaphore, #tpu.memory_space<semaphore_mem>> -> memref<!tpu.dma_semaphore, #tpu.memory_space<semaphore_mem>>
      tpu.enqueue_dma source(%162 : memref<256xf32, #tpu.memory_space<any>>) target(%164 : memref<256xf32, #tpu.memory_space<vmem>>) target_semaphore(%166 : memref<!tpu.dma_semaphore, #tpu.memory_space<semaphore_mem>>)
      %c20 = arith.constant 20 : index
      %167 = memref.load %arg1[%c20] : memref<128xi32, #tpu.memory_space<smem>>
      %c0_i32_98 = arith.constant 0 : i32
      %c20_i32 = arith.constant 20 : i32
      %c0_i32_99 = arith.constant 0 : i32
      %c0_i32_100 = arith.constant 0 : i32
      %168 = tpu.memref_slice %arg2[%167, %c0_i32_100] : memref<512x256xf32, #tpu.memory_space<any>> -> memref<1x256xf32, #tpu.memory_space<any>>
      %169 = tpu.memref_squeeze %168 : memref<1x256xf32, #tpu.memory_space<any>> -> memref<256xf32, #tpu.memory_space<any>>
      %c0_i32_101 = arith.constant 0 : i32
      %170 = tpu.memref_slice %arg4[%c0_i32_98, %c20_i32, %c0_i32_101] : memref<2x32x256xf32, #tpu.memory_space<vmem>> -> memref<1x1x256xf32, #tpu.memory_space<vmem>>
      %171 = tpu.memref_squeeze %170 : memref<1x1x256xf32, #tpu.memory_space<vmem>> -> memref<256xf32, #tpu.memory_space<vmem>>
      %172 = tpu.memref_slice %arg5[%c0_i32_99] : memref<2x!tpu.dma_semaphore, #tpu.memory_space<semaphore_mem>> -> memref<1x!tpu.dma_semaphore, #tpu.memory_space<semaphore_mem>>
      %173 = tpu.memref_squeeze %172 : memref<1x!tpu.dma_semaphore, #tpu.memory_space<semaphore_mem>> -> memref<!tpu.dma_semaphore, #tpu.memory_space<semaphore_mem>>
      tpu.enqueue_dma source(%169 : memref<256xf32, #tpu.memory_space<any>>) target(%171 : memref<256xf32, #tpu.memory_space<vmem>>) target_semaphore(%173 : memref<!tpu.dma_semaphore, #tpu.memory_space<semaphore_mem>>)
      %c21 = arith.constant 21 : index
      %174 = memref.load %arg1[%c21] : memref<128xi32, #tpu.memory_space<smem>>
      %c0_i32_102 = arith.constant 0 : i32
      %c21_i32 = arith.constant 21 : i32
      %c0_i32_103 = arith.constant 0 : i32
      %c0_i32_104 = arith.constant 0 : i32
      %175 = tpu.memref_slice %arg2[%174, %c0_i32_104] : memref<512x256xf32, #tpu.memory_space<any>> -> memref<1x256xf32, #tpu.memory_space<any>>
      %176 = tpu.memref_squeeze %175 : memref<1x256xf32, #tpu.memory_space<any>> -> memref<256xf32, #tpu.memory_space<any>>
      %c0_i32_105 = arith.constant 0 : i32
      %177 = tpu.memref_slice %arg4[%c0_i32_102, %c21_i32, %c0_i32_105] : memref<2x32x256xf32, #tpu.memory_space<vmem>> -> memref<1x1x256xf32, #tpu.memory_space<vmem>>
      %178 = tpu.memref_squeeze %177 : memref<1x1x256xf32, #tpu.memory_space<vmem>> -> memref<256xf32, #tpu.memory_space<vmem>>
      %179 = tpu.memref_slice %arg5[%c0_i32_103] : memref<2x!tpu.dma_semaphore, #tpu.memory_space<semaphore_mem>> -> memref<1x!tpu.dma_semaphore, #tpu.memory_space<semaphore_mem>>
      %180 = tpu.memref_squeeze %179 : memref<1x!tpu.dma_semaphore, #tpu.memory_space<semaphore_mem>> -> memref<!tpu.dma_semaphore, #tpu.memory_space<semaphore_mem>>
      tpu.enqueue_dma source(%176 : memref<256xf32, #tpu.memory_space<any>>) target(%178 : memref<256xf32, #tpu.memory_space<vmem>>) target_semaphore(%180 : memref<!tpu.dma_semaphore, #tpu.memory_space<semaphore_mem>>)
      %c22 = arith.constant 22 : index
      %181 = memref.load %arg1[%c22] : memref<128xi32, #tpu.memory_space<smem>>
      %c0_i32_106 = arith.constant 0 : i32
      %c22_i32 = arith.constant 22 : i32
      %c0_i32_107 = arith.constant 0 : i32
      %c0_i32_108 = arith.constant 0 : i32
      %182 = tpu.memref_slice %arg2[%181, %c0_i32_108] : memref<512x256xf32, #tpu.memory_space<any>> -> memref<1x256xf32, #tpu.memory_space<any>>
      %183 = tpu.memref_squeeze %182 : memref<1x256xf32, #tpu.memory_space<any>> -> memref<256xf32, #tpu.memory_space<any>>
      %c0_i32_109 = arith.constant 0 : i32
      %184 = tpu.memref_slice %arg4[%c0_i32_106, %c22_i32, %c0_i32_109] : memref<2x32x256xf32, #tpu.memory_space<vmem>> -> memref<1x1x256xf32, #tpu.memory_space<vmem>>
      %185 = tpu.memref_squeeze %184 : memref<1x1x256xf32, #tpu.memory_space<vmem>> -> memref<256xf32, #tpu.memory_space<vmem>>
      %186 = tpu.memref_slice %arg5[%c0_i32_107] : memref<2x!tpu.dma_semaphore, #tpu.memory_space<semaphore_mem>> -> memref<1x!tpu.dma_semaphore, #tpu.memory_space<semaphore_mem>>
      %187 = tpu.memref_squeeze %186 : memref<1x!tpu.dma_semaphore, #tpu.memory_space<semaphore_mem>> -> memref<!tpu.dma_semaphore, #tpu.memory_space<semaphore_mem>>
      tpu.enqueue_dma source(%183 : memref<256xf32, #tpu.memory_space<any>>) target(%185 : memref<256xf32, #tpu.memory_space<vmem>>) target_semaphore(%187 : memref<!tpu.dma_semaphore, #tpu.memory_space<semaphore_mem>>)
      %c23 = arith.constant 23 : index
      %188 = memref.load %arg1[%c23] : memref<128xi32, #tpu.memory_space<smem>>
      %c0_i32_110 = arith.constant 0 : i32
      %c23_i32 = arith.constant 23 : i32
      %c0_i32_111 = arith.constant 0 : i32
      %c0_i32_112 = arith.constant 0 : i32
      %189 = tpu.memref_slice %arg2[%188, %c0_i32_112] : memref<512x256xf32, #tpu.memory_space<any>> -> memref<1x256xf32, #tpu.memory_space<any>>
      %190 = tpu.memref_squeeze %189 : memref<1x256xf32, #tpu.memory_space<any>> -> memref<256xf32, #tpu.memory_space<any>>
      %c0_i32_113 = arith.constant 0 : i32
      %191 = tpu.memref_slice %arg4[%c0_i32_110, %c23_i32, %c0_i32_113] : memref<2x32x256xf32, #tpu.memory_space<vmem>> -> memref<1x1x256xf32, #tpu.memory_space<vmem>>
      %192 = tpu.memref_squeeze %191 : memref<1x1x256xf32, #tpu.memory_space<vmem>> -> memref<256xf32, #tpu.memory_space<vmem>>
      %193 = tpu.memref_slice %arg5[%c0_i32_111] : memref<2x!tpu.dma_semaphore, #tpu.memory_space<semaphore_mem>> -> memref<1x!tpu.dma_semaphore, #tpu.memory_space<semaphore_mem>>
      %194 = tpu.memref_squeeze %193 : memref<1x!tpu.dma_semaphore, #tpu.memory_space<semaphore_mem>> -> memref<!tpu.dma_semaphore, #tpu.memory_space<semaphore_mem>>
      tpu.enqueue_dma source(%190 : memref<256xf32, #tpu.memory_space<any>>) target(%192 : memref<256xf32, #tpu.memory_space<vmem>>) target_semaphore(%194 : memref<!tpu.dma_semaphore, #tpu.memory_space<semaphore_mem>>)
      %c24 = arith.constant 24 : index
      %195 = memref.load %arg1[%c24] : memref<128xi32, #tpu.memory_space<smem>>
      %c0_i32_114 = arith.constant 0 : i32
      %c24_i32 = arith.constant 24 : i32
      %c0_i32_115 = arith.constant 0 : i32
      %c0_i32_116 = arith.constant 0 : i32
      %196 = tpu.memref_slice %arg2[%195, %c0_i32_116] : memref<512x256xf32, #tpu.memory_space<any>> -> memref<1x256xf32, #tpu.memory_space<any>>
      %197 = tpu.memref_squeeze %196 : memref<1x256xf32, #tpu.memory_space<any>> -> memref<256xf32, #tpu.memory_space<any>>
      %c0_i32_117 = arith.constant 0 : i32
      %198 = tpu.memref_slice %arg4[%c0_i32_114, %c24_i32, %c0_i32_117] : memref<2x32x256xf32, #tpu.memory_space<vmem>> -> memref<1x1x256xf32, #tpu.memory_space<vmem>>
      %199 = tpu.memref_squeeze %198 : memref<1x1x256xf32, #tpu.memory_space<vmem>> -> memref<256xf32, #tpu.memory_space<vmem>>
      %200 = tpu.memref_slice %arg5[%c0_i32_115] : memref<2x!tpu.dma_semaphore, #tpu.memory_space<semaphore_mem>> -> memref<1x!tpu.dma_semaphore, #tpu.memory_space<semaphore_mem>>
      %201 = tpu.memref_squeeze %200 : memref<1x!tpu.dma_semaphore, #tpu.memory_space<semaphore_mem>> -> memref<!tpu.dma_semaphore, #tpu.memory_space<semaphore_mem>>
      tpu.enqueue_dma source(%197 : memref<256xf32, #tpu.memory_space<any>>) target(%199 : memref<256xf32, #tpu.memory_space<vmem>>) target_semaphore(%201 : memref<!tpu.dma_semaphore, #tpu.memory_space<semaphore_mem>>)
      %c25 = arith.constant 25 : index
      %202 = memref.load %arg1[%c25] : memref<128xi32, #tpu.memory_space<smem>>
      %c0_i32_118 = arith.constant 0 : i32
      %c25_i32 = arith.constant 25 : i32
      %c0_i32_119 = arith.constant 0 : i32
      %c0_i32_120 = arith.constant 0 : i32
      %203 = tpu.memref_slice %arg2[%202, %c0_i32_120] : memref<512x256xf32, #tpu.memory_space<any>> -> memref<1x256xf32, #tpu.memory_space<any>>
      %204 = tpu.memref_squeeze %203 : memref<1x256xf32, #tpu.memory_space<any>> -> memref<256xf32, #tpu.memory_space<any>>
      %c0_i32_121 = arith.constant 0 : i32
      %205 = tpu.memref_slice %arg4[%c0_i32_118, %c25_i32, %c0_i32_121] : memref<2x32x256xf32, #tpu.memory_space<vmem>> -> memref<1x1x256xf32, #tpu.memory_space<vmem>>
      %206 = tpu.memref_squeeze %205 : memref<1x1x256xf32, #tpu.memory_space<vmem>> -> memref<256xf32, #tpu.memory_space<vmem>>
      %207 = tpu.memref_slice %arg5[%c0_i32_119] : memref<2x!tpu.dma_semaphore, #tpu.memory_space<semaphore_mem>> -> memref<1x!tpu.dma_semaphore, #tpu.memory_space<semaphore_mem>>
      %208 = tpu.memref_squeeze %207 : memref<1x!tpu.dma_semaphore, #tpu.memory_space<semaphore_mem>> -> memref<!tpu.dma_semaphore, #tpu.memory_space<semaphore_mem>>
      tpu.enqueue_dma source(%204 : memref<256xf32, #tpu.memory_space<any>>) target(%206 : memref<256xf32, #tpu.memory_space<vmem>>) target_semaphore(%208 : memref<!tpu.dma_semaphore, #tpu.memory_space<semaphore_mem>>)
      %c26 = arith.constant 26 : index
      %209 = memref.load %arg1[%c26] : memref<128xi32, #tpu.memory_space<smem>>
      %c0_i32_122 = arith.constant 0 : i32
      %c26_i32 = arith.constant 26 : i32
      %c0_i32_123 = arith.constant 0 : i32
      %c0_i32_124 = arith.constant 0 : i32
      %210 = tpu.memref_slice %arg2[%209, %c0_i32_124] : memref<512x256xf32, #tpu.memory_space<any>> -> memref<1x256xf32, #tpu.memory_space<any>>
      %211 = tpu.memref_squeeze %210 : memref<1x256xf32, #tpu.memory_space<any>> -> memref<256xf32, #tpu.memory_space<any>>
      %c0_i32_125 = arith.constant 0 : i32
      %212 = tpu.memref_slice %arg4[%c0_i32_122, %c26_i32, %c0_i32_125] : memref<2x32x256xf32, #tpu.memory_space<vmem>> -> memref<1x1x256xf32, #tpu.memory_space<vmem>>
      %213 = tpu.memref_squeeze %212 : memref<1x1x256xf32, #tpu.memory_space<vmem>> -> memref<256xf32, #tpu.memory_space<vmem>>
      %214 = tpu.memref_slice %arg5[%c0_i32_123] : memref<2x!tpu.dma_semaphore, #tpu.memory_space<semaphore_mem>> -> memref<1x!tpu.dma_semaphore, #tpu.memory_space<semaphore_mem>>
      %215 = tpu.memref_squeeze %214 : memref<1x!tpu.dma_semaphore, #tpu.memory_space<semaphore_mem>> -> memref<!tpu.dma_semaphore, #tpu.memory_space<semaphore_mem>>
      tpu.enqueue_dma source(%211 : memref<256xf32, #tpu.memory_space<any>>) target(%213 : memref<256xf32, #tpu.memory_space<vmem>>) target_semaphore(%215 : memref<!tpu.dma_semaphore, #tpu.memory_space<semaphore_mem>>)
      %c27 = arith.constant 27 : index
      %216 = memref.load %arg1[%c27] : memref<128xi32, #tpu.memory_space<smem>>
      %c0_i32_126 = arith.constant 0 : i32
      %c27_i32 = arith.constant 27 : i32
      %c0_i32_127 = arith.constant 0 : i32
      %c0_i32_128 = arith.constant 0 : i32
      %217 = tpu.memref_slice %arg2[%216, %c0_i32_128] : memref<512x256xf32, #tpu.memory_space<any>> -> memref<1x256xf32, #tpu.memory_space<any>>
      %218 = tpu.memref_squeeze %217 : memref<1x256xf32, #tpu.memory_space<any>> -> memref<256xf32, #tpu.memory_space<any>>
      %c0_i32_129 = arith.constant 0 : i32
      %219 = tpu.memref_slice %arg4[%c0_i32_126, %c27_i32, %c0_i32_129] : memref<2x32x256xf32, #tpu.memory_space<vmem>> -> memref<1x1x256xf32, #tpu.memory_space<vmem>>
      %220 = tpu.memref_squeeze %219 : memref<1x1x256xf32, #tpu.memory_space<vmem>> -> memref<256xf32, #tpu.memory_space<vmem>>
      %221 = tpu.memref_slice %arg5[%c0_i32_127] : memref<2x!tpu.dma_semaphore, #tpu.memory_space<semaphore_mem>> -> memref<1x!tpu.dma_semaphore, #tpu.memory_space<semaphore_mem>>
      %222 = tpu.memref_squeeze %221 : memref<1x!tpu.dma_semaphore, #tpu.memory_space<semaphore_mem>> -> memref<!tpu.dma_semaphore, #tpu.memory_space<semaphore_mem>>
      tpu.enqueue_dma source(%218 : memref<256xf32, #tpu.memory_space<any>>) target(%220 : memref<256xf32, #tpu.memory_space<vmem>>) target_semaphore(%222 : memref<!tpu.dma_semaphore, #tpu.memory_space<semaphore_mem>>)
      %c28 = arith.constant 28 : index
      %223 = memref.load %arg1[%c28] : memref<128xi32, #tpu.memory_space<smem>>
      %c0_i32_130 = arith.constant 0 : i32
      %c28_i32 = arith.constant 28 : i32
      %c0_i32_131 = arith.constant 0 : i32
      %c0_i32_132 = arith.constant 0 : i32
      %224 = tpu.memref_slice %arg2[%223, %c0_i32_132] : memref<512x256xf32, #tpu.memory_space<any>> -> memref<1x256xf32, #tpu.memory_space<any>>
      %225 = tpu.memref_squeeze %224 : memref<1x256xf32, #tpu.memory_space<any>> -> memref<256xf32, #tpu.memory_space<any>>
      %c0_i32_133 = arith.constant 0 : i32
      %226 = tpu.memref_slice %arg4[%c0_i32_130, %c28_i32, %c0_i32_133] : memref<2x32x256xf32, #tpu.memory_space<vmem>> -> memref<1x1x256xf32, #tpu.memory_space<vmem>>
      %227 = tpu.memref_squeeze %226 : memref<1x1x256xf32, #tpu.memory_space<vmem>> -> memref<256xf32, #tpu.memory_space<vmem>>
      %228 = tpu.memref_slice %arg5[%c0_i32_131] : memref<2x!tpu.dma_semaphore, #tpu.memory_space<semaphore_mem>> -> memref<1x!tpu.dma_semaphore, #tpu.memory_space<semaphore_mem>>
      %229 = tpu.memref_squeeze %228 : memref<1x!tpu.dma_semaphore, #tpu.memory_space<semaphore_mem>> -> memref<!tpu.dma_semaphore, #tpu.memory_space<semaphore_mem>>
      tpu.enqueue_dma source(%225 : memref<256xf32, #tpu.memory_space<any>>) target(%227 : memref<256xf32, #tpu.memory_space<vmem>>) target_semaphore(%229 : memref<!tpu.dma_semaphore, #tpu.memory_space<semaphore_mem>>)
      %c29 = arith.constant 29 : index
      %230 = memref.load %arg1[%c29] : memref<128xi32, #tpu.memory_space<smem>>
      %c0_i32_134 = arith.constant 0 : i32
      %c29_i32 = arith.constant 29 : i32
      %c0_i32_135 = arith.constant 0 : i32
      %c0_i32_136 = arith.constant 0 : i32
      %231 = tpu.memref_slice %arg2[%230, %c0_i32_136] : memref<512x256xf32, #tpu.memory_space<any>> -> memref<1x256xf32, #tpu.memory_space<any>>
      %232 = tpu.memref_squeeze %231 : memref<1x256xf32, #tpu.memory_space<any>> -> memref<256xf32, #tpu.memory_space<any>>
      %c0_i32_137 = arith.constant 0 : i32
      %233 = tpu.memref_slice %arg4[%c0_i32_134, %c29_i32, %c0_i32_137] : memref<2x32x256xf32, #tpu.memory_space<vmem>> -> memref<1x1x256xf32, #tpu.memory_space<vmem>>
      %234 = tpu.memref_squeeze %233 : memref<1x1x256xf32, #tpu.memory_space<vmem>> -> memref<256xf32, #tpu.memory_space<vmem>>
      %235 = tpu.memref_slice %arg5[%c0_i32_135] : memref<2x!tpu.dma_semaphore, #tpu.memory_space<semaphore_mem>> -> memref<1x!tpu.dma_semaphore, #tpu.memory_space<semaphore_mem>>
      %236 = tpu.memref_squeeze %235 : memref<1x!tpu.dma_semaphore, #tpu.memory_space<semaphore_mem>> -> memref<!tpu.dma_semaphore, #tpu.memory_space<semaphore_mem>>
      tpu.enqueue_dma source(%232 : memref<256xf32, #tpu.memory_space<any>>) target(%234 : memref<256xf32, #tpu.memory_space<vmem>>) target_semaphore(%236 : memref<!tpu.dma_semaphore, #tpu.memory_space<semaphore_mem>>)
      %c30 = arith.constant 30 : index
      %237 = memref.load %arg1[%c30] : memref<128xi32, #tpu.memory_space<smem>>
      %c0_i32_138 = arith.constant 0 : i32
      %c30_i32 = arith.constant 30 : i32
      %c0_i32_139 = arith.constant 0 : i32
      %c0_i32_140 = arith.constant 0 : i32
      %238 = tpu.memref_slice %arg2[%237, %c0_i32_140] : memref<512x256xf32, #tpu.memory_space<any>> -> memref<1x256xf32, #tpu.memory_space<any>>
      %239 = tpu.memref_squeeze %238 : memref<1x256xf32, #tpu.memory_space<any>> -> memref<256xf32, #tpu.memory_space<any>>
      %c0_i32_141 = arith.constant 0 : i32
      %240 = tpu.memref_slice %arg4[%c0_i32_138, %c30_i32, %c0_i32_141] : memref<2x32x256xf32, #tpu.memory_space<vmem>> -> memref<1x1x256xf32, #tpu.memory_space<vmem>>
      %241 = tpu.memref_squeeze %240 : memref<1x1x256xf32, #tpu.memory_space<vmem>> -> memref<256xf32, #tpu.memory_space<vmem>>
      %242 = tpu.memref_slice %arg5[%c0_i32_139] : memref<2x!tpu.dma_semaphore, #tpu.memory_space<semaphore_mem>> -> memref<1x!tpu.dma_semaphore, #tpu.memory_space<semaphore_mem>>
      %243 = tpu.memref_squeeze %242 : memref<1x!tpu.dma_semaphore, #tpu.memory_space<semaphore_mem>> -> memref<!tpu.dma_semaphore, #tpu.memory_space<semaphore_mem>>
      tpu.enqueue_dma source(%239 : memref<256xf32, #tpu.memory_space<any>>) target(%241 : memref<256xf32, #tpu.memory_space<vmem>>) target_semaphore(%243 : memref<!tpu.dma_semaphore, #tpu.memory_space<semaphore_mem>>)
      %c31 = arith.constant 31 : index
      %244 = memref.load %arg1[%c31] : memref<128xi32, #tpu.memory_space<smem>>
      %c0_i32_142 = arith.constant 0 : i32
      %c31_i32 = arith.constant 31 : i32
      %c0_i32_143 = arith.constant 0 : i32
      %c0_i32_144 = arith.constant 0 : i32
      %245 = tpu.memref_slice %arg2[%244, %c0_i32_144] : memref<512x256xf32, #tpu.memory_space<any>> -> memref<1x256xf32, #tpu.memory_space<any>>
      %246 = tpu.memref_squeeze %245 : memref<1x256xf32, #tpu.memory_space<any>> -> memref<256xf32, #tpu.memory_space<any>>
      %c0_i32_145 = arith.constant 0 : i32
      %247 = tpu.memref_slice %arg4[%c0_i32_142, %c31_i32, %c0_i32_145] : memref<2x32x256xf32, #tpu.memory_space<vmem>> -> memref<1x1x256xf32, #tpu.memory_space<vmem>>
      %248 = tpu.memref_squeeze %247 : memref<1x1x256xf32, #tpu.memory_space<vmem>> -> memref<256xf32, #tpu.memory_space<vmem>>
      %249 = tpu.memref_slice %arg5[%c0_i32_143] : memref<2x!tpu.dma_semaphore, #tpu.memory_space<semaphore_mem>> -> memref<1x!tpu.dma_semaphore, #tpu.memory_space<semaphore_mem>>
      %250 = tpu.memref_squeeze %249 : memref<1x!tpu.dma_semaphore, #tpu.memory_space<semaphore_mem>> -> memref<!tpu.dma_semaphore, #tpu.memory_space<semaphore_mem>>
      tpu.enqueue_dma source(%246 : memref<256xf32, #tpu.memory_space<any>>) target(%248 : memref<256xf32, #tpu.memory_space<vmem>>) target_semaphore(%250 : memref<!tpu.dma_semaphore, #tpu.memory_space<semaphore_mem>>)
    } else {
    }
    %c1_i32_2 = arith.constant 1 : i32
    %5 = arith.cmpi sge, %arg0, %c1_i32_2 : i32
    %6 = arith.extui %5 : i1 to i32
    %c0_i32_3 = arith.constant 0 : i32
    %7 = arith.cmpi ne, %6, %c0_i32_3 : i32
    scf.if %7 {
      %c1_i32_14 = arith.constant 1 : i32
      %27 = arith.subi %arg0, %c1_i32_14 : i32
      %c32_i32_15 = arith.constant 32 : i32
      %28 = arith.muli %27, %c32_i32_15 : i32
      %c0_i32_16 = arith.constant 0 : i32
      %c0_i32_17 = arith.constant 0 : i32
      %29 = tpu.memref_slice %arg4[%1, %c0_i32_16, %c0_i32_17] : memref<2x32x256xf32, #tpu.memory_space<vmem>> -> memref<1x32x256xf32, #tpu.memory_space<vmem>>
      %30 = tpu.memref_squeeze %29 : memref<1x32x256xf32, #tpu.memory_space<vmem>> -> memref<32x256xf32, #tpu.memory_space<vmem>>
      %c0_i32_18 = arith.constant 0 : i32
      %31 = tpu.memref_slice %arg3[%28, %c0_i32_18] : memref<128x256xf32, #tpu.memory_space<any>> -> memref<32x256xf32, #tpu.memory_space<any>>
      %32 = tpu.memref_slice %arg6[%1] : memref<2x!tpu.dma_semaphore, #tpu.memory_space<semaphore_mem>> -> memref<1x!tpu.dma_semaphore, #tpu.memory_space<semaphore_mem>>
      %33 = tpu.memref_squeeze %32 : memref<1x!tpu.dma_semaphore, #tpu.memory_space<semaphore_mem>> -> memref<!tpu.dma_semaphore, #tpu.memory_space<semaphore_mem>>
      tpu.wait_dma2 semaphore(%33 : memref<!tpu.dma_semaphore, #tpu.memory_space<semaphore_mem>>) src(%30 : memref<32x256xf32, #tpu.memory_space<vmem>>) dst(%31 : memref<32x256xf32, #tpu.memory_space<any>>)
    } else {
    }
    %c1_i32_4 = arith.constant 1 : i32
    %8 = arith.addi %arg0, %c1_i32_4 : i32
    %c4_i32 = arith.constant 4 : i32
    %9 = arith.cmpi slt, %8, %c4_i32 : i32
    %10 = arith.extui %9 : i1 to i32
    %c0_i32_5 = arith.constant 0 : i32
    %11 = arith.cmpi ne, %10, %c0_i32_5 : i32
    scf.if %11 {
      %c1_i32_14 = arith.constant 1 : i32
      %27 = arith.addi %arg0, %c1_i32_14 : i32
      %c32_i32_15 = arith.constant 32 : i32
      %28 = arith.muli %27, %c32_i32_15 : i32
      %c0_i32_16 = arith.constant 0 : i32
      %29 = arith.addi %28, %c0_i32_16 : i32
      %30 = arith.index_cast %29 : i32 to index
      %31 = memref.load %arg1[%30] : memref<128xi32, #tpu.memory_space<smem>>
      %c0_i32_17 = arith.constant 0 : i32
      %c0_i32_18 = arith.constant 0 : i32
      %32 = tpu.memref_slice %arg2[%31, %c0_i32_18] : memref<512x256xf32, #tpu.memory_space<any>> -> memref<1x256xf32, #tpu.memory_space<any>>
      %33 = tpu.memref_squeeze %32 : memref<1x256xf32, #tpu.memory_space<any>> -> memref<256xf32, #tpu.memory_space<any>>
      %c0_i32_19 = arith.constant 0 : i32
      %34 = tpu.memref_slice %arg4[%1, %c0_i32_17, %c0_i32_19] : memref<2x32x256xf32, #tpu.memory_space<vmem>> -> memref<1x1x256xf32, #tpu.memory_space<vmem>>
      %35 = tpu.memref_squeeze %34 : memref<1x1x256xf32, #tpu.memory_space<vmem>> -> memref<256xf32, #tpu.memory_space<vmem>>
      %36 = tpu.memref_slice %arg5[%1] : memref<2x!tpu.dma_semaphore, #tpu.memory_space<semaphore_mem>> -> memref<1x!tpu.dma_semaphore, #tpu.memory_space<semaphore_mem>>
      %37 = tpu.memref_squeeze %36 : memref<1x!tpu.dma_semaphore, #tpu.memory_space<semaphore_mem>> -> memref<!tpu.dma_semaphore, #tpu.memory_space<semaphore_mem>>
      tpu.enqueue_dma source(%33 : memref<256xf32, #tpu.memory_space<any>>) target(%35 : memref<256xf32, #tpu.memory_space<vmem>>) target_semaphore(%37 : memref<!tpu.dma_semaphore, #tpu.memory_space<semaphore_mem>>)
      %c1_i32_20 = arith.constant 1 : i32
      %38 = arith.addi %28, %c1_i32_20 : i32
      %39 = arith.index_cast %38 : i32 to index
      %40 = memref.load %arg1[%39] : memref<128xi32, #tpu.memory_space<smem>>
      %c1_i32_21 = arith.constant 1 : i32
      %c0_i32_22 = arith.constant 0 : i32
      %41 = tpu.memref_slice %arg2[%40, %c0_i32_22] : memref<512x256xf32, #tpu.memory_space<any>> -> memref<1x256xf32, #tpu.memory_space<any>>
      %42 = tpu.memref_squeeze %41 : memref<1x256xf32, #tpu.memory_space<any>> -> memref<256xf32, #tpu.memory_space<any>>
      %c0_i32_23 = arith.constant 0 : i32
      %43 = tpu.memref_slice %arg4[%1, %c1_i32_21, %c0_i32_23] : memref<2x32x256xf32, #tpu.memory_space<vmem>> -> memref<1x1x256xf32, #tpu.memory_space<vmem>>
      %44 = tpu.memref_squeeze %43 : memref<1x1x256xf32, #tpu.memory_space<vmem>> -> memref<256xf32, #tpu.memory_space<vmem>>
      %45 = tpu.memref_slice %arg5[%1] : memref<2x!tpu.dma_semaphore, #tpu.memory_space<semaphore_mem>> -> memref<1x!tpu.dma_semaphore, #tpu.memory_space<semaphore_mem>>
      %46 = tpu.memref_squeeze %45 : memref<1x!tpu.dma_semaphore, #tpu.memory_space<semaphore_mem>> -> memref<!tpu.dma_semaphore, #tpu.memory_space<semaphore_mem>>
      tpu.enqueue_dma source(%42 : memref<256xf32, #tpu.memory_space<any>>) target(%44 : memref<256xf32, #tpu.memory_space<vmem>>) target_semaphore(%46 : memref<!tpu.dma_semaphore, #tpu.memory_space<semaphore_mem>>)
      %c2_i32 = arith.constant 2 : i32
      %47 = arith.addi %28, %c2_i32 : i32
      %48 = arith.index_cast %47 : i32 to index
      %49 = memref.load %arg1[%48] : memref<128xi32, #tpu.memory_space<smem>>
      %c2_i32_24 = arith.constant 2 : i32
      %c0_i32_25 = arith.constant 0 : i32
      %50 = tpu.memref_slice %arg2[%49, %c0_i32_25] : memref<512x256xf32, #tpu.memory_space<any>> -> memref<1x256xf32, #tpu.memory_space<any>>
      %51 = tpu.memref_squeeze %50 : memref<1x256xf32, #tpu.memory_space<any>> -> memref<256xf32, #tpu.memory_space<any>>
      %c0_i32_26 = arith.constant 0 : i32
      %52 = tpu.memref_slice %arg4[%1, %c2_i32_24, %c0_i32_26] : memref<2x32x256xf32, #tpu.memory_space<vmem>> -> memref<1x1x256xf32, #tpu.memory_space<vmem>>
      %53 = tpu.memref_squeeze %52 : memref<1x1x256xf32, #tpu.memory_space<vmem>> -> memref<256xf32, #tpu.memory_space<vmem>>
      %54 = tpu.memref_slice %arg5[%1] : memref<2x!tpu.dma_semaphore, #tpu.memory_space<semaphore_mem>> -> memref<1x!tpu.dma_semaphore, #tpu.memory_space<semaphore_mem>>
      %55 = tpu.memref_squeeze %54 : memref<1x!tpu.dma_semaphore, #tpu.memory_space<semaphore_mem>> -> memref<!tpu.dma_semaphore, #tpu.memory_space<semaphore_mem>>
      tpu.enqueue_dma source(%51 : memref<256xf32, #tpu.memory_space<any>>) target(%53 : memref<256xf32, #tpu.memory_space<vmem>>) target_semaphore(%55 : memref<!tpu.dma_semaphore, #tpu.memory_space<semaphore_mem>>)
      %c3_i32_27 = arith.constant 3 : i32
      %56 = arith.addi %28, %c3_i32_27 : i32
      %57 = arith.index_cast %56 : i32 to index
      %58 = memref.load %arg1[%57] : memref<128xi32, #tpu.memory_space<smem>>
      %c3_i32_28 = arith.constant 3 : i32
      %c0_i32_29 = arith.constant 0 : i32
      %59 = tpu.memref_slice %arg2[%58, %c0_i32_29] : memref<512x256xf32, #tpu.memory_space<any>> -> memref<1x256xf32, #tpu.memory_space<any>>
      %60 = tpu.memref_squeeze %59 : memref<1x256xf32, #tpu.memory_space<any>> -> memref<256xf32, #tpu.memory_space<any>>
      %c0_i32_30 = arith.constant 0 : i32
      %61 = tpu.memref_slice %arg4[%1, %c3_i32_28, %c0_i32_30] : memref<2x32x256xf32, #tpu.memory_space<vmem>> -> memref<1x1x256xf32, #tpu.memory_space<vmem>>
      %62 = tpu.memref_squeeze %61 : memref<1x1x256xf32, #tpu.memory_space<vmem>> -> memref<256xf32, #tpu.memory_space<vmem>>
      %63 = tpu.memref_slice %arg5[%1] : memref<2x!tpu.dma_semaphore, #tpu.memory_space<semaphore_mem>> -> memref<1x!tpu.dma_semaphore, #tpu.memory_space<semaphore_mem>>
      %64 = tpu.memref_squeeze %63 : memref<1x!tpu.dma_semaphore, #tpu.memory_space<semaphore_mem>> -> memref<!tpu.dma_semaphore, #tpu.memory_space<semaphore_mem>>
      tpu.enqueue_dma source(%60 : memref<256xf32, #tpu.memory_space<any>>) target(%62 : memref<256xf32, #tpu.memory_space<vmem>>) target_semaphore(%64 : memref<!tpu.dma_semaphore, #tpu.memory_space<semaphore_mem>>)
      %c4_i32_31 = arith.constant 4 : i32
      %65 = arith.addi %28, %c4_i32_31 : i32
      %66 = arith.index_cast %65 : i32 to index
      %67 = memref.load %arg1[%66] : memref<128xi32, #tpu.memory_space<smem>>
      %c4_i32_32 = arith.constant 4 : i32
      %c0_i32_33 = arith.constant 0 : i32
      %68 = tpu.memref_slice %arg2[%67, %c0_i32_33] : memref<512x256xf32, #tpu.memory_space<any>> -> memref<1x256xf32, #tpu.memory_space<any>>
      %69 = tpu.memref_squeeze %68 : memref<1x256xf32, #tpu.memory_space<any>> -> memref<256xf32, #tpu.memory_space<any>>
      %c0_i32_34 = arith.constant 0 : i32
      %70 = tpu.memref_slice %arg4[%1, %c4_i32_32, %c0_i32_34] : memref<2x32x256xf32, #tpu.memory_space<vmem>> -> memref<1x1x256xf32, #tpu.memory_space<vmem>>
      %71 = tpu.memref_squeeze %70 : memref<1x1x256xf32, #tpu.memory_space<vmem>> -> memref<256xf32, #tpu.memory_space<vmem>>
      %72 = tpu.memref_slice %arg5[%1] : memref<2x!tpu.dma_semaphore, #tpu.memory_space<semaphore_mem>> -> memref<1x!tpu.dma_semaphore, #tpu.memory_space<semaphore_mem>>
      %73 = tpu.memref_squeeze %72 : memref<1x!tpu.dma_semaphore, #tpu.memory_space<semaphore_mem>> -> memref<!tpu.dma_semaphore, #tpu.memory_space<semaphore_mem>>
      tpu.enqueue_dma source(%69 : memref<256xf32, #tpu.memory_space<any>>) target(%71 : memref<256xf32, #tpu.memory_space<vmem>>) target_semaphore(%73 : memref<!tpu.dma_semaphore, #tpu.memory_space<semaphore_mem>>)
      %c5_i32 = arith.constant 5 : i32
      %74 = arith.addi %28, %c5_i32 : i32
      %75 = arith.index_cast %74 : i32 to index
      %76 = memref.load %arg1[%75] : memref<128xi32, #tpu.memory_space<smem>>
      %c5_i32_35 = arith.constant 5 : i32
      %c0_i32_36 = arith.constant 0 : i32
      %77 = tpu.memref_slice %arg2[%76, %c0_i32_36] : memref<512x256xf32, #tpu.memory_space<any>> -> memref<1x256xf32, #tpu.memory_space<any>>
      %78 = tpu.memref_squeeze %77 : memref<1x256xf32, #tpu.memory_space<any>> -> memref<256xf32, #tpu.memory_space<any>>
      %c0_i32_37 = arith.constant 0 : i32
      %79 = tpu.memref_slice %arg4[%1, %c5_i32_35, %c0_i32_37] : memref<2x32x256xf32, #tpu.memory_space<vmem>> -> memref<1x1x256xf32, #tpu.memory_space<vmem>>
      %80 = tpu.memref_squeeze %79 : memref<1x1x256xf32, #tpu.memory_space<vmem>> -> memref<256xf32, #tpu.memory_space<vmem>>
      %81 = tpu.memref_slice %arg5[%1] : memref<2x!tpu.dma_semaphore, #tpu.memory_space<semaphore_mem>> -> memref<1x!tpu.dma_semaphore, #tpu.memory_space<semaphore_mem>>
      %82 = tpu.memref_squeeze %81 : memref<1x!tpu.dma_semaphore, #tpu.memory_space<semaphore_mem>> -> memref<!tpu.dma_semaphore, #tpu.memory_space<semaphore_mem>>
      tpu.enqueue_dma source(%78 : memref<256xf32, #tpu.memory_space<any>>) target(%80 : memref<256xf32, #tpu.memory_space<vmem>>) target_semaphore(%82 : memref<!tpu.dma_semaphore, #tpu.memory_space<semaphore_mem>>)
      %c6_i32 = arith.constant 6 : i32
      %83 = arith.addi %28, %c6_i32 : i32
      %84 = arith.index_cast %83 : i32 to index
      %85 = memref.load %arg1[%84] : memref<128xi32, #tpu.memory_space<smem>>
      %c6_i32_38 = arith.constant 6 : i32
      %c0_i32_39 = arith.constant 0 : i32
      %86 = tpu.memref_slice %arg2[%85, %c0_i32_39] : memref<512x256xf32, #tpu.memory_space<any>> -> memref<1x256xf32, #tpu.memory_space<any>>
      %87 = tpu.memref_squeeze %86 : memref<1x256xf32, #tpu.memory_space<any>> -> memref<256xf32, #tpu.memory_space<any>>
      %c0_i32_40 = arith.constant 0 : i32
      %88 = tpu.memref_slice %arg4[%1, %c6_i32_38, %c0_i32_40] : memref<2x32x256xf32, #tpu.memory_space<vmem>> -> memref<1x1x256xf32, #tpu.memory_space<vmem>>
      %89 = tpu.memref_squeeze %88 : memref<1x1x256xf32, #tpu.memory_space<vmem>> -> memref<256xf32, #tpu.memory_space<vmem>>
      %90 = tpu.memref_slice %arg5[%1] : memref<2x!tpu.dma_semaphore, #tpu.memory_space<semaphore_mem>> -> memref<1x!tpu.dma_semaphore, #tpu.memory_space<semaphore_mem>>
      %91 = tpu.memref_squeeze %90 : memref<1x!tpu.dma_semaphore, #tpu.memory_space<semaphore_mem>> -> memref<!tpu.dma_semaphore, #tpu.memory_space<semaphore_mem>>
      tpu.enqueue_dma source(%87 : memref<256xf32, #tpu.memory_space<any>>) target(%89 : memref<256xf32, #tpu.memory_space<vmem>>) target_semaphore(%91 : memref<!tpu.dma_semaphore, #tpu.memory_space<semaphore_mem>>)
      %c7_i32 = arith.constant 7 : i32
      %92 = arith.addi %28, %c7_i32 : i32
      %93 = arith.index_cast %92 : i32 to index
      %94 = memref.load %arg1[%93] : memref<128xi32, #tpu.memory_space<smem>>
      %c7_i32_41 = arith.constant 7 : i32
      %c0_i32_42 = arith.constant 0 : i32
      %95 = tpu.memref_slice %arg2[%94, %c0_i32_42] : memref<512x256xf32, #tpu.memory_space<any>> -> memref<1x256xf32, #tpu.memory_space<any>>
      %96 = tpu.memref_squeeze %95 : memref<1x256xf32, #tpu.memory_space<any>> -> memref<256xf32, #tpu.memory_space<any>>
      %c0_i32_43 = arith.constant 0 : i32
      %97 = tpu.memref_slice %arg4[%1, %c7_i32_41, %c0_i32_43] : memref<2x32x256xf32, #tpu.memory_space<vmem>> -> memref<1x1x256xf32, #tpu.memory_space<vmem>>
      %98 = tpu.memref_squeeze %97 : memref<1x1x256xf32, #tpu.memory_space<vmem>> -> memref<256xf32, #tpu.memory_space<vmem>>
      %99 = tpu.memref_slice %arg5[%1] : memref<2x!tpu.dma_semaphore, #tpu.memory_space<semaphore_mem>> -> memref<1x!tpu.dma_semaphore, #tpu.memory_space<semaphore_mem>>
      %100 = tpu.memref_squeeze %99 : memref<1x!tpu.dma_semaphore, #tpu.memory_space<semaphore_mem>> -> memref<!tpu.dma_semaphore, #tpu.memory_space<semaphore_mem>>
      tpu.enqueue_dma source(%96 : memref<256xf32, #tpu.memory_space<any>>) target(%98 : memref<256xf32, #tpu.memory_space<vmem>>) target_semaphore(%100 : memref<!tpu.dma_semaphore, #tpu.memory_space<semaphore_mem>>)
      %c8_i32 = arith.constant 8 : i32
      %101 = arith.addi %28, %c8_i32 : i32
      %102 = arith.index_cast %101 : i32 to index
      %103 = memref.load %arg1[%102] : memref<128xi32, #tpu.memory_space<smem>>
      %c8_i32_44 = arith.constant 8 : i32
      %c0_i32_45 = arith.constant 0 : i32
      %104 = tpu.memref_slice %arg2[%103, %c0_i32_45] : memref<512x256xf32, #tpu.memory_space<any>> -> memref<1x256xf32, #tpu.memory_space<any>>
      %105 = tpu.memref_squeeze %104 : memref<1x256xf32, #tpu.memory_space<any>> -> memref<256xf32, #tpu.memory_space<any>>
      %c0_i32_46 = arith.constant 0 : i32
      %106 = tpu.memref_slice %arg4[%1, %c8_i32_44, %c0_i32_46] : memref<2x32x256xf32, #tpu.memory_space<vmem>> -> memref<1x1x256xf32, #tpu.memory_space<vmem>>
      %107 = tpu.memref_squeeze %106 : memref<1x1x256xf32, #tpu.memory_space<vmem>> -> memref<256xf32, #tpu.memory_space<vmem>>
      %108 = tpu.memref_slice %arg5[%1] : memref<2x!tpu.dma_semaphore, #tpu.memory_space<semaphore_mem>> -> memref<1x!tpu.dma_semaphore, #tpu.memory_space<semaphore_mem>>
      %109 = tpu.memref_squeeze %108 : memref<1x!tpu.dma_semaphore, #tpu.memory_space<semaphore_mem>> -> memref<!tpu.dma_semaphore, #tpu.memory_space<semaphore_mem>>
      tpu.enqueue_dma source(%105 : memref<256xf32, #tpu.memory_space<any>>) target(%107 : memref<256xf32, #tpu.memory_space<vmem>>) target_semaphore(%109 : memref<!tpu.dma_semaphore, #tpu.memory_space<semaphore_mem>>)
      %c9_i32 = arith.constant 9 : i32
      %110 = arith.addi %28, %c9_i32 : i32
      %111 = arith.index_cast %110 : i32 to index
      %112 = memref.load %arg1[%111] : memref<128xi32, #tpu.memory_space<smem>>
      %c9_i32_47 = arith.constant 9 : i32
      %c0_i32_48 = arith.constant 0 : i32
      %113 = tpu.memref_slice %arg2[%112, %c0_i32_48] : memref<512x256xf32, #tpu.memory_space<any>> -> memref<1x256xf32, #tpu.memory_space<any>>
      %114 = tpu.memref_squeeze %113 : memref<1x256xf32, #tpu.memory_space<any>> -> memref<256xf32, #tpu.memory_space<any>>
      %c0_i32_49 = arith.constant 0 : i32
      %115 = tpu.memref_slice %arg4[%1, %c9_i32_47, %c0_i32_49] : memref<2x32x256xf32, #tpu.memory_space<vmem>> -> memref<1x1x256xf32, #tpu.memory_space<vmem>>
      %116 = tpu.memref_squeeze %115 : memref<1x1x256xf32, #tpu.memory_space<vmem>> -> memref<256xf32, #tpu.memory_space<vmem>>
      %117 = tpu.memref_slice %arg5[%1] : memref<2x!tpu.dma_semaphore, #tpu.memory_space<semaphore_mem>> -> memref<1x!tpu.dma_semaphore, #tpu.memory_space<semaphore_mem>>
      %118 = tpu.memref_squeeze %117 : memref<1x!tpu.dma_semaphore, #tpu.memory_space<semaphore_mem>> -> memref<!tpu.dma_semaphore, #tpu.memory_space<semaphore_mem>>
      tpu.enqueue_dma source(%114 : memref<256xf32, #tpu.memory_space<any>>) target(%116 : memref<256xf32, #tpu.memory_space<vmem>>) target_semaphore(%118 : memref<!tpu.dma_semaphore, #tpu.memory_space<semaphore_mem>>)
      %c10_i32 = arith.constant 10 : i32
      %119 = arith.addi %28, %c10_i32 : i32
      %120 = arith.index_cast %119 : i32 to index
      %121 = memref.load %arg1[%120] : memref<128xi32, #tpu.memory_space<smem>>
      %c10_i32_50 = arith.constant 10 : i32
      %c0_i32_51 = arith.constant 0 : i32
      %122 = tpu.memref_slice %arg2[%121, %c0_i32_51] : memref<512x256xf32, #tpu.memory_space<any>> -> memref<1x256xf32, #tpu.memory_space<any>>
      %123 = tpu.memref_squeeze %122 : memref<1x256xf32, #tpu.memory_space<any>> -> memref<256xf32, #tpu.memory_space<any>>
      %c0_i32_52 = arith.constant 0 : i32
      %124 = tpu.memref_slice %arg4[%1, %c10_i32_50, %c0_i32_52] : memref<2x32x256xf32, #tpu.memory_space<vmem>> -> memref<1x1x256xf32, #tpu.memory_space<vmem>>
      %125 = tpu.memref_squeeze %124 : memref<1x1x256xf32, #tpu.memory_space<vmem>> -> memref<256xf32, #tpu.memory_space<vmem>>
      %126 = tpu.memref_slice %arg5[%1] : memref<2x!tpu.dma_semaphore, #tpu.memory_space<semaphore_mem>> -> memref<1x!tpu.dma_semaphore, #tpu.memory_space<semaphore_mem>>
      %127 = tpu.memref_squeeze %126 : memref<1x!tpu.dma_semaphore, #tpu.memory_space<semaphore_mem>> -> memref<!tpu.dma_semaphore, #tpu.memory_space<semaphore_mem>>
      tpu.enqueue_dma source(%123 : memref<256xf32, #tpu.memory_space<any>>) target(%125 : memref<256xf32, #tpu.memory_space<vmem>>) target_semaphore(%127 : memref<!tpu.dma_semaphore, #tpu.memory_space<semaphore_mem>>)
      %c11_i32 = arith.constant 11 : i32
      %128 = arith.addi %28, %c11_i32 : i32
      %129 = arith.index_cast %128 : i32 to index
      %130 = memref.load %arg1[%129] : memref<128xi32, #tpu.memory_space<smem>>
      %c11_i32_53 = arith.constant 11 : i32
      %c0_i32_54 = arith.constant 0 : i32
      %131 = tpu.memref_slice %arg2[%130, %c0_i32_54] : memref<512x256xf32, #tpu.memory_space<any>> -> memref<1x256xf32, #tpu.memory_space<any>>
      %132 = tpu.memref_squeeze %131 : memref<1x256xf32, #tpu.memory_space<any>> -> memref<256xf32, #tpu.memory_space<any>>
      %c0_i32_55 = arith.constant 0 : i32
      %133 = tpu.memref_slice %arg4[%1, %c11_i32_53, %c0_i32_55] : memref<2x32x256xf32, #tpu.memory_space<vmem>> -> memref<1x1x256xf32, #tpu.memory_space<vmem>>
      %134 = tpu.memref_squeeze %133 : memref<1x1x256xf32, #tpu.memory_space<vmem>> -> memref<256xf32, #tpu.memory_space<vmem>>
      %135 = tpu.memref_slice %arg5[%1] : memref<2x!tpu.dma_semaphore, #tpu.memory_space<semaphore_mem>> -> memref<1x!tpu.dma_semaphore, #tpu.memory_space<semaphore_mem>>
      %136 = tpu.memref_squeeze %135 : memref<1x!tpu.dma_semaphore, #tpu.memory_space<semaphore_mem>> -> memref<!tpu.dma_semaphore, #tpu.memory_space<semaphore_mem>>
      tpu.enqueue_dma source(%132 : memref<256xf32, #tpu.memory_space<any>>) target(%134 : memref<256xf32, #tpu.memory_space<vmem>>) target_semaphore(%136 : memref<!tpu.dma_semaphore, #tpu.memory_space<semaphore_mem>>)
      %c12_i32 = arith.constant 12 : i32
      %137 = arith.addi %28, %c12_i32 : i32
      %138 = arith.index_cast %137 : i32 to index
      %139 = memref.load %arg1[%138] : memref<128xi32, #tpu.memory_space<smem>>
      %c12_i32_56 = arith.constant 12 : i32
      %c0_i32_57 = arith.constant 0 : i32
      %140 = tpu.memref_slice %arg2[%139, %c0_i32_57] : memref<512x256xf32, #tpu.memory_space<any>> -> memref<1x256xf32, #tpu.memory_space<any>>
      %141 = tpu.memref_squeeze %140 : memref<1x256xf32, #tpu.memory_space<any>> -> memref<256xf32, #tpu.memory_space<any>>
      %c0_i32_58 = arith.constant 0 : i32
      %142 = tpu.memref_slice %arg4[%1, %c12_i32_56, %c0_i32_58] : memref<2x32x256xf32, #tpu.memory_space<vmem>> -> memref<1x1x256xf32, #tpu.memory_space<vmem>>
      %143 = tpu.memref_squeeze %142 : memref<1x1x256xf32, #tpu.memory_space<vmem>> -> memref<256xf32, #tpu.memory_space<vmem>>
      %144 = tpu.memref_slice %arg5[%1] : memref<2x!tpu.dma_semaphore, #tpu.memory_space<semaphore_mem>> -> memref<1x!tpu.dma_semaphore, #tpu.memory_space<semaphore_mem>>
      %145 = tpu.memref_squeeze %144 : memref<1x!tpu.dma_semaphore, #tpu.memory_space<semaphore_mem>> -> memref<!tpu.dma_semaphore, #tpu.memory_space<semaphore_mem>>
      tpu.enqueue_dma source(%141 : memref<256xf32, #tpu.memory_space<any>>) target(%143 : memref<256xf32, #tpu.memory_space<vmem>>) target_semaphore(%145 : memref<!tpu.dma_semaphore, #tpu.memory_space<semaphore_mem>>)
      %c13_i32 = arith.constant 13 : i32
      %146 = arith.addi %28, %c13_i32 : i32
      %147 = arith.index_cast %146 : i32 to index
      %148 = memref.load %arg1[%147] : memref<128xi32, #tpu.memory_space<smem>>
      %c13_i32_59 = arith.constant 13 : i32
      %c0_i32_60 = arith.constant 0 : i32
      %149 = tpu.memref_slice %arg2[%148, %c0_i32_60] : memref<512x256xf32, #tpu.memory_space<any>> -> memref<1x256xf32, #tpu.memory_space<any>>
      %150 = tpu.memref_squeeze %149 : memref<1x256xf32, #tpu.memory_space<any>> -> memref<256xf32, #tpu.memory_space<any>>
      %c0_i32_61 = arith.constant 0 : i32
      %151 = tpu.memref_slice %arg4[%1, %c13_i32_59, %c0_i32_61] : memref<2x32x256xf32, #tpu.memory_space<vmem>> -> memref<1x1x256xf32, #tpu.memory_space<vmem>>
      %152 = tpu.memref_squeeze %151 : memref<1x1x256xf32, #tpu.memory_space<vmem>> -> memref<256xf32, #tpu.memory_space<vmem>>
      %153 = tpu.memref_slice %arg5[%1] : memref<2x!tpu.dma_semaphore, #tpu.memory_space<semaphore_mem>> -> memref<1x!tpu.dma_semaphore, #tpu.memory_space<semaphore_mem>>
      %154 = tpu.memref_squeeze %153 : memref<1x!tpu.dma_semaphore, #tpu.memory_space<semaphore_mem>> -> memref<!tpu.dma_semaphore, #tpu.memory_space<semaphore_mem>>
      tpu.enqueue_dma source(%150 : memref<256xf32, #tpu.memory_space<any>>) target(%152 : memref<256xf32, #tpu.memory_space<vmem>>) target_semaphore(%154 : memref<!tpu.dma_semaphore, #tpu.memory_space<semaphore_mem>>)
      %c14_i32 = arith.constant 14 : i32
      %155 = arith.addi %28, %c14_i32 : i32
      %156 = arith.index_cast %155 : i32 to index
      %157 = memref.load %arg1[%156] : memref<128xi32, #tpu.memory_space<smem>>
      %c14_i32_62 = arith.constant 14 : i32
      %c0_i32_63 = arith.constant 0 : i32
      %158 = tpu.memref_slice %arg2[%157, %c0_i32_63] : memref<512x256xf32, #tpu.memory_space<any>> -> memref<1x256xf32, #tpu.memory_space<any>>
      %159 = tpu.memref_squeeze %158 : memref<1x256xf32, #tpu.memory_space<any>> -> memref<256xf32, #tpu.memory_space<any>>
      %c0_i32_64 = arith.constant 0 : i32
      %160 = tpu.memref_slice %arg4[%1, %c14_i32_62, %c0_i32_64] : memref<2x32x256xf32, #tpu.memory_space<vmem>> -> memref<1x1x256xf32, #tpu.memory_space<vmem>>
      %161 = tpu.memref_squeeze %160 : memref<1x1x256xf32, #tpu.memory_space<vmem>> -> memref<256xf32, #tpu.memory_space<vmem>>
      %162 = tpu.memref_slice %arg5[%1] : memref<2x!tpu.dma_semaphore, #tpu.memory_space<semaphore_mem>> -> memref<1x!tpu.dma_semaphore, #tpu.memory_space<semaphore_mem>>
      %163 = tpu.memref_squeeze %162 : memref<1x!tpu.dma_semaphore, #tpu.memory_space<semaphore_mem>> -> memref<!tpu.dma_semaphore, #tpu.memory_space<semaphore_mem>>
      tpu.enqueue_dma source(%159 : memref<256xf32, #tpu.memory_space<any>>) target(%161 : memref<256xf32, #tpu.memory_space<vmem>>) target_semaphore(%163 : memref<!tpu.dma_semaphore, #tpu.memory_space<semaphore_mem>>)
      %c15_i32 = arith.constant 15 : i32
      %164 = arith.addi %28, %c15_i32 : i32
      %165 = arith.index_cast %164 : i32 to index
      %166 = memref.load %arg1[%165] : memref<128xi32, #tpu.memory_space<smem>>
      %c15_i32_65 = arith.constant 15 : i32
      %c0_i32_66 = arith.constant 0 : i32
      %167 = tpu.memref_slice %arg2[%166, %c0_i32_66] : memref<512x256xf32, #tpu.memory_space<any>> -> memref<1x256xf32, #tpu.memory_space<any>>
      %168 = tpu.memref_squeeze %167 : memref<1x256xf32, #tpu.memory_space<any>> -> memref<256xf32, #tpu.memory_space<any>>
      %c0_i32_67 = arith.constant 0 : i32
      %169 = tpu.memref_slice %arg4[%1, %c15_i32_65, %c0_i32_67] : memref<2x32x256xf32, #tpu.memory_space<vmem>> -> memref<1x1x256xf32, #tpu.memory_space<vmem>>
      %170 = tpu.memref_squeeze %169 : memref<1x1x256xf32, #tpu.memory_space<vmem>> -> memref<256xf32, #tpu.memory_space<vmem>>
      %171 = tpu.memref_slice %arg5[%1] : memref<2x!tpu.dma_semaphore, #tpu.memory_space<semaphore_mem>> -> memref<1x!tpu.dma_semaphore, #tpu.memory_space<semaphore_mem>>
      %172 = tpu.memref_squeeze %171 : memref<1x!tpu.dma_semaphore, #tpu.memory_space<semaphore_mem>> -> memref<!tpu.dma_semaphore, #tpu.memory_space<semaphore_mem>>
      tpu.enqueue_dma source(%168 : memref<256xf32, #tpu.memory_space<any>>) target(%170 : memref<256xf32, #tpu.memory_space<vmem>>) target_semaphore(%172 : memref<!tpu.dma_semaphore, #tpu.memory_space<semaphore_mem>>)
      %c16_i32 = arith.constant 16 : i32
      %173 = arith.addi %28, %c16_i32 : i32
      %174 = arith.index_cast %173 : i32 to index
      %175 = memref.load %arg1[%174] : memref<128xi32, #tpu.memory_space<smem>>
      %c16_i32_68 = arith.constant 16 : i32
      %c0_i32_69 = arith.constant 0 : i32
      %176 = tpu.memref_slice %arg2[%175, %c0_i32_69] : memref<512x256xf32, #tpu.memory_space<any>> -> memref<1x256xf32, #tpu.memory_space<any>>
      %177 = tpu.memref_squeeze %176 : memref<1x256xf32, #tpu.memory_space<any>> -> memref<256xf32, #tpu.memory_space<any>>
      %c0_i32_70 = arith.constant 0 : i32
      %178 = tpu.memref_slice %arg4[%1, %c16_i32_68, %c0_i32_70] : memref<2x32x256xf32, #tpu.memory_space<vmem>> -> memref<1x1x256xf32, #tpu.memory_space<vmem>>
      %179 = tpu.memref_squeeze %178 : memref<1x1x256xf32, #tpu.memory_space<vmem>> -> memref<256xf32, #tpu.memory_space<vmem>>
      %180 = tpu.memref_slice %arg5[%1] : memref<2x!tpu.dma_semaphore, #tpu.memory_space<semaphore_mem>> -> memref<1x!tpu.dma_semaphore, #tpu.memory_space<semaphore_mem>>
      %181 = tpu.memref_squeeze %180 : memref<1x!tpu.dma_semaphore, #tpu.memory_space<semaphore_mem>> -> memref<!tpu.dma_semaphore, #tpu.memory_space<semaphore_mem>>
      tpu.enqueue_dma source(%177 : memref<256xf32, #tpu.memory_space<any>>) target(%179 : memref<256xf32, #tpu.memory_space<vmem>>) target_semaphore(%181 : memref<!tpu.dma_semaphore, #tpu.memory_space<semaphore_mem>>)
      %c17_i32 = arith.constant 17 : i32
      %182 = arith.addi %28, %c17_i32 : i32
      %183 = arith.index_cast %182 : i32 to index
      %184 = memref.load %arg1[%183] : memref<128xi32, #tpu.memory_space<smem>>
      %c17_i32_71 = arith.constant 17 : i32
      %c0_i32_72 = arith.constant 0 : i32
      %185 = tpu.memref_slice %arg2[%184, %c0_i32_72] : memref<512x256xf32, #tpu.memory_space<any>> -> memref<1x256xf32, #tpu.memory_space<any>>
      %186 = tpu.memref_squeeze %185 : memref<1x256xf32, #tpu.memory_space<any>> -> memref<256xf32, #tpu.memory_space<any>>
      %c0_i32_73 = arith.constant 0 : i32
      %187 = tpu.memref_slice %arg4[%1, %c17_i32_71, %c0_i32_73] : memref<2x32x256xf32, #tpu.memory_space<vmem>> -> memref<1x1x256xf32, #tpu.memory_space<vmem>>
      %188 = tpu.memref_squeeze %187 : memref<1x1x256xf32, #tpu.memory_space<vmem>> -> memref<256xf32, #tpu.memory_space<vmem>>
      %189 = tpu.memref_slice %arg5[%1] : memref<2x!tpu.dma_semaphore, #tpu.memory_space<semaphore_mem>> -> memref<1x!tpu.dma_semaphore, #tpu.memory_space<semaphore_mem>>
      %190 = tpu.memref_squeeze %189 : memref<1x!tpu.dma_semaphore, #tpu.memory_space<semaphore_mem>> -> memref<!tpu.dma_semaphore, #tpu.memory_space<semaphore_mem>>
      tpu.enqueue_dma source(%186 : memref<256xf32, #tpu.memory_space<any>>) target(%188 : memref<256xf32, #tpu.memory_space<vmem>>) target_semaphore(%190 : memref<!tpu.dma_semaphore, #tpu.memory_space<semaphore_mem>>)
      %c18_i32 = arith.constant 18 : i32
      %191 = arith.addi %28, %c18_i32 : i32
      %192 = arith.index_cast %191 : i32 to index
      %193 = memref.load %arg1[%192] : memref<128xi32, #tpu.memory_space<smem>>
      %c18_i32_74 = arith.constant 18 : i32
      %c0_i32_75 = arith.constant 0 : i32
      %194 = tpu.memref_slice %arg2[%193, %c0_i32_75] : memref<512x256xf32, #tpu.memory_space<any>> -> memref<1x256xf32, #tpu.memory_space<any>>
      %195 = tpu.memref_squeeze %194 : memref<1x256xf32, #tpu.memory_space<any>> -> memref<256xf32, #tpu.memory_space<any>>
      %c0_i32_76 = arith.constant 0 : i32
      %196 = tpu.memref_slice %arg4[%1, %c18_i32_74, %c0_i32_76] : memref<2x32x256xf32, #tpu.memory_space<vmem>> -> memref<1x1x256xf32, #tpu.memory_space<vmem>>
      %197 = tpu.memref_squeeze %196 : memref<1x1x256xf32, #tpu.memory_space<vmem>> -> memref<256xf32, #tpu.memory_space<vmem>>
      %198 = tpu.memref_slice %arg5[%1] : memref<2x!tpu.dma_semaphore, #tpu.memory_space<semaphore_mem>> -> memref<1x!tpu.dma_semaphore, #tpu.memory_space<semaphore_mem>>
      %199 = tpu.memref_squeeze %198 : memref<1x!tpu.dma_semaphore, #tpu.memory_space<semaphore_mem>> -> memref<!tpu.dma_semaphore, #tpu.memory_space<semaphore_mem>>
      tpu.enqueue_dma source(%195 : memref<256xf32, #tpu.memory_space<any>>) target(%197 : memref<256xf32, #tpu.memory_space<vmem>>) target_semaphore(%199 : memref<!tpu.dma_semaphore, #tpu.memory_space<semaphore_mem>>)
      %c19_i32 = arith.constant 19 : i32
      %200 = arith.addi %28, %c19_i32 : i32
      %201 = arith.index_cast %200 : i32 to index
      %202 = memref.load %arg1[%201] : memref<128xi32, #tpu.memory_space<smem>>
      %c19_i32_77 = arith.constant 19 : i32
      %c0_i32_78 = arith.constant 0 : i32
      %203 = tpu.memref_slice %arg2[%202, %c0_i32_78] : memref<512x256xf32, #tpu.memory_space<any>> -> memref<1x256xf32, #tpu.memory_space<any>>
      %204 = tpu.memref_squeeze %203 : memref<1x256xf32, #tpu.memory_space<any>> -> memref<256xf32, #tpu.memory_space<any>>
      %c0_i32_79 = arith.constant 0 : i32
      %205 = tpu.memref_slice %arg4[%1, %c19_i32_77, %c0_i32_79] : memref<2x32x256xf32, #tpu.memory_space<vmem>> -> memref<1x1x256xf32, #tpu.memory_space<vmem>>
      %206 = tpu.memref_squeeze %205 : memref<1x1x256xf32, #tpu.memory_space<vmem>> -> memref<256xf32, #tpu.memory_space<vmem>>
      %207 = tpu.memref_slice %arg5[%1] : memref<2x!tpu.dma_semaphore, #tpu.memory_space<semaphore_mem>> -> memref<1x!tpu.dma_semaphore, #tpu.memory_space<semaphore_mem>>
      %208 = tpu.memref_squeeze %207 : memref<1x!tpu.dma_semaphore, #tpu.memory_space<semaphore_mem>> -> memref<!tpu.dma_semaphore, #tpu.memory_space<semaphore_mem>>
      tpu.enqueue_dma source(%204 : memref<256xf32, #tpu.memory_space<any>>) target(%206 : memref<256xf32, #tpu.memory_space<vmem>>) target_semaphore(%208 : memref<!tpu.dma_semaphore, #tpu.memory_space<semaphore_mem>>)
      %c20_i32 = arith.constant 20 : i32
      %209 = arith.addi %28, %c20_i32 : i32
      %210 = arith.index_cast %209 : i32 to index
      %211 = memref.load %arg1[%210] : memref<128xi32, #tpu.memory_space<smem>>
      %c20_i32_80 = arith.constant 20 : i32
      %c0_i32_81 = arith.constant 0 : i32
      %212 = tpu.memref_slice %arg2[%211, %c0_i32_81] : memref<512x256xf32, #tpu.memory_space<any>> -> memref<1x256xf32, #tpu.memory_space<any>>
      %213 = tpu.memref_squeeze %212 : memref<1x256xf32, #tpu.memory_space<any>> -> memref<256xf32, #tpu.memory_space<any>>
      %c0_i32_82 = arith.constant 0 : i32
      %214 = tpu.memref_slice %arg4[%1, %c20_i32_80, %c0_i32_82] : memref<2x32x256xf32, #tpu.memory_space<vmem>> -> memref<1x1x256xf32, #tpu.memory_space<vmem>>
      %215 = tpu.memref_squeeze %214 : memref<1x1x256xf32, #tpu.memory_space<vmem>> -> memref<256xf32, #tpu.memory_space<vmem>>
      %216 = tpu.memref_slice %arg5[%1] : memref<2x!tpu.dma_semaphore, #tpu.memory_space<semaphore_mem>> -> memref<1x!tpu.dma_semaphore, #tpu.memory_space<semaphore_mem>>
      %217 = tpu.memref_squeeze %216 : memref<1x!tpu.dma_semaphore, #tpu.memory_space<semaphore_mem>> -> memref<!tpu.dma_semaphore, #tpu.memory_space<semaphore_mem>>
      tpu.enqueue_dma source(%213 : memref<256xf32, #tpu.memory_space<any>>) target(%215 : memref<256xf32, #tpu.memory_space<vmem>>) target_semaphore(%217 : memref<!tpu.dma_semaphore, #tpu.memory_space<semaphore_mem>>)
      %c21_i32 = arith.constant 21 : i32
      %218 = arith.addi %28, %c21_i32 : i32
      %219 = arith.index_cast %218 : i32 to index
      %220 = memref.load %arg1[%219] : memref<128xi32, #tpu.memory_space<smem>>
      %c21_i32_83 = arith.constant 21 : i32
      %c0_i32_84 = arith.constant 0 : i32
      %221 = tpu.memref_slice %arg2[%220, %c0_i32_84] : memref<512x256xf32, #tpu.memory_space<any>> -> memref<1x256xf32, #tpu.memory_space<any>>
      %222 = tpu.memref_squeeze %221 : memref<1x256xf32, #tpu.memory_space<any>> -> memref<256xf32, #tpu.memory_space<any>>
      %c0_i32_85 = arith.constant 0 : i32
      %223 = tpu.memref_slice %arg4[%1, %c21_i32_83, %c0_i32_85] : memref<2x32x256xf32, #tpu.memory_space<vmem>> -> memref<1x1x256xf32, #tpu.memory_space<vmem>>
      %224 = tpu.memref_squeeze %223 : memref<1x1x256xf32, #tpu.memory_space<vmem>> -> memref<256xf32, #tpu.memory_space<vmem>>
      %225 = tpu.memref_slice %arg5[%1] : memref<2x!tpu.dma_semaphore, #tpu.memory_space<semaphore_mem>> -> memref<1x!tpu.dma_semaphore, #tpu.memory_space<semaphore_mem>>
      %226 = tpu.memref_squeeze %225 : memref<1x!tpu.dma_semaphore, #tpu.memory_space<semaphore_mem>> -> memref<!tpu.dma_semaphore, #tpu.memory_space<semaphore_mem>>
      tpu.enqueue_dma source(%222 : memref<256xf32, #tpu.memory_space<any>>) target(%224 : memref<256xf32, #tpu.memory_space<vmem>>) target_semaphore(%226 : memref<!tpu.dma_semaphore, #tpu.memory_space<semaphore_mem>>)
      %c22_i32 = arith.constant 22 : i32
      %227 = arith.addi %28, %c22_i32 : i32
      %228 = arith.index_cast %227 : i32 to index
      %229 = memref.load %arg1[%228] : memref<128xi32, #tpu.memory_space<smem>>
      %c22_i32_86 = arith.constant 22 : i32
      %c0_i32_87 = arith.constant 0 : i32
      %230 = tpu.memref_slice %arg2[%229, %c0_i32_87] : memref<512x256xf32, #tpu.memory_space<any>> -> memref<1x256xf32, #tpu.memory_space<any>>
      %231 = tpu.memref_squeeze %230 : memref<1x256xf32, #tpu.memory_space<any>> -> memref<256xf32, #tpu.memory_space<any>>
      %c0_i32_88 = arith.constant 0 : i32
      %232 = tpu.memref_slice %arg4[%1, %c22_i32_86, %c0_i32_88] : memref<2x32x256xf32, #tpu.memory_space<vmem>> -> memref<1x1x256xf32, #tpu.memory_space<vmem>>
      %233 = tpu.memref_squeeze %232 : memref<1x1x256xf32, #tpu.memory_space<vmem>> -> memref<256xf32, #tpu.memory_space<vmem>>
      %234 = tpu.memref_slice %arg5[%1] : memref<2x!tpu.dma_semaphore, #tpu.memory_space<semaphore_mem>> -> memref<1x!tpu.dma_semaphore, #tpu.memory_space<semaphore_mem>>
      %235 = tpu.memref_squeeze %234 : memref<1x!tpu.dma_semaphore, #tpu.memory_space<semaphore_mem>> -> memref<!tpu.dma_semaphore, #tpu.memory_space<semaphore_mem>>
      tpu.enqueue_dma source(%231 : memref<256xf32, #tpu.memory_space<any>>) target(%233 : memref<256xf32, #tpu.memory_space<vmem>>) target_semaphore(%235 : memref<!tpu.dma_semaphore, #tpu.memory_space<semaphore_mem>>)
      %c23_i32 = arith.constant 23 : i32
      %236 = arith.addi %28, %c23_i32 : i32
      %237 = arith.index_cast %236 : i32 to index
      %238 = memref.load %arg1[%237] : memref<128xi32, #tpu.memory_space<smem>>
      %c23_i32_89 = arith.constant 23 : i32
      %c0_i32_90 = arith.constant 0 : i32
      %239 = tpu.memref_slice %arg2[%238, %c0_i32_90] : memref<512x256xf32, #tpu.memory_space<any>> -> memref<1x256xf32, #tpu.memory_space<any>>
      %240 = tpu.memref_squeeze %239 : memref<1x256xf32, #tpu.memory_space<any>> -> memref<256xf32, #tpu.memory_space<any>>
      %c0_i32_91 = arith.constant 0 : i32
      %241 = tpu.memref_slice %arg4[%1, %c23_i32_89, %c0_i32_91] : memref<2x32x256xf32, #tpu.memory_space<vmem>> -> memref<1x1x256xf32, #tpu.memory_space<vmem>>
      %242 = tpu.memref_squeeze %241 : memref<1x1x256xf32, #tpu.memory_space<vmem>> -> memref<256xf32, #tpu.memory_space<vmem>>
      %243 = tpu.memref_slice %arg5[%1] : memref<2x!tpu.dma_semaphore, #tpu.memory_space<semaphore_mem>> -> memref<1x!tpu.dma_semaphore, #tpu.memory_space<semaphore_mem>>
      %244 = tpu.memref_squeeze %243 : memref<1x!tpu.dma_semaphore, #tpu.memory_space<semaphore_mem>> -> memref<!tpu.dma_semaphore, #tpu.memory_space<semaphore_mem>>
      tpu.enqueue_dma source(%240 : memref<256xf32, #tpu.memory_space<any>>) target(%242 : memref<256xf32, #tpu.memory_space<vmem>>) target_semaphore(%244 : memref<!tpu.dma_semaphore, #tpu.memory_space<semaphore_mem>>)
      %c24_i32 = arith.constant 24 : i32
      %245 = arith.addi %28, %c24_i32 : i32
      %246 = arith.index_cast %245 : i32 to index
      %247 = memref.load %arg1[%246] : memref<128xi32, #tpu.memory_space<smem>>
      %c24_i32_92 = arith.constant 24 : i32
      %c0_i32_93 = arith.constant 0 : i32
      %248 = tpu.memref_slice %arg2[%247, %c0_i32_93] : memref<512x256xf32, #tpu.memory_space<any>> -> memref<1x256xf32, #tpu.memory_space<any>>
      %249 = tpu.memref_squeeze %248 : memref<1x256xf32, #tpu.memory_space<any>> -> memref<256xf32, #tpu.memory_space<any>>
      %c0_i32_94 = arith.constant 0 : i32
      %250 = tpu.memref_slice %arg4[%1, %c24_i32_92, %c0_i32_94] : memref<2x32x256xf32, #tpu.memory_space<vmem>> -> memref<1x1x256xf32, #tpu.memory_space<vmem>>
      %251 = tpu.memref_squeeze %250 : memref<1x1x256xf32, #tpu.memory_space<vmem>> -> memref<256xf32, #tpu.memory_space<vmem>>
      %252 = tpu.memref_slice %arg5[%1] : memref<2x!tpu.dma_semaphore, #tpu.memory_space<semaphore_mem>> -> memref<1x!tpu.dma_semaphore, #tpu.memory_space<semaphore_mem>>
      %253 = tpu.memref_squeeze %252 : memref<1x!tpu.dma_semaphore, #tpu.memory_space<semaphore_mem>> -> memref<!tpu.dma_semaphore, #tpu.memory_space<semaphore_mem>>
      tpu.enqueue_dma source(%249 : memref<256xf32, #tpu.memory_space<any>>) target(%251 : memref<256xf32, #tpu.memory_space<vmem>>) target_semaphore(%253 : memref<!tpu.dma_semaphore, #tpu.memory_space<semaphore_mem>>)
      %c25_i32 = arith.constant 25 : i32
      %254 = arith.addi %28, %c25_i32 : i32
      %255 = arith.index_cast %254 : i32 to index
      %256 = memref.load %arg1[%255] : memref<128xi32, #tpu.memory_space<smem>>
      %c25_i32_95 = arith.constant 25 : i32
      %c0_i32_96 = arith.constant 0 : i32
      %257 = tpu.memref_slice %arg2[%256, %c0_i32_96] : memref<512x256xf32, #tpu.memory_space<any>> -> memref<1x256xf32, #tpu.memory_space<any>>
      %258 = tpu.memref_squeeze %257 : memref<1x256xf32, #tpu.memory_space<any>> -> memref<256xf32, #tpu.memory_space<any>>
      %c0_i32_97 = arith.constant 0 : i32
      %259 = tpu.memref_slice %arg4[%1, %c25_i32_95, %c0_i32_97] : memref<2x32x256xf32, #tpu.memory_space<vmem>> -> memref<1x1x256xf32, #tpu.memory_space<vmem>>
      %260 = tpu.memref_squeeze %259 : memref<1x1x256xf32, #tpu.memory_space<vmem>> -> memref<256xf32, #tpu.memory_space<vmem>>
      %261 = tpu.memref_slice %arg5[%1] : memref<2x!tpu.dma_semaphore, #tpu.memory_space<semaphore_mem>> -> memref<1x!tpu.dma_semaphore, #tpu.memory_space<semaphore_mem>>
      %262 = tpu.memref_squeeze %261 : memref<1x!tpu.dma_semaphore, #tpu.memory_space<semaphore_mem>> -> memref<!tpu.dma_semaphore, #tpu.memory_space<semaphore_mem>>
      tpu.enqueue_dma source(%258 : memref<256xf32, #tpu.memory_space<any>>) target(%260 : memref<256xf32, #tpu.memory_space<vmem>>) target_semaphore(%262 : memref<!tpu.dma_semaphore, #tpu.memory_space<semaphore_mem>>)
      %c26_i32 = arith.constant 26 : i32
      %263 = arith.addi %28, %c26_i32 : i32
      %264 = arith.index_cast %263 : i32 to index
      %265 = memref.load %arg1[%264] : memref<128xi32, #tpu.memory_space<smem>>
      %c26_i32_98 = arith.constant 26 : i32
      %c0_i32_99 = arith.constant 0 : i32
      %266 = tpu.memref_slice %arg2[%265, %c0_i32_99] : memref<512x256xf32, #tpu.memory_space<any>> -> memref<1x256xf32, #tpu.memory_space<any>>
      %267 = tpu.memref_squeeze %266 : memref<1x256xf32, #tpu.memory_space<any>> -> memref<256xf32, #tpu.memory_space<any>>
      %c0_i32_100 = arith.constant 0 : i32
      %268 = tpu.memref_slice %arg4[%1, %c26_i32_98, %c0_i32_100] : memref<2x32x256xf32, #tpu.memory_space<vmem>> -> memref<1x1x256xf32, #tpu.memory_space<vmem>>
      %269 = tpu.memref_squeeze %268 : memref<1x1x256xf32, #tpu.memory_space<vmem>> -> memref<256xf32, #tpu.memory_space<vmem>>
      %270 = tpu.memref_slice %arg5[%1] : memref<2x!tpu.dma_semaphore, #tpu.memory_space<semaphore_mem>> -> memref<1x!tpu.dma_semaphore, #tpu.memory_space<semaphore_mem>>
      %271 = tpu.memref_squeeze %270 : memref<1x!tpu.dma_semaphore, #tpu.memory_space<semaphore_mem>> -> memref<!tpu.dma_semaphore, #tpu.memory_space<semaphore_mem>>
      tpu.enqueue_dma source(%267 : memref<256xf32, #tpu.memory_space<any>>) target(%269 : memref<256xf32, #tpu.memory_space<vmem>>) target_semaphore(%271 : memref<!tpu.dma_semaphore, #tpu.memory_space<semaphore_mem>>)
      %c27_i32 = arith.constant 27 : i32
      %272 = arith.addi %28, %c27_i32 : i32
      %273 = arith.index_cast %272 : i32 to index
      %274 = memref.load %arg1[%273] : memref<128xi32, #tpu.memory_space<smem>>
      %c27_i32_101 = arith.constant 27 : i32
      %c0_i32_102 = arith.constant 0 : i32
      %275 = tpu.memref_slice %arg2[%274, %c0_i32_102] : memref<512x256xf32, #tpu.memory_space<any>> -> memref<1x256xf32, #tpu.memory_space<any>>
      %276 = tpu.memref_squeeze %275 : memref<1x256xf32, #tpu.memory_space<any>> -> memref<256xf32, #tpu.memory_space<any>>
      %c0_i32_103 = arith.constant 0 : i32
      %277 = tpu.memref_slice %arg4[%1, %c27_i32_101, %c0_i32_103] : memref<2x32x256xf32, #tpu.memory_space<vmem>> -> memref<1x1x256xf32, #tpu.memory_space<vmem>>
      %278 = tpu.memref_squeeze %277 : memref<1x1x256xf32, #tpu.memory_space<vmem>> -> memref<256xf32, #tpu.memory_space<vmem>>
      %279 = tpu.memref_slice %arg5[%1] : memref<2x!tpu.dma_semaphore, #tpu.memory_space<semaphore_mem>> -> memref<1x!tpu.dma_semaphore, #tpu.memory_space<semaphore_mem>>
      %280 = tpu.memref_squeeze %279 : memref<1x!tpu.dma_semaphore, #tpu.memory_space<semaphore_mem>> -> memref<!tpu.dma_semaphore, #tpu.memory_space<semaphore_mem>>
      tpu.enqueue_dma source(%276 : memref<256xf32, #tpu.memory_space<any>>) target(%278 : memref<256xf32, #tpu.memory_space<vmem>>) target_semaphore(%280 : memref<!tpu.dma_semaphore, #tpu.memory_space<semaphore_mem>>)
      %c28_i32 = arith.constant 28 : i32
      %281 = arith.addi %28, %c28_i32 : i32
      %282 = arith.index_cast %281 : i32 to index
      %283 = memref.load %arg1[%282] : memref<128xi32, #tpu.memory_space<smem>>
      %c28_i32_104 = arith.constant 28 : i32
      %c0_i32_105 = arith.constant 0 : i32
      %284 = tpu.memref_slice %arg2[%283, %c0_i32_105] : memref<512x256xf32, #tpu.memory_space<any>> -> memref<1x256xf32, #tpu.memory_space<any>>
      %285 = tpu.memref_squeeze %284 : memref<1x256xf32, #tpu.memory_space<any>> -> memref<256xf32, #tpu.memory_space<any>>
      %c0_i32_106 = arith.constant 0 : i32
      %286 = tpu.memref_slice %arg4[%1, %c28_i32_104, %c0_i32_106] : memref<2x32x256xf32, #tpu.memory_space<vmem>> -> memref<1x1x256xf32, #tpu.memory_space<vmem>>
      %287 = tpu.memref_squeeze %286 : memref<1x1x256xf32, #tpu.memory_space<vmem>> -> memref<256xf32, #tpu.memory_space<vmem>>
      %288 = tpu.memref_slice %arg5[%1] : memref<2x!tpu.dma_semaphore, #tpu.memory_space<semaphore_mem>> -> memref<1x!tpu.dma_semaphore, #tpu.memory_space<semaphore_mem>>
      %289 = tpu.memref_squeeze %288 : memref<1x!tpu.dma_semaphore, #tpu.memory_space<semaphore_mem>> -> memref<!tpu.dma_semaphore, #tpu.memory_space<semaphore_mem>>
      tpu.enqueue_dma source(%285 : memref<256xf32, #tpu.memory_space<any>>) target(%287 : memref<256xf32, #tpu.memory_space<vmem>>) target_semaphore(%289 : memref<!tpu.dma_semaphore, #tpu.memory_space<semaphore_mem>>)
      %c29_i32 = arith.constant 29 : i32
      %290 = arith.addi %28, %c29_i32 : i32
      %291 = arith.index_cast %290 : i32 to index
      %292 = memref.load %arg1[%291] : memref<128xi32, #tpu.memory_space<smem>>
      %c29_i32_107 = arith.constant 29 : i32
      %c0_i32_108 = arith.constant 0 : i32
      %293 = tpu.memref_slice %arg2[%292, %c0_i32_108] : memref<512x256xf32, #tpu.memory_space<any>> -> memref<1x256xf32, #tpu.memory_space<any>>
      %294 = tpu.memref_squeeze %293 : memref<1x256xf32, #tpu.memory_space<any>> -> memref<256xf32, #tpu.memory_space<any>>
      %c0_i32_109 = arith.constant 0 : i32
      %295 = tpu.memref_slice %arg4[%1, %c29_i32_107, %c0_i32_109] : memref<2x32x256xf32, #tpu.memory_space<vmem>> -> memref<1x1x256xf32, #tpu.memory_space<vmem>>
      %296 = tpu.memref_squeeze %295 : memref<1x1x256xf32, #tpu.memory_space<vmem>> -> memref<256xf32, #tpu.memory_space<vmem>>
      %297 = tpu.memref_slice %arg5[%1] : memref<2x!tpu.dma_semaphore, #tpu.memory_space<semaphore_mem>> -> memref<1x!tpu.dma_semaphore, #tpu.memory_space<semaphore_mem>>
      %298 = tpu.memref_squeeze %297 : memref<1x!tpu.dma_semaphore, #tpu.memory_space<semaphore_mem>> -> memref<!tpu.dma_semaphore, #tpu.memory_space<semaphore_mem>>
      tpu.enqueue_dma source(%294 : memref<256xf32, #tpu.memory_space<any>>) target(%296 : memref<256xf32, #tpu.memory_space<vmem>>) target_semaphore(%298 : memref<!tpu.dma_semaphore, #tpu.memory_space<semaphore_mem>>)
      %c30_i32 = arith.constant 30 : i32
      %299 = arith.addi %28, %c30_i32 : i32
      %300 = arith.index_cast %299 : i32 to index
      %301 = memref.load %arg1[%300] : memref<128xi32, #tpu.memory_space<smem>>
      %c30_i32_110 = arith.constant 30 : i32
      %c0_i32_111 = arith.constant 0 : i32
      %302 = tpu.memref_slice %arg2[%301, %c0_i32_111] : memref<512x256xf32, #tpu.memory_space<any>> -> memref<1x256xf32, #tpu.memory_space<any>>
      %303 = tpu.memref_squeeze %302 : memref<1x256xf32, #tpu.memory_space<any>> -> memref<256xf32, #tpu.memory_space<any>>
      %c0_i32_112 = arith.constant 0 : i32
      %304 = tpu.memref_slice %arg4[%1, %c30_i32_110, %c0_i32_112] : memref<2x32x256xf32, #tpu.memory_space<vmem>> -> memref<1x1x256xf32, #tpu.memory_space<vmem>>
      %305 = tpu.memref_squeeze %304 : memref<1x1x256xf32, #tpu.memory_space<vmem>> -> memref<256xf32, #tpu.memory_space<vmem>>
      %306 = tpu.memref_slice %arg5[%1] : memref<2x!tpu.dma_semaphore, #tpu.memory_space<semaphore_mem>> -> memref<1x!tpu.dma_semaphore, #tpu.memory_space<semaphore_mem>>
      %307 = tpu.memref_squeeze %306 : memref<1x!tpu.dma_semaphore, #tpu.memory_space<semaphore_mem>> -> memref<!tpu.dma_semaphore, #tpu.memory_space<semaphore_mem>>
      tpu.enqueue_dma source(%303 : memref<256xf32, #tpu.memory_space<any>>) target(%305 : memref<256xf32, #tpu.memory_space<vmem>>) target_semaphore(%307 : memref<!tpu.dma_semaphore, #tpu.memory_space<semaphore_mem>>)
      %c31_i32 = arith.constant 31 : i32
      %308 = arith.addi %28, %c31_i32 : i32
      %309 = arith.index_cast %308 : i32 to index
      %310 = memref.load %arg1[%309] : memref<128xi32, #tpu.memory_space<smem>>
      %c31_i32_113 = arith.constant 31 : i32
      %c0_i32_114 = arith.constant 0 : i32
      %311 = tpu.memref_slice %arg2[%310, %c0_i32_114] : memref<512x256xf32, #tpu.memory_space<any>> -> memref<1x256xf32, #tpu.memory_space<any>>
      %312 = tpu.memref_squeeze %311 : memref<1x256xf32, #tpu.memory_space<any>> -> memref<256xf32, #tpu.memory_space<any>>
      %c0_i32_115 = arith.constant 0 : i32
      %313 = tpu.memref_slice %arg4[%1, %c31_i32_113, %c0_i32_115] : memref<2x32x256xf32, #tpu.memory_space<vmem>> -> memref<1x1x256xf32, #tpu.memory_space<vmem>>
      %314 = tpu.memref_squeeze %313 : memref<1x1x256xf32, #tpu.memory_space<vmem>> -> memref<256xf32, #tpu.memory_space<vmem>>
      %315 = tpu.memref_slice %arg5[%1] : memref<2x!tpu.dma_semaphore, #tpu.memory_space<semaphore_mem>> -> memref<1x!tpu.dma_semaphore, #tpu.memory_space<semaphore_mem>>
      %316 = tpu.memref_squeeze %315 : memref<1x!tpu.dma_semaphore, #tpu.memory_space<semaphore_mem>> -> memref<!tpu.dma_semaphore, #tpu.memory_space<semaphore_mem>>
      tpu.enqueue_dma source(%312 : memref<256xf32, #tpu.memory_space<any>>) target(%314 : memref<256xf32, #tpu.memory_space<vmem>>) target_semaphore(%316 : memref<!tpu.dma_semaphore, #tpu.memory_space<semaphore_mem>>)
    } else {
    }
    %c0_i32_6 = arith.constant 0 : i32
    %c0_i32_7 = arith.constant 0 : i32
    %12 = tpu.memref_slice %arg3[%c0_i32_6, %c0_i32_7] : memref<128x256xf32, #tpu.memory_space<any>> -> memref<32x256xf32, #tpu.memory_space<any>>
    %c0_i32_8 = arith.constant 0 : i32
    %c0_i32_9 = arith.constant 0 : i32
    %13 = tpu.memref_slice %arg4[%0, %c0_i32_8, %c0_i32_9] : memref<2x32x256xf32, #tpu.memory_space<vmem>> -> memref<1x32x256xf32, #tpu.memory_space<vmem>>
    %14 = tpu.memref_squeeze %13 : memref<1x32x256xf32, #tpu.memory_space<vmem>> -> memref<32x256xf32, #tpu.memory_space<vmem>>
    %15 = tpu.memref_slice %arg5[%0] : memref<2x!tpu.dma_semaphore, #tpu.memory_space<semaphore_mem>> -> memref<1x!tpu.dma_semaphore, #tpu.memory_space<semaphore_mem>>
    %16 = tpu.memref_squeeze %15 : memref<1x!tpu.dma_semaphore, #tpu.memory_space<semaphore_mem>> -> memref<!tpu.dma_semaphore, #tpu.memory_space<semaphore_mem>>
    tpu.wait_dma2 semaphore(%16 : memref<!tpu.dma_semaphore, #tpu.memory_space<semaphore_mem>>) src(%12 : memref<32x256xf32, #tpu.memory_space<any>>) dst(%14 : memref<32x256xf32, #tpu.memory_space<vmem>>)
    %c32_i32 = arith.constant 32 : i32
    %17 = arith.muli %arg0, %c32_i32 : i32
    %18 = tpu.assume_multiple %17, 32 : i32
    %c0_i32_10 = arith.constant 0 : i32
    %c0_i32_11 = arith.constant 0 : i32
    %19 = tpu.memref_slice %arg4[%0, %c0_i32_10, %c0_i32_11] : memref<2x32x256xf32, #tpu.memory_space<vmem>> -> memref<1x32x256xf32, #tpu.memory_space<vmem>>
    %20 = tpu.memref_squeeze %19 : memref<1x32x256xf32, #tpu.memory_space<vmem>> -> memref<32x256xf32, #tpu.memory_space<vmem>>
    %c0_i32_12 = arith.constant 0 : i32
    %21 = tpu.memref_slice %arg3[%18, %c0_i32_12] : memref<128x256xf32, #tpu.memory_space<any>> -> memref<32x256xf32, #tpu.memory_space<any>>
    %22 = tpu.memref_slice %arg6[%0] : memref<2x!tpu.dma_semaphore, #tpu.memory_space<semaphore_mem>> -> memref<1x!tpu.dma_semaphore, #tpu.memory_space<semaphore_mem>>
    %23 = tpu.memref_squeeze %22 : memref<1x!tpu.dma_semaphore, #tpu.memory_space<semaphore_mem>> -> memref<!tpu.dma_semaphore, #tpu.memory_space<semaphore_mem>>
    tpu.enqueue_dma source(%20 : memref<32x256xf32, #tpu.memory_space<vmem>>) target(%21 : memref<32x256xf32, #tpu.memory_space<any>>) target_semaphore(%23 : memref<!tpu.dma_semaphore, #tpu.memory_space<semaphore_mem>>)
    %c3_i32 = arith.constant 3 : i32
    %24 = arith.cmpi eq, %arg0, %c3_i32 : i32
    %25 = arith.extui %24 : i1 to i32
    %c0_i32_13 = arith.constant 0 : i32
    %26 = arith.cmpi ne, %25, %c0_i32_13 : i32
    scf.if %26 {
      %c0_i32_14 = arith.constant 0 : i32
      %c0_i32_15 = arith.constant 0 : i32
      %27 = tpu.memref_slice %arg4[%0, %c0_i32_14, %c0_i32_15] : memref<2x32x256xf32, #tpu.memory_space<vmem>> -> memref<1x32x256xf32, #tpu.memory_space<vmem>>
      %28 = tpu.memref_squeeze %27 : memref<1x32x256xf32, #tpu.memory_space<vmem>> -> memref<32x256xf32, #tpu.memory_space<vmem>>
      %c0_i32_16 = arith.constant 0 : i32
      %29 = tpu.memref_slice %arg3[%18, %c0_i32_16] : memref<128x256xf32, #tpu.memory_space<any>> -> memref<32x256xf32, #tpu.memory_space<any>>
      %30 = tpu.memref_slice %arg6[%0] : memref<2x!tpu.dma_semaphore, #tpu.memory_space<semaphore_mem>> -> memref<1x!tpu.dma_semaphore, #tpu.memory_space<semaphore_mem>>
      %31 = tpu.memref_squeeze %30 : memref<1x!tpu.dma_semaphore, #tpu.memory_space<semaphore_mem>> -> memref<!tpu.dma_semaphore, #tpu.memory_space<semaphore_mem>>
      tpu.wait_dma2 semaphore(%31 : memref<!tpu.dma_semaphore, #tpu.memory_space<semaphore_mem>>) src(%28 : memref<32x256xf32, #tpu.memory_space<vmem>>) dst(%29 : memref<32x256xf32, #tpu.memory_space<any>>)
    } else {
    }
    return
  }
}

</mosaic_0001>

<llo_original>
// kernel: tpu_custom_call.1
$region0: #{tpu_custom_call.1}
  #allocation0 [shape = 'u32[]', space=smem, size = 0x4, offset = 0x4, fixed_abs, tag = 'smem constant byte address 0x4 - core index']
  #allocation1 [shape = 'u32[72,128]{1,0:T(1,128)}', space=vmem, size = 0x9000, scoped, tag = 'internal scratch']
  #allocation2 [shape = 'f32[2,32,256]{2,1,0:T(8,128)}', space=vmem, size = 0x10000, scoped, tag = 'scratch operand']
  #allocation3 [shape = 's32[2]{0}', space=sflag, size = 0x8, scoped, tag = 'scratch operand']
  #allocation4 [shape = 's32[2]{0}', space=sflag, size = 0x8, scoped, tag = 'scratch operand']
  #allocation5 [shape = 's32[1]{0}', space=sflag, size = 0x4, scoped, tag = 'scoped memory for tpu_custom_call.1']
  #allocation6 [shape = 'u8[512]{0}', space=smem, size = 0x200, scoped, tag = 'prefetched SMEM operand 0']
  #allocation7 [shape = 's32[]', space=sflag, size = 0x4, offset = 0, fixed_abs, tag = 'sflag constant byte address 0x0 - dummy sync flag']
  #allocation8 [shape = 's32[]', space=sflag, size = 0x4, offset = 0, fixed_abs, tag = 'sflag constant byte address 0x0 - dummy sync flag']
  #allocation9 [shape = 's32[]', space=sflag, size = 0x4, offset = 0, fixed_abs, tag = 'sflag constant byte address 0x0 - dummy sync flag']
  #allocation10 [shape = 's32[]', space=sflag, size = 0x4, offset = 0, fixed_abs, tag = 'sflag constant byte address 0x0 - dummy sync flag']
  #allocation11 [shape = 's32[]', space=sflag, size = 0x4, offset = 0, fixed_abs, tag = 'sflag constant byte address 0x0 - dummy sync flag']
  #allocation12 [shape = 's32[]', space=sflag, size = 0x4, offset = 0, fixed_abs, tag = 'sflag constant byte address 0x0 - dummy sync flag']
  #allocation13 [shape = 's32[]', space=sflag, size = 0x4, offset = 0, fixed_abs, tag = 'sflag constant byte address 0x0 - dummy sync flag']
  #allocation14 [shape = 's32[]', space=sflag, size = 0x4, offset = 0, fixed_abs, tag = 'sflag constant byte address 0x0 - dummy sync flag']
  #allocation15 [shape = 's32[]', space=sflag, size = 0x4, offset = 0, fixed_abs, tag = 'sflag constant byte address 0x0 - dummy sync flag']
  #allocation16 [shape = 's32[]', space=sflag, size = 0x4, offset = 0, fixed_abs, tag = 'sflag constant byte address 0x0 - dummy sync flag']
  #allocation17 [shape = 's32[]', space=sflag, size = 0x4, offset = 0, fixed_abs, tag = 'sflag constant byte address 0x0 - dummy sync flag']
  #allocation18 [shape = 's32[]', space=sflag, size = 0x4, offset = 0, fixed_abs, tag = 'sflag constant byte address 0x0 - dummy sync flag']
  #allocation19 [shape = 's32[]', space=sflag, size = 0x4, offset = 0, fixed_abs, tag = 'sflag constant byte address 0x0 - dummy sync flag']
  #allocation20 [shape = 's32[]', space=sflag, size = 0x4, offset = 0, fixed_abs, tag = 'sflag constant byte address 0x0 - dummy sync flag']
  #allocation21 [shape = 's32[]', space=sflag, size = 0x4, offset = 0, fixed_abs, tag = 'sflag constant byte address 0x0 - dummy sync flag']
  #allocation22 [shape = 's32[]', space=sflag, size = 0x4, offset = 0, fixed_abs, tag = 'sflag constant byte address 0x0 - dummy sync flag']
  #allocation23 [shape = 's32[]', space=sflag, size = 0x4, offset = 0, fixed_abs, tag = 'sflag constant byte address 0x0 - dummy sync flag']
  #allocation24 [shape = 's32[]', space=sflag, size = 0x4, offset = 0, fixed_abs, tag = 'sflag constant byte address 0x0 - dummy sync flag']
  #allocation25 [shape = 's32[]', space=sflag, size = 0x4, offset = 0, fixed_abs, tag = 'sflag constant byte address 0x0 - dummy sync flag']
  #allocation26 [shape = 's32[]', space=sflag, size = 0x4, offset = 0, fixed_abs, tag = 'sflag constant byte address 0x0 - dummy sync flag']
  #allocation27 [shape = 's32[]', space=sflag, size = 0x4, offset = 0, fixed_abs, tag = 'sflag constant byte address 0x0 - dummy sync flag']
  #allocation28 [shape = 's32[]', space=sflag, size = 0x4, offset = 0, fixed_abs, tag = 'sflag constant byte address 0x0 - dummy sync flag']
  #allocation29 [shape = 's32[]', space=sflag, size = 0x4, offset = 0, fixed_abs, tag = 'sflag constant byte address 0x0 - dummy sync flag']
  #allocation30 [shape = 's32[]', space=sflag, size = 0x4, offset = 0, fixed_abs, tag = 'sflag constant byte address 0x0 - dummy sync flag']
  #allocation31 [shape = 's32[]', space=sflag, size = 0x4, offset = 0, fixed_abs, tag = 'sflag constant byte address 0x0 - dummy sync flag']
  #allocation32 [shape = 's32[]', space=sflag, size = 0x4, offset = 0, fixed_abs, tag = 'sflag constant byte address 0x0 - dummy sync flag']
  #allocation33 [shape = 's32[]', space=sflag, size = 0x4, offset = 0, fixed_abs, tag = 'sflag constant byte address 0x0 - dummy sync flag']
  #allocation34 [shape = 's32[]', space=sflag, size = 0x4, offset = 0, fixed_abs, tag = 'sflag constant byte address 0x0 - dummy sync flag']
  #allocation35 [shape = 's32[]', space=sflag, size = 0x4, offset = 0, fixed_abs, tag = 'sflag constant byte address 0x0 - dummy sync flag']
  #allocation36 [shape = 's32[]', space=sflag, size = 0x4, offset = 0, fixed_abs, tag = 'sflag constant byte address 0x0 - dummy sync flag']
  #allocation37 [shape = 's32[]', space=sflag, size = 0x4, offset = 0, fixed_abs, tag = 'sflag constant byte address 0x0 - dummy sync flag']
  #allocation38 [shape = 's32[]', space=sflag, size = 0x4, offset = 0, fixed_abs, tag = 'sflag constant byte address 0x0 - dummy sync flag']
  #allocation39 [shape = 's32[]', space=sflag, size = 0x4, offset = 0, fixed_abs, tag = 'sflag constant byte address 0x0 - dummy sync flag']
  #allocation40 [shape = 's32[]', space=sflag, size = 0x4, offset = 0, fixed_abs, tag = 'sflag constant byte address 0x0 - dummy sync flag']
  #allocation41 [shape = 's32[]', space=sflag, size = 0x4, offset = 0, fixed_abs, tag = 'sflag constant byte address 0x0 - dummy sync flag']
  #allocation42 [shape = 's32[]', space=sflag, size = 0x4, offset = 0, fixed_abs, tag = 'sflag constant byte address 0x0 - dummy sync flag']
  #allocation43 [shape = 's32[]', space=sflag, size = 0x4, offset = 0, fixed_abs, tag = 'sflag constant byte address 0x0 - dummy sync flag']
  #allocation44 [shape = 's32[]', space=sflag, size = 0x4, offset = 0, fixed_abs, tag = 'sflag constant byte address 0x0 - dummy sync flag']
  #allocation45 [shape = 's32[]', space=sflag, size = 0x4, offset = 0, fixed_abs, tag = 'sflag constant byte address 0x0 - dummy sync flag']
  #allocation46 [shape = 's32[]', space=sflag, size = 0x4, offset = 0, fixed_abs, tag = 'sflag constant byte address 0x0 - dummy sync flag']
  #allocation47 [shape = 's32[]', space=sflag, size = 0x4, offset = 0, fixed_abs, tag = 'sflag constant byte address 0x0 - dummy sync flag']
  #allocation48 [shape = 's32[]', space=sflag, size = 0x4, offset = 0, fixed_abs, tag = 'sflag constant byte address 0x0 - dummy sync flag']
  #allocation49 [shape = 's32[]', space=sflag, size = 0x4, offset = 0, fixed_abs, tag = 'sflag constant byte address 0x0 - dummy sync flag']
  #allocation50 [shape = 's32[]', space=sflag, size = 0x4, offset = 0, fixed_abs, tag = 'sflag constant byte address 0x0 - dummy sync flag']
  #allocation51 [shape = 's32[]', space=sflag, size = 0x4, offset = 0, fixed_abs, tag = 'sflag constant byte address 0x0 - dummy sync flag']
  #allocation52 [shape = 's32[]', space=sflag, size = 0x4, offset = 0, fixed_abs, tag = 'sflag constant byte address 0x0 - dummy sync flag']
  #allocation53 [shape = 's32[]', space=sflag, size = 0x4, offset = 0, fixed_abs, tag = 'sflag constant byte address 0x0 - dummy sync flag']
  #allocation54 [shape = 's32[]', space=sflag, size = 0x4, offset = 0, fixed_abs, tag = 'sflag constant byte address 0x0 - dummy sync flag']
  #allocation55 [shape = 's32[]', space=sflag, size = 0x4, offset = 0, fixed_abs, tag = 'sflag constant byte address 0x0 - dummy sync flag']
  #allocation56 [shape = 's32[]', space=sflag, size = 0x4, offset = 0, fixed_abs, tag = 'sflag constant byte address 0x0 - dummy sync flag']
  #allocation57 [shape = 's32[]', space=sflag, size = 0x4, offset = 0, fixed_abs, tag = 'sflag constant byte address 0x0 - dummy sync flag']
  #allocation58 [shape = 's32[]', space=sflag, size = 0x4, offset = 0, fixed_abs, tag = 'sflag constant byte address 0x0 - dummy sync flag']
  #allocation59 [shape = 's32[]', space=sflag, size = 0x4, offset = 0, fixed_abs, tag = 'sflag constant byte address 0x0 - dummy sync flag']
  #allocation60 [shape = 's32[]', space=sflag, size = 0x4, offset = 0, fixed_abs, tag = 'sflag constant byte address 0x0 - dummy sync flag']
  #allocation61 [shape = 's32[]', space=sflag, size = 0x4, offset = 0, fixed_abs, tag = 'sflag constant byte address 0x0 - dummy sync flag']
  #allocation62 [shape = 's32[]', space=sflag, size = 0x4, offset = 0, fixed_abs, tag = 'sflag constant byte address 0x0 - dummy sync flag']
  #allocation63 [shape = 's32[]', space=sflag, size = 0x4, offset = 0, fixed_abs, tag = 'sflag constant byte address 0x0 - dummy sync flag']
  #allocation64 [shape = 's32[]', space=sflag, size = 0x4, offset = 0, fixed_abs, tag = 'sflag constant byte address 0x0 - dummy sync flag']
  #allocation65 [shape = 's32[]', space=sflag, size = 0x4, offset = 0, fixed_abs, tag = 'sflag constant byte address 0x0 - dummy sync flag']
  #allocation66 [shape = 's32[]', space=sflag, size = 0x4, offset = 0, fixed_abs, tag = 'sflag constant byte address 0x0 - dummy sync flag']
  #allocation67 [shape = 's32[]', space=sflag, size = 0x4, offset = 0, fixed_abs, tag = 'sflag constant byte address 0x0 - dummy sync flag']
  #allocation68 [shape = 's32[]', space=sflag, size = 0x4, offset = 0, fixed_abs, tag = 'sflag constant byte address 0x0 - dummy sync flag']
  #allocation69 [shape = 's32[]', space=sflag, size = 0x4, offset = 0, fixed_abs, tag = 'sflag constant byte address 0x0 - dummy sync flag']
  #allocation70 [shape = 's32[]', space=sflag, size = 0x4, offset = 0, fixed_abs, tag = 'sflag constant byte address 0x0 - dummy sync flag']
  #allocation71 [shape = 's32[]', space=sflag, size = 0x4, offset = 0, fixed_abs, tag = 'sflag constant byte address 0x0 - dummy sync flag']
  #allocation72 [shape = 's32[]', space=sflag, size = 0x4, offset = 0, fixed_abs, tag = 'sflag constant byte address 0x0 - dummy sync flag']
  #allocation73 [shape = 'u32[]', space=smem, size = 0x4, offset = 0x44, fixed_abs, tag = 'smem constant byte address 0x44 - assertion arg 0']
  #allocation74 [shape = 'u32[]', space=smem, size = 0x4, offset = 0x48, fixed_abs, tag = 'smem constant byte address 0x48 - assertion arg 1']
  %s0 = inlined_call_operand.hbm [shape: s32[128], index: 0, kind: input, shape index: {}]
  %s1 = inlined_call_operand.hbm [shape: f32[512,256], index: 1, kind: input, shape index: {}]
  %s2 = inlined_call_operand.hbm [shape: f32[128,256], index: 2, kind: output, shape index: {}]
  %s3 = sld [smem:[#allocation0]]
  $region29: #{tpu_custom_call.1} parent=0
    _
  %s5 = ssub.s32 1, %s3
  %s6 = scalar_select 0, %s5, %s3
  %s8 = sshll.u32 %s0, 4
  %s9 = int_to_ptr.hbm [resolvable:$true] %s8
  %11 = dma.hbm_to_smem %s9, 16, [#allocation6], [#allocation5]
  %13 = dma.done [#allocation5], 16
  %14 = sfence
  loop: start=0, step=1, limit=4
  $region2: #{tpu_custom_call.1} parent=0 // loop_pre_header
    _
  $region3: #{tpu_custom_call.1} parent=0 // loop_header
    %s16 = sphi 0, %s20
    %p17 = scmp.ge.s32.totalorder %s16, 4
  $region4: #{tpu_custom_call.1} parent=0 // loop_header_branch
    %19 = sbr.rel (%p17) target = $region8
  $region5: #{tpu_custom_call.1} parent=0 // loop_body
    %s21 = sadd.s32 %s16, 1
    %s22 = sand.u32 %s16, 1
    %s23 = ssub.s32 1, %s22
    %p24 = scmp.eq.s32.totalorder %s16, 0
    // Predicated region
    $region9: #{tpu_custom_call.1} parent=5 // pred_check
      %p25 = pneg %p24
    $region10: #{tpu_custom_call.1} parent=5 // pred_check_branch
      %27 = sbr.rel (%p25) target = $region12
    $region11: #{tpu_custom_call.1} parent=5 // pred_region
      %s28 = sld [smem:[#allocation6]]
      %s29 = sshrl.u32 %s28, 3
      %s30 = sand.u32 %s28, 7
      %s31 = smul.u32 %s29, 16
      %s32 = sadd.s32 %s30, %s31
      %s33 = scalar_lea.hbm %s1, %s32
      %s34 = sshll.u32 %s33, 4
      %s35 = int_to_ptr.hbm [resolvable:$true] %s34
      %s36 = sshll.u32 [#allocation2], 4
      %s37 = int_to_ptr.vmem [resolvable:$true] %s36
      %41 = dma.hbm_to_vmem [thread:$0]  %s35, 32, %s37, [#allocation3], 128, 128, 1
      %s42 = sld [smem:[#allocation6 + $0x1]]
      %s43 = sshrl.u32 %s42, 3
      %s44 = sand.u32 %s42, 7
      %s45 = smul.u32 %s43, 16
      %s46 = sadd.s32 %s44, %s45
      %s47 = scalar_lea.hbm %s1, %s46
      %s48 = scalar_lea.vmem [#allocation2], 1
      %s49 = sshll.u32 %s47, 4
      %s50 = int_to_ptr.hbm [resolvable:$true] %s49
      %s51 = sshll.u32 %s48, 4
      %s52 = int_to_ptr.vmem [resolvable:$true] %s51
      %56 = dma.hbm_to_vmem [thread:$0]  %s50, 32, %s52, [#allocation3], 128, 128, 1
      %s57 = sld [smem:[#allocation6 + $0x2]]
      %s58 = sshrl.u32 %s57, 3
      %s59 = sand.u32 %s57, 7
      %s60 = smul.u32 %s58, 16
      %s61 = sadd.s32 %s59, %s60
      %s62 = scalar_lea.hbm %s1, %s61
      %s63 = scalar_lea.vmem [#allocation2], 2
      %s64 = sshll.u32 %s62, 4
      %s65 = int_to_ptr.hbm [resolvable:$true] %s64
      %s66 = sshll.u32 %s63, 4
      %s67 = int_to_ptr.vmem [resolvable:$true] %s66
      %71 = dma.hbm_to_vmem [thread:$0]  %s65, 32, %s67, [#allocation3], 128, 128, 1
      %s72 = sld [smem:[#allocation6 + $0x3]]
      %s73 = sshrl.u32 %s72, 3
      %s74 = sand.u32 %s72, 7
      %s75 = smul.u32 %s73, 16
      %s76 = sadd.s32 %s74, %s75
      %s77 = scalar_lea.hbm %s1, %s76
      %s78 = scalar_lea.vmem [#allocation2], 3
      %s79 = sshll.u32 %s77, 4
      %s80 = int_to_ptr.hbm [resolvable:$true] %s79
      %s81 = sshll.u32 %s78, 4
      %s82 = int_to_ptr.vmem [resolvable:$true] %s81
      %86 = dma.hbm_to_vmem [thread:$0]  %s80, 32, %s82, [#allocation3], 128, 128, 1
      %s87 = sld [smem:[#allocation6 + $0x4]]
      %s88 = sshrl.u32 %s87, 3
      %s89 = sand.u32 %s87, 7
      %s90 = smul.u32 %s88, 16
      %s91 = sadd.s32 %s89, %s90
      %s92 = scalar_lea.hbm %s1, %s91
      %s93 = scalar_lea.vmem [#allocation2], 4
      %s94 = sshll.u32 %s92, 4
      %s95 = int_to_ptr.hbm [resolvable:$true] %s94
      %s96 = sshll.u32 %s93, 4
      %s97 = int_to_ptr.vmem [resolvable:$true] %s96
      %101 = dma.hbm_to_vmem [thread:$0]  %s95, 32, %s97, [#allocation3], 128, 128, 1
      %s102 = sld [smem:[#allocation6 + $0x5]]
      %s103 = sshrl.u32 %s102, 3
      %s104 = sand.u32 %s102, 7
      %s105 = smul.u32 %s103, 16
      %s106 = sadd.s32 %s104, %s105
      %s107 = scalar_lea.hbm %s1, %s106
      %s108 = scalar_lea.vmem [#allocation2], 5
      %s109 = sshll.u32 %s107, 4
      %s110 = int_to_ptr.hbm [resolvable:$true] %s109
      %s111 = sshll.u32 %s108, 4
      %s112 = int_to_ptr.vmem [resolvable:$true] %s111
      %116 = dma.hbm_to_vmem [thread:$0]  %s110, 32, %s112, [#allocation3], 128, 128, 1
      %s117 = sld [smem:[#allocation6 + $0x6]]
      %s118 = sshrl.u32 %s117, 3
      %s119 = sand.u32 %s117, 7
      %s120 = smul.u32 %s118, 16
      %s121 = sadd.s32 %s119, %s120
      %s122 = scalar_lea.hbm %s1, %s121
      %s123 = scalar_lea.vmem [#allocation2], 6
      %s124 = sshll.u32 %s122, 4
      %s125 = int_to_ptr.hbm [resolvable:$true] %s124
      %s126 = sshll.u32 %s123, 4
      %s127 = int_to_ptr.vmem [resolvable:$true] %s126
      %131 = dma.hbm_to_vmem [thread:$0]  %s125, 32, %s127, [#allocation3], 128, 128, 1
      %s132 = sld [smem:[#allocation6 + $0x7]]
      %s133 = sshrl.u32 %s132, 3
      %s134 = sand.u32 %s132, 7
      %s135 = smul.u32 %s133, 16
      %s136 = sadd.s32 %s134, %s135
      %s137 = scalar_lea.hbm %s1, %s136
      %s138 = scalar_lea.vmem [#allocation2], 7
      %s139 = sshll.u32 %s137, 4
      %s140 = int_to_ptr.hbm [resolvable:$true] %s139
      %s141 = sshll.u32 %s138, 4
      %s142 = int_to_ptr.vmem [resolvable:$true] %s141
      %146 = dma.hbm_to_vmem [thread:$0]  %s140, 32, %s142, [#allocation3], 128, 128, 1
      %s147 = sld [smem:[#allocation6 + $0x8]]
      %s148 = sshrl.u32 %s147, 3
      %s149 = sand.u32 %s147, 7
      %s150 = smul.u32 %s148, 16
      %s151 = sadd.s32 %s149, %s150
      %s152 = scalar_lea.hbm %s1, %s151
      %s153 = scalar_lea.vmem [#allocation2], 16
      %s154 = sshll.u32 %s152, 4
      %s155 = int_to_ptr.hbm [resolvable:$true] %s154
      %s156 = sshll.u32 %s153, 4
      %s157 = int_to_ptr.vmem [resolvable:$true] %s156
      %161 = dma.hbm_to_vmem [thread:$0]  %s155, 32, %s157, [#allocation3], 128, 128, 1
      %s162 = sld [smem:[#allocation6 + $0x9]]
      %s163 = sshrl.u32 %s162, 3
      %s164 = sand.u32 %s162, 7
      %s165 = smul.u32 %s163, 16
      %s166 = sadd.s32 %s164, %s165
      %s167 = scalar_lea.hbm %s1, %s166
      %s168 = scalar_lea.vmem [#allocation2], 17
      %s169 = sshll.u32 %s167, 4
      %s170 = int_to_ptr.hbm [resolvable:$true] %s169
      %s171 = sshll.u32 %s168, 4
      %s172 = int_to_ptr.vmem [resolvable:$true] %s171
      %176 = dma.hbm_to_vmem [thread:$0]  %s170, 32, %s172, [#allocation3], 128, 128, 1
      %s177 = sld [smem:[#allocation6 + $0xa]]
      %s178 = sshrl.u32 %s177, 3
      %s179 = sand.u32 %s177, 7
      %s180 = smul.u32 %s178, 16
      %s181 = sadd.s32 %s179, %s180
      %s182 = scalar_lea.hbm %s1, %s181
      %s183 = scalar_lea.vmem [#allocation2], 18
      %s184 = sshll.u32 %s182, 4
      %s185 = int_to_ptr.hbm [resolvable:$true] %s184
      %s186 = sshll.u32 %s183, 4
      %s187 = int_to_ptr.vmem [resolvable:$true] %s186
      %191 = dma.hbm_to_vmem [thread:$0]  %s185, 32, %s187, [#allocation3], 128, 128, 1
      %s192 = sld [smem:[#allocation6 + $0xb]]
      %s193 = sshrl.u32 %s192, 3
      %s194 = sand.u32 %s192, 7
      %s195 = smul.u32 %s193, 16
      %s196 = sadd.s32 %s194, %s195
      %s197 = scalar_lea.hbm %s1, %s196
      %s198 = scalar_lea.vmem [#allocation2], 19
      %s199 = sshll.u32 %s197, 4
      %s200 = int_to_ptr.hbm [resolvable:$true] %s199
      %s201 = sshll.u32 %s198, 4
      %s202 = int_to_ptr.vmem [resolvable:$true] %s201
      %206 = dma.hbm_to_vmem [thread:$0]  %s200, 32, %s202, [#allocation3], 128, 128, 1
      %s207 = sld [smem:[#allocation6 + $0xc]]
      %s208 = sshrl.u32 %s207, 3
      %s209 = sand.u32 %s207, 7
      %s210 = smul.u32 %s208, 16
      %s211 = sadd.s32 %s209, %s210
      %s212 = scalar_lea.hbm %s1, %s211
      %s213 = scalar_lea.vmem [#allocation2], 20
      %s214 = sshll.u32 %s212, 4
      %s215 = int_to_ptr.hbm [resolvable:$true] %s214
      %s216 = sshll.u32 %s213, 4
      %s217 = int_to_ptr.vmem [resolvable:$true] %s216
      %221 = dma.hbm_to_vmem [thread:$0]  %s215, 32, %s217, [#allocation3], 128, 128, 1
      %s222 = sld [smem:[#allocation6 + $0xd]]
      %s223 = sshrl.u32 %s222, 3
      %s224 = sand.u32 %s222, 7
      %s225 = smul.u32 %s223, 16
      %s226 = sadd.s32 %s224, %s225
      %s227 = scalar_lea.hbm %s1, %s226
      %s228 = scalar_lea.vmem [#allocation2], 21
      %s229 = sshll.u32 %s227, 4
      %s230 = int_to_ptr.hbm [resolvable:$true] %s229
      %s231 = sshll.u32 %s228, 4
      %s232 = int_to_ptr.vmem [resolvable:$true] %s231
      %236 = dma.hbm_to_vmem [thread:$0]  %s230, 32, %s232, [#allocation3], 128, 128, 1
      %s237 = sld [smem:[#allocation6 + $0xe]]
      %s238 = sshrl.u32 %s237, 3
      %s239 = sand.u32 %s237, 7
      %s240 = smul.u32 %s238, 16
      %s241 = sadd.s32 %s239, %s240
      %s242 = scalar_lea.hbm %s1, %s241
      %s243 = scalar_lea.vmem [#allocation2], 22
      %s244 = sshll.u32 %s242, 4
      %s245 = int_to_ptr.hbm [resolvable:$true] %s244
      %s246 = sshll.u32 %s243, 4
      %s247 = int_to_ptr.vmem [resolvable:$true] %s246
      %251 = dma.hbm_to_vmem [thread:$0]  %s245, 32, %s247, [#allocation3], 128, 128, 1
      %s252 = sld [smem:[#allocation6 + $0xf]]
      %s253 = sshrl.u32 %s252, 3
      %s254 = sand.u32 %s252, 7
      %s255 = smul.u32 %s253, 16
      %s256 = sadd.s32 %s254, %s255
      %s257 = scalar_lea.hbm %s1, %s256
      %s258 = scalar_lea.vmem [#allocation2], 23
      %s259 = sshll.u32 %s257, 4
      %s260 = int_to_ptr.hbm [resolvable:$true] %s259
      %s261 = sshll.u32 %s258, 4
      %s262 = int_to_ptr.vmem [resolvable:$true] %s261
      %266 = dma.hbm_to_vmem [thread:$0]  %s260, 32, %s262, [#allocation3], 128, 128, 1
      %s267 = sld [smem:[#allocation6 + $0x10]]
      %s268 = sshrl.u32 %s267, 3
      %s269 = sand.u32 %s267, 7
      %s270 = smul.u32 %s268, 16
      %s271 = sadd.s32 %s269, %s270
      %s272 = scalar_lea.hbm %s1, %s271
      %s273 = scalar_lea.vmem [#allocation2], 32
      %s274 = sshll.u32 %s272, 4
      %s275 = int_to_ptr.hbm [resolvable:$true] %s274
      %s276 = sshll.u32 %s273, 4
      %s277 = int_to_ptr.vmem [resolvable:$true] %s276
      %281 = dma.hbm_to_vmem [thread:$0]  %s275, 32, %s277, [#allocation3], 128, 128, 1
      %s282 = sld [smem:[#allocation6 + $0x11]]
      %s283 = sshrl.u32 %s282, 3
      %s284 = sand.u32 %s282, 7
      %s285 = smul.u32 %s283, 16
      %s286 = sadd.s32 %s284, %s285
      %s287 = scalar_lea.hbm %s1, %s286
      %s288 = scalar_lea.vmem [#allocation2], 33
      %s289 = sshll.u32 %s287, 4
      %s290 = int_to_ptr.hbm [resolvable:$true] %s289
      %s291 = sshll.u32 %s288, 4
      %s292 = int_to_ptr.vmem [resolvable:$true] %s291
      %296 = dma.hbm_to_vmem [thread:$0]  %s290, 32, %s292, [#allocation3], 128, 128, 1
      %s297 = sld [smem:[#allocation6 + $0x12]]
      %s298 = sshrl.u32 %s297, 3
      %s299 = sand.u32 %s297, 7
      %s300 = smul.u32 %s298, 16
      %s301 = sadd.s32 %s299, %s300
      %s302 = scalar_lea.hbm %s1, %s301
      %s303 = scalar_lea.vmem [#allocation2], 34
      %s304 = sshll.u32 %s302, 4
      %s305 = int_to_ptr.hbm [resolvable:$true] %s304
      %s306 = sshll.u32 %s303, 4
      %s307 = int_to_ptr.vmem [resolvable:$true] %s306
      %311 = dma.hbm_to_vmem [thread:$0]  %s305, 32, %s307, [#allocation3], 128, 128, 1
      %s312 = sld [smem:[#allocation6 + $0x13]]
      %s313 = sshrl.u32 %s312, 3
      %s314 = sand.u32 %s312, 7
      %s315 = smul.u32 %s313, 16
      %s316 = sadd.s32 %s314, %s315
      %s317 = scalar_lea.hbm %s1, %s316
      %s318 = scalar_lea.vmem [#allocation2], 35
      %s319 = sshll.u32 %s317, 4
      %s320 = int_to_ptr.hbm [resolvable:$true] %s319
      %s321 = sshll.u32 %s318, 4
      %s322 = int_to_ptr.vmem [resolvable:$true] %s321
      %326 = dma.hbm_to_vmem [thread:$0]  %s320, 32, %s322, [#allocation3], 128, 128, 1
      %s327 = sld [smem:[#allocation6 + $0x14]]
      %s328 = sshrl.u32 %s327, 3
      %s329 = sand.u32 %s327, 7
      %s330 = smul.u32 %s328, 16
      %s331 = sadd.s32 %s329, %s330
      %s332 = scalar_lea.hbm %s1, %s331
      %s333 = scalar_lea.vmem [#allocation2], 36
      %s334 = sshll.u32 %s332, 4
      %s335 = int_to_ptr.hbm [resolvable:$true] %s334
      %s336 = sshll.u32 %s333, 4
      %s337 = int_to_ptr.vmem [resolvable:$true] %s336
      %341 = dma.hbm_to_vmem [thread:$0]  %s335, 32, %s337, [#allocation3], 128, 128, 1
      %s342 = sld [smem:[#allocation6 + $0x15]]
      %s343 = sshrl.u32 %s342, 3
      %s344 = sand.u32 %s342, 7
      %s345 = smul.u32 %s343, 16
      %s346 = sadd.s32 %s344, %s345
      %s347 = scalar_lea.hbm %s1, %s346
      %s348 = scalar_lea.vmem [#allocation2], 37
      %s349 = sshll.u32 %s347, 4
      %s350 = int_to_ptr.hbm [resolvable:$true] %s349
      %s351 = sshll.u32 %s348, 4
      %s352 = int_to_ptr.vmem [resolvable:$true] %s351
      %356 = dma.hbm_to_vmem [thread:$0]  %s350, 32, %s352, [#allocation3], 128, 128, 1
      %s357 = sld [smem:[#allocation6 + $0x16]]
      %s358 = sshrl.u32 %s357, 3
      %s359 = sand.u32 %s357, 7
      %s360 = smul.u32 %s358, 16
      %s361 = sadd.s32 %s359, %s360
      %s362 = scalar_lea.hbm %s1, %s361
      %s363 = scalar_lea.vmem [#allocation2], 38
      %s364 = sshll.u32 %s362, 4
      %s365 = int_to_ptr.hbm [resolvable:$true] %s364
      %s366 = sshll.u32 %s363, 4
      %s367 = int_to_ptr.vmem [resolvable:$true] %s366
      %371 = dma.hbm_to_vmem [thread:$0]  %s365, 32, %s367, [#allocation3], 128, 128, 1
      %s372 = sld [smem:[#allocation6 + $0x17]]
      %s373 = sshrl.u32 %s372, 3
      %s374 = sand.u32 %s372, 7
      %s375 = smul.u32 %s373, 16
      %s376 = sadd.s32 %s374, %s375
      %s377 = scalar_lea.hbm %s1, %s376
      %s378 = scalar_lea.vmem [#allocation2], 39
      %s379 = sshll.u32 %s377, 4
      %s380 = int_to_ptr.hbm [resolvable:$true] %s379
      %s381 = sshll.u32 %s378, 4
      %s382 = int_to_ptr.vmem [resolvable:$true] %s381
      %386 = dma.hbm_to_vmem [thread:$0]  %s380, 32, %s382, [#allocation3], 128, 128, 1
      %s387 = sld [smem:[#allocation6 + $0x18]]
      %s388 = sshrl.u32 %s387, 3
      %s389 = sand.u32 %s387, 7
      %s390 = smul.u32 %s388, 16
      %s391 = sadd.s32 %s389, %s390
      %s392 = scalar_lea.hbm %s1, %s391
      %s393 = scalar_lea.vmem [#allocation2], 48
      %s394 = sshll.u32 %s392, 4
      %s395 = int_to_ptr.hbm [resolvable:$true] %s394
      %s396 = sshll.u32 %s393, 4
      %s397 = int_to_ptr.vmem [resolvable:$true] %s396
      %401 = dma.hbm_to_vmem [thread:$0]  %s395, 32, %s397, [#allocation3], 128, 128, 1
      %s402 = sld [smem:[#allocation6 + $0x19]]
      %s403 = sshrl.u32 %s402, 3
      %s404 = sand.u32 %s402, 7
      %s405 = smul.u32 %s403, 16
      %s406 = sadd.s32 %s404, %s405
      %s407 = scalar_lea.hbm %s1, %s406
      %s408 = scalar_lea.vmem [#allocation2], 49
      %s409 = sshll.u32 %s407, 4
      %s410 = int_to_ptr.hbm [resolvable:$true] %s409
      %s411 = sshll.u32 %s408, 4
      %s412 = int_to_ptr.vmem [resolvable:$true] %s411
      %416 = dma.hbm_to_vmem [thread:$0]  %s410, 32, %s412, [#allocation3], 128, 128, 1
      %s417 = sld [smem:[#allocation6 + $0x1a]]
      %s418 = sshrl.u32 %s417, 3
      %s419 = sand.u32 %s417, 7
      %s420 = smul.u32 %s418, 16
      %s421 = sadd.s32 %s419, %s420
      %s422 = scalar_lea.hbm %s1, %s421
      %s423 = scalar_lea.vmem [#allocation2], 50
      %s424 = sshll.u32 %s422, 4
      %s425 = int_to_ptr.hbm [resolvable:$true] %s424
      %s426 = sshll.u32 %s423, 4
      %s427 = int_to_ptr.vmem [resolvable:$true] %s426
      %431 = dma.hbm_to_vmem [thread:$0]  %s425, 32, %s427, [#allocation3], 128, 128, 1
      %s432 = sld [smem:[#allocation6 + $0x1b]]
      %s433 = sshrl.u32 %s432, 3
      %s434 = sand.u32 %s432, 7
      %s435 = smul.u32 %s433, 16
      %s436 = sadd.s32 %s434, %s435
      %s437 = scalar_lea.hbm %s1, %s436
      %s438 = scalar_lea.vmem [#allocation2], 51
      %s439 = sshll.u32 %s437, 4
      %s440 = int_to_ptr.hbm [resolvable:$true] %s439
      %s441 = sshll.u32 %s438, 4
      %s442 = int_to_ptr.vmem [resolvable:$true] %s441
      %446 = dma.hbm_to_vmem [thread:$0]  %s440, 32, %s442, [#allocation3], 128, 128, 1
      %s447 = sld [smem:[#allocation6 + $0x1c]]
      %s448 = sshrl.u32 %s447, 3
      %s449 = sand.u32 %s447, 7
      %s450 = smul.u32 %s448, 16
      %s451 = sadd.s32 %s449, %s450
      %s452 = scalar_lea.hbm %s1, %s451
      %s453 = scalar_lea.vmem [#allocation2], 52
      %s454 = sshll.u32 %s452, 4
      %s455 = int_to_ptr.hbm [resolvable:$true] %s454
      %s456 = sshll.u32 %s453, 4
      %s457 = int_to_ptr.vmem [resolvable:$true] %s456
      %461 = dma.hbm_to_vmem [thread:$0]  %s455, 32, %s457, [#allocation3], 128, 128, 1
      %s462 = sld [smem:[#allocation6 + $0x1d]]
      %s463 = sshrl.u32 %s462, 3
      %s464 = sand.u32 %s462, 7
      %s465 = smul.u32 %s463, 16
      %s466 = sadd.s32 %s464, %s465
      %s467 = scalar_lea.hbm %s1, %s466
      %s468 = scalar_lea.vmem [#allocation2], 53
      %s469 = sshll.u32 %s467, 4
      %s470 = int_to_ptr.hbm [resolvable:$true] %s469
      %s471 = sshll.u32 %s468, 4
      %s472 = int_to_ptr.vmem [resolvable:$true] %s471
      %476 = dma.hbm_to_vmem [thread:$0]  %s470, 32, %s472, [#allocation3], 128, 128, 1
      %s477 = sld [smem:[#allocation6 + $0x1e]]
      %s478 = sshrl.u32 %s477, 3
      %s479 = sand.u32 %s477, 7
      %s480 = smul.u32 %s478, 16
      %s481 = sadd.s32 %s479, %s480
      %s482 = scalar_lea.hbm %s1, %s481
      %s483 = scalar_lea.vmem [#allocation2], 54
      %s484 = sshll.u32 %s482, 4
      %s485 = int_to_ptr.hbm [resolvable:$true] %s484
      %s486 = sshll.u32 %s483, 4
      %s487 = int_to_ptr.vmem [resolvable:$true] %s486
      %491 = dma.hbm_to_vmem [thread:$0]  %s485, 32, %s487, [#allocation3], 128, 128, 1
      %s492 = sld [smem:[#allocation6 + $0x1f]]
      %s493 = sshrl.u32 %s492, 3
      %s494 = sand.u32 %s492, 7
      %s495 = smul.u32 %s493, 16
      %s496 = sadd.s32 %s494, %s495
      %s497 = scalar_lea.hbm %s1, %s496
      %s498 = scalar_lea.vmem [#allocation2], 55
      %s499 = sshll.u32 %s497, 4
      %s500 = int_to_ptr.hbm [resolvable:$true] %s499
      %s501 = sshll.u32 %s498, 4
      %s502 = int_to_ptr.vmem [resolvable:$true] %s501
      %506 = dma.hbm_to_vmem [thread:$0]  %s500, 32, %s502, [#allocation3], 128, 128, 1
    $region12: #{tpu_custom_call.1} parent=5 // pred_fallthru
      _
    %p507 = scmp.ge.s32.totalorder %s16, 1
    // Predicated region
    $region13: #{tpu_custom_call.1} parent=5 // pred_check
      %p508 = pneg %p507
    $region14: #{tpu_custom_call.1} parent=5 // pred_check_branch
      %510 = sbr.rel (%p508) target = $region16
    $region15: #{tpu_custom_call.1} parent=5 // pred_region
      %s511 = scalar_lea.sflag [#allocation4], %s23
      %s512 = smul.u32 8, 4
      %s513 = smul.u32 %s512, 2
      %s514 = sshll.u32 %s513, 4
      %515 = dma.done %s511, %s514
    $region16: #{tpu_custom_call.1} parent=5 // pred_fallthru
      _
    %s516 = sadd.s32 %s16, 1
    %p517 = scmp.lt.s32.totalorder %s516, 4
    // Predicated region
    $region17: #{tpu_custom_call.1} parent=5 // pred_check
      %p518 = pneg %p517
    $region18: #{tpu_custom_call.1} parent=5 // pred_check_branch
      %520 = sbr.rel (%p518) target = $region20
    $region19: #{tpu_custom_call.1} parent=5 // pred_region
      %s521 = smul.u32 %s516, 32
      %s522 = sld [smem:[#allocation6 + %s521]]
      %s523 = sshrl.u32 %s522, 3
      %s524 = sand.u32 %s522, 7
      %s525 = smul.u32 %s523, 16
      %s526 = sadd.s32 %s524, %s525
      %s527 = scalar_lea.hbm %s1, %s526
      %s528 = smul.u32 %s23, 64
      %s529 = scalar_lea.vmem [#allocation2], %s528
      %s530 = scalar_lea.sflag [#allocation3], %s23
      %s531 = sshll.u32 %s527, 4
      %s532 = int_to_ptr.hbm [resolvable:$true] %s531
      %s533 = sshll.u32 %s529, 4
      %s534 = int_to_ptr.vmem [resolvable:$true] %s533
      %538 = dma.hbm_to_vmem [thread:$0]  %s532, 32, %s534, %s530, 128, 128, 1
      %s539 = sadd.s32 %s521, 1
      %s540 = sld [smem:[#allocation6 + %s539]]
      %s541 = sshrl.u32 %s540, 3
      %s542 = sand.u32 %s540, 7
      %s543 = smul.u32 %s541, 16
      %s544 = sadd.s32 %s542, %s543
      %s545 = scalar_lea.hbm %s1, %s544
      %s546 = sadd.s32 1, %s528
      %s547 = scalar_lea.vmem [#allocation2], %s546
      %s548 = sshll.u32 %s545, 4
      %s549 = int_to_ptr.hbm [resolvable:$true] %s548
      %s550 = sshll.u32 %s547, 4
      %s551 = int_to_ptr.vmem [resolvable:$true] %s550
      %555 = dma.hbm_to_vmem [thread:$0]  %s549, 32, %s551, %s530, 128, 128, 1
      %s556 = sadd.s32 %s521, 2
      %s557 = sld [smem:[#allocation6 + %s556]]
      %s558 = sshrl.u32 %s557, 3
      %s559 = sand.u32 %s557, 7
      %s560 = smul.u32 %s558, 16
      %s561 = sadd.s32 %s559, %s560
      %s562 = scalar_lea.hbm %s1, %s561
      %s563 = sadd.s32 2, %s528
      %s564 = scalar_lea.vmem [#allocation2], %s563
      %s565 = sshll.u32 %s562, 4
      %s566 = int_to_ptr.hbm [resolvable:$true] %s565
      %s567 = sshll.u32 %s564, 4
      %s568 = int_to_ptr.vmem [resolvable:$true] %s567
      %572 = dma.hbm_to_vmem [thread:$0]  %s566, 32, %s568, %s530, 128, 128, 1
      %s573 = sadd.s32 %s521, 3
      %s574 = sld [smem:[#allocation6 + %s573]]
      %s575 = sshrl.u32 %s574, 3
      %s576 = sand.u32 %s574, 7
      %s577 = smul.u32 %s575, 16
      %s578 = sadd.s32 %s576, %s577
      %s579 = scalar_lea.hbm %s1, %s578
      %s580 = sadd.s32 3, %s528
      %s581 = scalar_lea.vmem [#allocation2], %s580
      %s582 = sshll.u32 %s579, 4
      %s583 = int_to_ptr.hbm [resolvable:$true] %s582
      %s584 = sshll.u32 %s581, 4
      %s585 = int_to_ptr.vmem [resolvable:$true] %s584
      %589 = dma.hbm_to_vmem [thread:$0]  %s583, 32, %s585, %s530, 128, 128, 1
      %s590 = sadd.s32 %s521, 4
      %s591 = sld [smem:[#allocation6 + %s590]]
      %s592 = sshrl.u32 %s591, 3
      %s593 = sand.u32 %s591, 7
      %s594 = smul.u32 %s592, 16
      %s595 = sadd.s32 %s593, %s594
      %s596 = scalar_lea.hbm %s1, %s595
      %s597 = sadd.s32 4, %s528
      %s598 = scalar_lea.vmem [#allocation2], %s597
      %s599 = sshll.u32 %s596, 4
      %s600 = int_to_ptr.hbm [resolvable:$true] %s599
      %s601 = sshll.u32 %s598, 4
      %s602 = int_to_ptr.vmem [resolvable:$true] %s601
      %606 = dma.hbm_to_vmem [thread:$0]  %s600, 32, %s602, %s530, 128, 128, 1
      %s607 = sadd.s32 %s521, 5
      %s608 = sld [smem:[#allocation6 + %s607]]
      %s609 = sshrl.u32 %s608, 3
      %s610 = sand.u32 %s608, 7
      %s611 = smul.u32 %s609, 16
      %s612 = sadd.s32 %s610, %s611
      %s613 = scalar_lea.hbm %s1, %s612
      %s614 = sadd.s32 5, %s528
      %s615 = scalar_lea.vmem [#allocation2], %s614
      %s616 = sshll.u32 %s613, 4
      %s617 = int_to_ptr.hbm [resolvable:$true] %s616
      %s618 = sshll.u32 %s615, 4
      %s619 = int_to_ptr.vmem [resolvable:$true] %s618
      %623 = dma.hbm_to_vmem [thread:$0]  %s617, 32, %s619, %s530, 128, 128, 1
      %s624 = sadd.s32 %s521, 6
      %s625 = sld [smem:[#allocation6 + %s624]]
      %s626 = sshrl.u32 %s625, 3
      %s627 = sand.u32 %s625, 7
      %s628 = smul.u32 %s626, 16
      %s629 = sadd.s32 %s627, %s628
      %s630 = scalar_lea.hbm %s1, %s629
      %s631 = sadd.s32 6, %s528
      %s632 = scalar_lea.vmem [#allocation2], %s631
      %s633 = sshll.u32 %s630, 4
      %s634 = int_to_ptr.hbm [resolvable:$true] %s633
      %s635 = sshll.u32 %s632, 4
      %s636 = int_to_ptr.vmem [resolvable:$true] %s635
      %640 = dma.hbm_to_vmem [thread:$0]  %s634, 32, %s636, %s530, 128, 128, 1
      %s641 = sadd.s32 %s521, 7
      %s642 = sld [smem:[#allocation6 + %s641]]
      %s643 = sshrl.u32 %s642, 3
      %s644 = sand.u32 %s642, 7
      %s645 = smul.u32 %s643, 16
      %s646 = sadd.s32 %s644, %s645
      %s647 = scalar_lea.hbm %s1, %s646
      %s648 = sadd.s32 7, %s528
      %s649 = scalar_lea.vmem [#allocation2], %s648
      %s650 = sshll.u32 %s647, 4
      %s651 = int_to_ptr.hbm [resolvable:$true] %s650
      %s652 = sshll.u32 %s649, 4
      %s653 = int_to_ptr.vmem [resolvable:$true] %s652
      %657 = dma.hbm_to_vmem [thread:$0]  %s651, 32, %s653, %s530, 128, 128, 1
      %s658 = sadd.s32 %s521, 8
      %s659 = sld [smem:[#allocation6 + %s658]]
      %s660 = sshrl.u32 %s659, 3
      %s661 = sand.u32 %s659, 7
      %s662 = smul.u32 %s660, 16
      %s663 = sadd.s32 %s661, %s662
      %s664 = scalar_lea.hbm %s1, %s663
      %s665 = sadd.s32 16, %s528
      %s666 = scalar_lea.vmem [#allocation2], %s665
      %s667 = sshll.u32 %s664, 4
      %s668 = int_to_ptr.hbm [resolvable:$true] %s667
      %s669 = sshll.u32 %s666, 4
      %s670 = int_to_ptr.vmem [resolvable:$true] %s669
      %674 = dma.hbm_to_vmem [thread:$0]  %s668, 32, %s670, %s530, 128, 128, 1
      %s675 = sadd.s32 %s521, 9
      %s676 = sld [smem:[#allocation6 + %s675]]
      %s677 = sshrl.u32 %s676, 3
      %s678 = sand.u32 %s676, 7
      %s679 = smul.u32 %s677, 16
      %s680 = sadd.s32 %s678, %s679
      %s681 = scalar_lea.hbm %s1, %s680
      %s682 = sadd.s32 17, %s528
      %s683 = scalar_lea.vmem [#allocation2], %s682
      %s684 = sshll.u32 %s681, 4
      %s685 = int_to_ptr.hbm [resolvable:$true] %s684
      %s686 = sshll.u32 %s683, 4
      %s687 = int_to_ptr.vmem [resolvable:$true] %s686
      %691 = dma.hbm_to_vmem [thread:$0]  %s685, 32, %s687, %s530, 128, 128, 1
      %s692 = sadd.s32 %s521, 10
      %s693 = sld [smem:[#allocation6 + %s692]]
      %s694 = sshrl.u32 %s693, 3
      %s695 = sand.u32 %s693, 7
      %s696 = smul.u32 %s694, 16
      %s697 = sadd.s32 %s695, %s696
      %s698 = scalar_lea.hbm %s1, %s697
      %s699 = sadd.s32 18, %s528
      %s700 = scalar_lea.vmem [#allocation2], %s699
      %s701 = sshll.u32 %s698, 4
      %s702 = int_to_ptr.hbm [resolvable:$true] %s701
      %s703 = sshll.u32 %s700, 4
      %s704 = int_to_ptr.vmem [resolvable:$true] %s703
      %708 = dma.hbm_to_vmem [thread:$0]  %s702, 32, %s704, %s530, 128, 128, 1
      %s709 = sadd.s32 %s521, 11
      %s710 = sld [smem:[#allocation6 + %s709]]
      %s711 = sshrl.u32 %s710, 3
      %s712 = sand.u32 %s710, 7
      %s713 = smul.u32 %s711, 16
      %s714 = sadd.s32 %s712, %s713
      %s715 = scalar_lea.hbm %s1, %s714
      %s716 = sadd.s32 19, %s528
      %s717 = scalar_lea.vmem [#allocation2], %s716
      %s718 = sshll.u32 %s715, 4
      %s719 = int_to_ptr.hbm [resolvable:$true] %s718
      %s720 = sshll.u32 %s717, 4
      %s721 = int_to_ptr.vmem [resolvable:$true] %s720
      %725 = dma.hbm_to_vmem [thread:$0]  %s719, 32, %s721, %s530, 128, 128, 1
      %s726 = sadd.s32 %s521, 12
      %s727 = sld [smem:[#allocation6 + %s726]]
      %s728 = sshrl.u32 %s727, 3
      %s729 = sand.u32 %s727, 7
      %s730 = smul.u32 %s728, 16
      %s731 = sadd.s32 %s729, %s730
      %s732 = scalar_lea.hbm %s1, %s731
      %s733 = sadd.s32 20, %s528
      %s734 = scalar_lea.vmem [#allocation2], %s733
      %s735 = sshll.u32 %s732, 4
      %s736 = int_to_ptr.hbm [resolvable:$true] %s735
      %s737 = sshll.u32 %s734, 4
      %s738 = int_to_ptr.vmem [resolvable:$true] %s737
      %742 = dma.hbm_to_vmem [thread:$0]  %s736, 32, %s738, %s530, 128, 128, 1
      %s743 = sadd.s32 %s521, 13
      %s744 = sld [smem:[#allocation6 + %s743]]
      %s745 = sshrl.u32 %s744, 3
      %s746 = sand.u32 %s744, 7
      %s747 = smul.u32 %s745, 16
      %s748 = sadd.s32 %s746, %s747
      %s749 = scalar_lea.hbm %s1, %s748
      %s750 = sadd.s32 21, %s528
      %s751 = scalar_lea.vmem [#allocation2], %s750
      %s752 = sshll.u32 %s749, 4
      %s753 = int_to_ptr.hbm [resolvable:$true] %s752
      %s754 = sshll.u32 %s751, 4
      %s755 = int_to_ptr.vmem [resolvable:$true] %s754
      %759 = dma.hbm_to_vmem [thread:$0]  %s753, 32, %s755, %s530, 128, 128, 1
      %s760 = sadd.s32 %s521, 14
      %s761 = sld [smem:[#allocation6 + %s760]]
      %s762 = sshrl.u32 %s761, 3
      %s763 = sand.u32 %s761, 7
      %s764 = smul.u32 %s762, 16
      %s765 = sadd.s32 %s763, %s764
      %s766 = scalar_lea.hbm %s1, %s765
      %s767 = sadd.s32 22, %s528
      %s768 = scalar_lea.vmem [#allocation2], %s767
      %s769 = sshll.u32 %s766, 4
      %s770 = int_to_ptr.hbm [resolvable:$true] %s769
      %s771 = sshll.u32 %s768, 4
      %s772 = int_to_ptr.vmem [resolvable:$true] %s771
      %776 = dma.hbm_to_vmem [thread:$0]  %s770, 32, %s772, %s530, 128, 128, 1
      %s777 = sadd.s32 %s521, 15
      %s778 = sld [smem:[#allocation6 + %s777]]
      %s779 = sshrl.u32 %s778, 3
      %s780 = sand.u32 %s778, 7
      %s781 = smul.u32 %s779, 16
      %s782 = sadd.s32 %s780, %s781
      %s783 = scalar_lea.hbm %s1, %s782
      %s784 = sadd.s32 23, %s528
      %s785 = scalar_lea.vmem [#allocation2], %s784
      %s786 = sshll.u32 %s783, 4
      %s787 = int_to_ptr.hbm [resolvable:$true] %s786
      %s788 = sshll.u32 %s785, 4
      %s789 = int_to_ptr.vmem [resolvable:$true] %s788
      %793 = dma.hbm_to_vmem [thread:$0]  %s787, 32, %s789, %s530, 128, 128, 1
      %s794 = sadd.s32 %s521, 16
      %s795 = sld [smem:[#allocation6 + %s794]]
      %s796 = sshrl.u32 %s795, 3
      %s797 = sand.u32 %s795, 7
      %s798 = smul.u32 %s796, 16
      %s799 = sadd.s32 %s797, %s798
      %s800 = scalar_lea.hbm %s1, %s799
      %s801 = sadd.s32 32, %s528
      %s802 = scalar_lea.vmem [#allocation2], %s801
      %s803 = sshll.u32 %s800, 4
      %s804 = int_to_ptr.hbm [resolvable:$true] %s803
      %s805 = sshll.u32 %s802, 4
      %s806 = int_to_ptr.vmem [resolvable:$true] %s805
      %810 = dma.hbm_to_vmem [thread:$0]  %s804, 32, %s806, %s530, 128, 128, 1
      %s811 = sadd.s32 %s521, 17
      %s812 = sld [smem:[#allocation6 + %s811]]
      %s813 = sshrl.u32 %s812, 3
      %s814 = sand.u32 %s812, 7
      %s815 = smul.u32 %s813, 16
      %s816 = sadd.s32 %s814, %s815
      %s817 = scalar_lea.hbm %s1, %s816
      %s818 = sadd.s32 33, %s528
      %s819 = scalar_lea.vmem [#allocation2], %s818
      %s820 = sshll.u32 %s817, 4
      %s821 = int_to_ptr.hbm [resolvable:$true] %s820
      %s822 = sshll.u32 %s819, 4
      %s823 = int_to_ptr.vmem [resolvable:$true] %s822
      %827 = dma.hbm_to_vmem [thread:$0]  %s821, 32, %s823, %s530, 128, 128, 1
      %s828 = sadd.s32 %s521, 18
      %s829 = sld [smem:[#allocation6 + %s828]]
      %s830 = sshrl.u32 %s829, 3
      %s831 = sand.u32 %s829, 7
      %s832 = smul.u32 %s830, 16
      %s833 = sadd.s32 %s831, %s832
      %s834 = scalar_lea.hbm %s1, %s833
      %s835 = sadd.s32 34, %s528
      %s836 = scalar_lea.vmem [#allocation2], %s835
      %s837 = sshll.u32 %s834, 4
      %s838 = int_to_ptr.hbm [resolvable:$true] %s837
      %s839 = sshll.u32 %s836, 4
      %s840 = int_to_ptr.vmem [resolvable:$true] %s839
      %844 = dma.hbm_to_vmem [thread:$0]  %s838, 32, %s840, %s530, 128, 128, 1
      %s845 = sadd.s32 %s521, 19
      %s846 = sld [smem:[#allocation6 + %s845]]
      %s847 = sshrl.u32 %s846, 3
      %s848 = sand.u32 %s846, 7
      %s849 = smul.u32 %s847, 16
      %s850 = sadd.s32 %s848, %s849
      %s851 = scalar_lea.hbm %s1, %s850
      %s852 = sadd.s32 35, %s528
      %s853 = scalar_lea.vmem [#allocation2], %s852
      %s854 = sshll.u32 %s851, 4
      %s855 = int_to_ptr.hbm [resolvable:$true] %s854
      %s856 = sshll.u32 %s853, 4
      %s857 = int_to_ptr.vmem [resolvable:$true] %s856
      %861 = dma.hbm_to_vmem [thread:$0]  %s855, 32, %s857, %s530, 128, 128, 1
      %s862 = sadd.s32 %s521, 20
      %s863 = sld [smem:[#allocation6 + %s862]]
      %s864 = sshrl.u32 %s863, 3
      %s865 = sand.u32 %s863, 7
      %s866 = smul.u32 %s864, 16
      %s867 = sadd.s32 %s865, %s866
      %s868 = scalar_lea.hbm %s1, %s867
      %s869 = sadd.s32 36, %s528
      %s870 = scalar_lea.vmem [#allocation2], %s869
      %s871 = sshll.u32 %s868, 4
      %s872 = int_to_ptr.hbm [resolvable:$true] %s871
      %s873 = sshll.u32 %s870, 4
      %s874 = int_to_ptr.vmem [resolvable:$true] %s873
      %878 = dma.hbm_to_vmem [thread:$0]  %s872, 32, %s874, %s530, 128, 128, 1
      %s879 = sadd.s32 %s521, 21
      %s880 = sld [smem:[#allocation6 + %s879]]
      %s881 = sshrl.u32 %s880, 3
      %s882 = sand.u32 %s880, 7
      %s883 = smul.u32 %s881, 16
      %s884 = sadd.s32 %s882, %s883
      %s885 = scalar_lea.hbm %s1, %s884
      %s886 = sadd.s32 37, %s528
      %s887 = scalar_lea.vmem [#allocation2], %s886
      %s888 = sshll.u32 %s885, 4
      %s889 = int_to_ptr.hbm [resolvable:$true] %s888
      %s890 = sshll.u32 %s887, 4
      %s891 = int_to_ptr.vmem [resolvable:$true] %s890
      %895 = dma.hbm_to_vmem [thread:$0]  %s889, 32, %s891, %s530, 128, 128, 1
      %s896 = sadd.s32 %s521, 22
      %s897 = sld [smem:[#allocation6 + %s896]]
      %s898 = sshrl.u32 %s897, 3
      %s899 = sand.u32 %s897, 7
      %s900 = smul.u32 %s898, 16
      %s901 = sadd.s32 %s899, %s900
      %s902 = scalar_lea.hbm %s1, %s901
      %s903 = sadd.s32 38, %s528
      %s904 = scalar_lea.vmem [#allocation2], %s903
      %s905 = sshll.u32 %s902, 4
      %s906 = int_to_ptr.hbm [resolvable:$true] %s905
      %s907 = sshll.u32 %s904, 4
      %s908 = int_to_ptr.vmem [resolvable:$true] %s907
      %912 = dma.hbm_to_vmem [thread:$0]  %s906, 32, %s908, %s530, 128, 128, 1
      %s913 = sadd.s32 %s521, 23
      %s914 = sld [smem:[#allocation6 + %s913]]
      %s915 = sshrl.u32 %s914, 3
      %s916 = sand.u32 %s914, 7
      %s917 = smul.u32 %s915, 16
      %s918 = sadd.s32 %s916, %s917
      %s919 = scalar_lea.hbm %s1, %s918
      %s920 = sadd.s32 39, %s528
      %s921 = scalar_lea.vmem [#allocation2], %s920
      %s922 = sshll.u32 %s919, 4
      %s923 = int_to_ptr.hbm [resolvable:$true] %s922
      %s924 = sshll.u32 %s921, 4
      %s925 = int_to_ptr.vmem [resolvable:$true] %s924
      %929 = dma.hbm_to_vmem [thread:$0]  %s923, 32, %s925, %s530, 128, 128, 1
      %s930 = sadd.s32 %s521, 24
      %s931 = sld [smem:[#allocation6 + %s930]]
      %s932 = sshrl.u32 %s931, 3
      %s933 = sand.u32 %s931, 7
      %s934 = smul.u32 %s932, 16
      %s935 = sadd.s32 %s933, %s934
      %s936 = scalar_lea.hbm %s1, %s935
      %s937 = sadd.s32 48, %s528
      %s938 = scalar_lea.vmem [#allocation2], %s937
      %s939 = sshll.u32 %s936, 4
      %s940 = int_to_ptr.hbm [resolvable:$true] %s939
      %s941 = sshll.u32 %s938, 4
      %s942 = int_to_ptr.vmem [resolvable:$true] %s941
      %946 = dma.hbm_to_vmem [thread:$0]  %s940, 32, %s942, %s530, 128, 128, 1
      %s947 = sadd.s32 %s521, 25
      %s948 = sld [smem:[#allocation6 + %s947]]
      %s949 = sshrl.u32 %s948, 3
      %s950 = sand.u32 %s948, 7
      %s951 = smul.u32 %s949, 16
      %s952 = sadd.s32 %s950, %s951
      %s953 = scalar_lea.hbm %s1, %s952
      %s954 = sadd.s32 49, %s528
      %s955 = scalar_lea.vmem [#allocation2], %s954
      %s956 = sshll.u32 %s953, 4
      %s957 = int_to_ptr.hbm [resolvable:$true] %s956
      %s958 = sshll.u32 %s955, 4
      %s959 = int_to_ptr.vmem [resolvable:$true] %s958
      %963 = dma.hbm_to_vmem [thread:$0]  %s957, 32, %s959, %s530, 128, 128, 1
      %s964 = sadd.s32 %s521, 26
      %s965 = sld [smem:[#allocation6 + %s964]]
      %s966 = sshrl.u32 %s965, 3
      %s967 = sand.u32 %s965, 7
      %s968 = smul.u32 %s966, 16
      %s969 = sadd.s32 %s967, %s968
      %s970 = scalar_lea.hbm %s1, %s969
      %s971 = sadd.s32 50, %s528
      %s972 = scalar_lea.vmem [#allocation2], %s971
      %s973 = sshll.u32 %s970, 4
      %s974 = int_to_ptr.hbm [resolvable:$true] %s973
      %s975 = sshll.u32 %s972, 4
      %s976 = int_to_ptr.vmem [resolvable:$true] %s975
      %980 = dma.hbm_to_vmem [thread:$0]  %s974, 32, %s976, %s530, 128, 128, 1
      %s981 = sadd.s32 %s521, 27
      %s982 = sld [smem:[#allocation6 + %s981]]
      %s983 = sshrl.u32 %s982, 3
      %s984 = sand.u32 %s982, 7
      %s985 = smul.u32 %s983, 16
      %s986 = sadd.s32 %s984, %s985
      %s987 = scalar_lea.hbm %s1, %s986
      %s988 = sadd.s32 51, %s528
      %s989 = scalar_lea.vmem [#allocation2], %s988
      %s990 = sshll.u32 %s987, 4
      %s991 = int_to_ptr.hbm [resolvable:$true] %s990
      %s992 = sshll.u32 %s989, 4
      %s993 = int_to_ptr.vmem [resolvable:$true] %s992
      %997 = dma.hbm_to_vmem [thread:$0]  %s991, 32, %s993, %s530, 128, 128, 1
      %s998 = sadd.s32 %s521, 28
      %s999 = sld [smem:[#allocation6 + %s998]]
      %s1000 = sshrl.u32 %s999, 3
      %s1001 = sand.u32 %s999, 7
      %s1002 = smul.u32 %s1000, 16
      %s1003 = sadd.s32 %s1001, %s1002
      %s1004 = scalar_lea.hbm %s1, %s1003
      %s1005 = sadd.s32 52, %s528
      %s1006 = scalar_lea.vmem [#allocation2], %s1005
      %s1007 = sshll.u32 %s1004, 4
      %s1008 = int_to_ptr.hbm [resolvable:$true] %s1007
      %s1009 = sshll.u32 %s1006, 4
      %s1010 = int_to_ptr.vmem [resolvable:$true] %s1009
      %1014 = dma.hbm_to_vmem [thread:$0]  %s1008, 32, %s1010, %s530, 128, 128, 1
      %s1015 = sadd.s32 %s521, 29
      %s1016 = sld [smem:[#allocation6 + %s1015]]
      %s1017 = sshrl.u32 %s1016, 3
      %s1018 = sand.u32 %s1016, 7
      %s1019 = smul.u32 %s1017, 16
      %s1020 = sadd.s32 %s1018, %s1019
      %s1021 = scalar_lea.hbm %s1, %s1020
      %s1022 = sadd.s32 53, %s528
      %s1023 = scalar_lea.vmem [#allocation2], %s1022
      %s1024 = sshll.u32 %s1021, 4
      %s1025 = int_to_ptr.hbm [resolvable:$true] %s1024
      %s1026 = sshll.u32 %s1023, 4
      %s1027 = int_to_ptr.vmem [resolvable:$true] %s1026
      %1031 = dma.hbm_to_vmem [thread:$0]  %s1025, 32, %s1027, %s530, 128, 128, 1
      %s1032 = sadd.s32 %s521, 30
      %s1033 = sld [smem:[#allocation6 + %s1032]]
      %s1034 = sshrl.u32 %s1033, 3
      %s1035 = sand.u32 %s1033, 7
      %s1036 = smul.u32 %s1034, 16
      %s1037 = sadd.s32 %s1035, %s1036
      %s1038 = scalar_lea.hbm %s1, %s1037
      %s1039 = sadd.s32 54, %s528
      %s1040 = scalar_lea.vmem [#allocation2], %s1039
      %s1041 = sshll.u32 %s1038, 4
      %s1042 = int_to_ptr.hbm [resolvable:$true] %s1041
      %s1043 = sshll.u32 %s1040, 4
      %s1044 = int_to_ptr.vmem [resolvable:$true] %s1043
      %1048 = dma.hbm_to_vmem [thread:$0]  %s1042, 32, %s1044, %s530, 128, 128, 1
      %s1049 = sadd.s32 %s521, 31
      %s1050 = sld [smem:[#allocation6 + %s1049]]
      %s1051 = sshrl.u32 %s1050, 3
      %s1052 = sand.u32 %s1050, 7
      %s1053 = smul.u32 %s1051, 16
      %s1054 = sadd.s32 %s1052, %s1053
      %s1055 = scalar_lea.hbm %s1, %s1054
      %s1056 = sadd.s32 55, %s528
      %s1057 = scalar_lea.vmem [#allocation2], %s1056
      %s1058 = sshll.u32 %s1055, 4
      %s1059 = int_to_ptr.hbm [resolvable:$true] %s1058
      %s1060 = sshll.u32 %s1057, 4
      %s1061 = int_to_ptr.vmem [resolvable:$true] %s1060
      %1065 = dma.hbm_to_vmem [thread:$0]  %s1059, 32, %s1061, %s530, 128, 128, 1
    $region20: #{tpu_custom_call.1} parent=5 // pred_fallthru
      _
    %s1066 = smul.u32 %s22, 8
    %s1067 = smul.addr %s1066, 8
    %s1068 = scalar_lea.vmem [#allocation2], %s1067
    %s1069 = scalar_lea.sflag [#allocation3], %s22
    %s1070 = smul.u32 8, 4
    %s1071 = smul.u32 %s1070, 2
    %s1072 = sshll.u32 %s1071, 4
    %1073 = dma.done %s1069, %s1072
    %s1074 = smul.u32 %s16, 32
    %s1075 = sshra.s32 %s1074, 3
    %s1076 = sand.u32 %s1074, 7
    %s1077 = smul.u32 %s1075, 2
    %s1078 = smul.addr %s1077, 8
    %s1079 = scalar_lea.hbm %s2, %s1078
    %s1080 = scalar_lea.sflag [#allocation4], %s22
    // Predicated region
    $region21: #{tpu_custom_call.1} parent=5 // pred_check
      _
    $region22: #{tpu_custom_call.1} parent=5 // pred_check_branch
      %1082 = sbr.rel target = $region24
    $region23: #{tpu_custom_call.1} parent=5 // pred_region
      %1083 = sst [smem:[#allocation73]] [#allocation72]
      %1084 = sst [smem:[#allocation74]] [#allocation71]
    $region24: #{tpu_custom_call.1} parent=5 // pred_fallthru
      _
    %1086 = shalt.err (0)
    %s1088 = sshll.u32 %s1068, 4
    %s1089 = int_to_ptr.vmem [resolvable:$true] %s1088
    %s1090 = sshll.u32 %s1079, 4
    %s1091 = int_to_ptr.hbm [resolvable:$true] %s1090
    %1093 = dma.vmem_to_hbm [thread:$0]  %s1089, 1024, %s1091, %s1080
    %p1094 = scmp.eq.s32.totalorder %s16, 3
    // Predicated region
    $region25: #{tpu_custom_call.1} parent=5 // pred_check
      %p1095 = pneg %p1094
    $region26: #{tpu_custom_call.1} parent=5 // pred_check_branch
      %1097 = sbr.rel (%p1095) target = $region28
    $region27: #{tpu_custom_call.1} parent=5 // pred_region
      %s1098 = sshll.u32 %s1071, 4
      %1099 = dma.done %s1080, %s1098
    $region28: #{tpu_custom_call.1} parent=5 // pred_fallthru
      _
  $region6: #{tpu_custom_call.1} parent=0 // loop_footer
    %s20 = sadd.s32 1, %s16
  $region7: #{tpu_custom_call.1} parent=0 // loop_footer_branch
    %15 = sbr.rel target = $region3
  $region8: #{tpu_custom_call.1} parent=0 // loop_exit
    _
  %1100 = vsyncmov [#allocation3]
  %s1101 = vpop.sfrf %1100
  %p1102 = scmp.eq.s32.totalorder %s1101, 0
  %p1103 = pneg %p1102
  %1105 = shalt.err (%p1103)
  %s1106 = scalar_lea.sflag [#allocation3], 1
  %1107 = vsyncmov %s1106
  %s1108 = vpop.sfrf %1107
  %p1109 = scmp.eq.s32.totalorder %s1108, 0
  %p1110 = pneg %p1109
  %1112 = shalt.err (%p1110)
  %1113 = vsyncmov [#allocation4]
  %s1114 = vpop.sfrf %1113
  %p1115 = scmp.eq.s32.totalorder %s1114, 0
  %p1116 = pneg %p1115
  %1118 = shalt.err (%p1116)
  %s1119 = scalar_lea.sflag [#allocation4], 1
  %1120 = vsyncmov %s1119
  %s1121 = vpop.sfrf %1120
  %p1122 = scmp.eq.s32.totalorder %s1121, 0
  %p1123 = pneg %p1122
  %1125 = shalt.err (%p1123)

</llo_original>
